<compile_context>
chip_gen: v7x
topology: tpu7x:2x2x1
jax: 0.10.0
libtpu: 0.0.40
codegen_flags: <defaults>
</compile_context>

<pallas_src>
import numpy as np
import jax
import jax.numpy as jnp
from jax.experimental import pallas as pl
from jax.experimental.pallas import tpu as pltpu


def stn_conv_pool_kernel(x_ref, w1_ref, b12_ref, w2_ref, w3_ref, b3_ref,
                         pooled_ref, scr_ref):
    """One grid step = (batch element b, conv3 channel shard s, point chunk n).

    Channels live on sublanes, points on lanes (NCW straight from HBM — no
    transpose pass).  Every matmul is a standard-orientation bf16 MXU matmul
    with f32 accumulation.

    x_ref:      (1, k, Nc)  f32 point chunk
    w1_ref:     (128, k)    bf16, BN scale folded, out-channels padded 64->128
    b12_ref:    (128, 2)    f32, columns = [shift1, shift2]
    w2_ref:     (128, 128)  bf16, BN scale folded
    w3_ref:     (C3s, 128)  bf16, BN scale folded (channel shard)
    b3_ref:     (C3s, 1)    f32 conv3 shift (applied AFTER the pool)
    pooled_ref: (1, C3s, 1) f32 output block (written on the last chunk only)
    scr_ref:    (C3s, 128)  f32 running-max scratch
    """
    chunk = pl.program_id(2)

    @pl.when(chunk == 0)
    def _init():
        scr_ref[...] = jnp.full(scr_ref.shape, -jnp.inf, scr_ref.dtype)

    x = x_ref[0].astype(jnp.bfloat16)                                  # (k, Nc)
    b12 = b12_ref[...]                                                 # (128, 2)
    b1 = b12[:, 0:1]
    b2 = b12[:, 1:2]

    # conv1 (1x1, BN scale folded into w1) + shift + relu
    h = jnp.dot(w1_ref[...], x, preferred_element_type=jnp.float32)   # (128, Nc)
    h = jnp.maximum(h + b1, 0.0)

    # conv2 (1x1) + shift + relu
    h = jnp.dot(w2_ref[...], h.astype(jnp.bfloat16),
                preferred_element_type=jnp.float32)                   # (128, Nc)
    h = jnp.maximum(h + b2, 0.0)

    # conv3 raw (scale folded into w3); shift + ReLU deferred past the pool.
    h = jnp.dot(w3_ref[...], h.astype(jnp.bfloat16),
                preferred_element_type=jnp.float32)                   # (C3s, Nc)

    # Running max over points: VPU-only maxima over 128-lane slabs
    # (lane-group-aligned slices are pure views — no relayout, no XLU here).
    nc = h.shape[1]
    acc = scr_ref[...]
    for j in range(nc // 128):
        acc = jnp.maximum(acc, h[:, j * 128:(j + 1) * 128])
    scr_ref[...] = acc

    @pl.when(chunk == pl.num_programs(2) - 1)
    def _finalize():
        pooled = jnp.max(scr_ref[...], axis=1, keepdims=True)         # (C3s, 1) — one XLU reduce
        pooled_ref[0] = jnp.maximum(pooled + b3_ref[...], 0.0)        # deferred bn3 shift + relu


def stn_fc_kernel(g_ref, wf1_ref, b4_ref, wf2_ref, b5_ref, wf3_ref, bf3_ref,
                  out_ref):
    """FC head for the WHOLE batch in one step (M = B, not M = 1 per element)."""
    g = g_ref[...].astype(jnp.bfloat16)                                # (B, 1024)

    f = jnp.dot(g, wf1_ref[...], preferred_element_type=jnp.float32)  # (B, 512)
    f = jnp.maximum(f + b4_ref[...], 0.0)

    f = jnp.dot(f.astype(jnp.bfloat16), wf2_ref[...],
                preferred_element_type=jnp.float32)                   # (B, 256)
    f = jnp.maximum(f + b5_ref[...], 0.0)

    o = jnp.dot(f.astype(jnp.bfloat16), wf3_ref[...],
                preferred_element_type=jnp.float32)                   # (B, k*k)
    out_ref[...] = o + bf3_ref[...]                                   # bias + identity


def _pad_and_chunk(n_points):
    """Lane-dense point padding + chunk size.

    Pads N up to a multiple of 128 and picks the largest chunk in
    {1024, 512, 256, 128} that divides the padded N (keeps the MXU pipeline
    full while bounding per-step VMEM across v5e/v6e/v7x)."""
    padded = ((max(n_points, 1) + 127) // 128) * 128
    for c in (1024, 512, 256, 128):
        if padded % c == 0:
            return padded, c
    return padded, 128


def stnkd_forward(x_ncw, params, eps=1e-5):
    """x_ncw: (B, k, N) float32 (PyTorch NCW layout). Returns (B, k, k)."""
    B, k, N = x_ncw.shape
    C1P = 128                                  # conv1 out-channels padded 64 -> 128

    def scale_shift(bias, bn):
        gamma, beta, mean, var = bn
        s = (gamma / jnp.sqrt(var + eps)).astype(jnp.float32)
        shift = ((bias - mean) * s + beta).astype(jnp.float32)
        return s, shift

    s1, sh1 = scale_shift(params['conv1_b'], params['bn1'])           # (64,)
    s2, sh2 = scale_shift(params['conv2_b'], params['bn2'])           # (128,)
    s3, sh3 = scale_shift(params['conv3_b'], params['bn3'])           # (1024,)
    s4, sh4 = scale_shift(params['fc1_b'], params['bn4'])             # (512,)
    s5, sh5 = scale_shift(params['fc2_b'], params['bn5'])             # (256,)

    # Fold BN scales into the weights IN F32, then cast to bf16.
    w1 = params['conv1_w'].astype(jnp.float32) * s1[:, None]          # (64, k)
    w2 = params['conv2_w'].astype(jnp.float32) * s2[:, None]          # (128, 64)
    w3 = params['conv3_w'].astype(jnp.float32) * s3[:, None]          # (1024, 128)
    wf1t = params['fc1_w'].astype(jnp.float32).T * s4[None, :]        # (1024, 512)
    wf2t = params['fc2_w'].astype(jnp.float32).T * s5[None, :]        # (512, 256)
    wf3t = params['fc3_w'].astype(jnp.float32).T                      # (256, k*k)

    # Lane/sublane-dense padding: conv1 out-channels 64 -> 128.  Padded rows
    # of w1 and the padded shifts are zero, so padded activations are exactly
    # relu(0) = 0, and w2's padded input columns are zero.
    pad1 = C1P - w1.shape[0]
    w1 = jnp.pad(w1, ((0, pad1), (0, 0)))                             # (128, k)
    sh1p = jnp.pad(sh1, ((0, pad1),))                                 # (128,)
    w2 = jnp.pad(w2, ((0, 0), (0, pad1)))                             # (128, 128)
    b12 = jnp.stack([sh1p, sh2], axis=1)                              # (128, 2) f32
    b3col = sh3[:, None]                                              # (1024, 1) f32

    eye_flat = jnp.eye(k, dtype=jnp.float32).reshape(-1)
    bf3 = (params['fc3_b'].astype(jnp.float32) + eye_flat)[None, :]   # (1, k*k)

    bf16 = lambda a: a.astype(jnp.bfloat16)

    # Pad points by duplicating the last point (duplicates cannot change the
    # max; zero padding is NOT safe because conv3's shift is deferred).
    Np, Nc = _pad_and_chunk(N)
    if Np != N:
        x_ncw = jnp.pad(x_ncw, ((0, 0), (0, 0), (0, Np - N)), mode='edge')
    n_chunks = Np // Nc

    # For single-cloud inference, shard conv3's 1024 output channels (and the
    # pool) across a second parallel grid axis so both v7x TCs have work.
    n_shards = 2 if B == 1 else 1
    C3s = 1024 // n_shards

    conv_ops = [bf16(w1), b12, bf16(w2), bf16(w3), b3col]

    def full_spec(a):
        return pl.BlockSpec(a.shape, lambda b, s, n: (0,) * a.ndim)

    # ---- kernel 1: conv stack + global max-pool over points -----------------
    pooled3 = pl.pallas_call(
        stn_conv_pool_kernel,
        out_shape=jax.ShapeDtypeStruct((B, 1024, 1), jnp.float32),
        grid=(B, n_shards, n_chunks),
        in_specs=[
            pl.BlockSpec((1, k, Nc), lambda b, s, n: (b, 0, n)),
            full_spec(conv_ops[0]),                                   # w1
            full_spec(conv_ops[1]),                                   # b12
            full_spec(conv_ops[2]),                                   # w2
            pl.BlockSpec((C3s, 128), lambda b, s, n: (s, 0)),         # w3 shard
            pl.BlockSpec((C3s, 1), lambda b, s, n: (s, 0)),           # b3 shard
        ],
        out_specs=pl.BlockSpec((1, C3s, 1), lambda b, s, n: (b, s, 0)),
        scratch_shapes=[pltpu.VMEM((C3s, 128), jnp.float32)],
        compiler_params=pltpu.CompilerParams(
            dimension_semantics=("parallel", "parallel", "arbitrary"),
            vmem_limit_bytes=32 << 20),
    )(x_ncw.astype(jnp.float32), *conv_ops)

    g = pooled3.reshape(B, 1024)                                      # trailing-1 squeeze

    # ---- kernel 2: fc head, batched over all B in one grid step -------------
    fc_ops = [bf16(wf1t), sh4[None, :], bf16(wf2t), sh5[None, :], bf16(wf3t), bf3]

    def fc_spec(a):
        return pl.BlockSpec(a.shape, lambda i: (0,) * a.ndim)

    out = pl.pallas_call(
        stn_fc_kernel,
        out_shape=jax.ShapeDtypeStruct((B, k * k), jnp.float32),
        grid=(1,),
        in_specs=[pl.BlockSpec((B, 1024), lambda i: (0, 0))]
                 + [fc_spec(a) for a in fc_ops],
        out_specs=pl.BlockSpec((B, k * k), lambda i: (0, 0)),
        compiler_params=pltpu.CompilerParams(
            dimension_semantics=("arbitrary",)),
    )(g, *fc_ops)

    return out.reshape(B, k, k)


def stnkd_reference(x_ncw, params, eps=1e-5):
    """Pure-JAX f32 reference mirroring the PyTorch forward (eval-mode BN)."""
    B, k, N = x_ncw.shape
    x = x_ncw.astype(jnp.float32)

    def bn_c(z, bn):  # (B, C, N), BN over channel axis 1
        g, b, m, v = bn
        return g[None, :, None] * (z - m[None, :, None]) / \
            jnp.sqrt(v[None, :, None] + eps) + b[None, :, None]

    def bn_f(z, bn):  # (B, C), BN over last axis
        g, b, m, v = bn
        return g * (z - m) / jnp.sqrt(v + eps) + b

    h = jnp.einsum('oc,bcn->bon', params['conv1_w'], x) + params['conv1_b'][None, :, None]
    h = jax.nn.relu(bn_c(h, params['bn1']))
    h = jnp.einsum('oc,bcn->bon', params['conv2_w'], h) + params['conv2_b'][None, :, None]
    h = jax.nn.relu(bn_c(h, params['bn2']))
    h = jnp.einsum('oc,bcn->bon', params['conv3_w'], h) + params['conv3_b'][None, :, None]
    h = jax.nn.relu(bn_c(h, params['bn3']))
    g = jnp.max(h, axis=2)                                              # (B, 1024)
    f = jax.nn.relu(bn_f(g @ params['fc1_w'].T + params['fc1_b'], params['bn4']))
    f = jax.nn.relu(bn_f(f @ params['fc2_w'].T + params['fc2_b'], params['bn5']))
    o = f @ params['fc3_w'].T + params['fc3_b']
    o = o + jnp.eye(k, dtype=jnp.float32).reshape(1, -1)
    return o.reshape(B, k, k)


def make_params(key, k):
    ks = list(jax.random.split(key, 40))
    i = [0]

    def nxt():
        i[0] += 1
        return ks[i[0] - 1]

    def lin(cout, cin):
        w = 0.05 * jax.random.normal(nxt(), (cout, cin), jnp.float32)
        b = 0.05 * jax.random.normal(nxt(), (cout,), jnp.float32)
        return w, b

    def bn(c):
        gamma = jax.random.uniform(nxt(), (c,), jnp.float32, 0.5, 1.5)
        beta = 0.1 * jax.random.normal(nxt(), (c,), jnp.float32)
        mean = 0.01 * jax.random.normal(nxt(), (c,), jnp.float32)
        var = jax.random.uniform(nxt(), (c,), jnp.float32, 0.8, 1.2)
        return (gamma, beta, mean, var)

    p = {}
    p['conv1_w'], p['conv1_b'] = lin(64, k)
    p['conv2_w'], p['conv2_b'] = lin(128, 64)
    p['conv3_w'], p['conv3_b'] = lin(1024, 128)
    p['fc1_w'], p['fc1_b'] = lin(512, 1024)
    p['fc2_w'], p['fc2_b'] = lin(256, 512)
    p['fc3_w'], p['fc3_b'] = lin(k * k, 256)
    p['bn1'] = bn(64)
    p['bn2'] = bn(128)
    p['bn3'] = bn(1024)
    p['bn4'] = bn(512)
    p['bn5'] = bn(256)
    return p


if __name__ == "__main__":
    key = jax.random.PRNGKey(0)
    B, k, N = 2, 16, 64                     # small shapes: 2 clouds, k=16 chans, 64 pts
    pkey, xkey = jax.random.split(key)
    params = make_params(pkey, k)
    x = jax.random.normal(xkey, (B, k, N), jnp.float32)   # PyTorch NCW layout

    out = jax.block_until_ready(stnkd_forward(x, params))
    ref = jax.block_until_ready(stnkd_reference(x, params))

    assert out.shape == (B, k, k), out.shape
    max_err = float(np.max(np.abs(np.asarray(out) - np.asarray(ref))))
    # bf16 matmul operands (incl. in-kernel bf16 cast of x) with f32 MXU
    # accumulation: intentional quantization -> loosened tolerance vs. f32.
    assert np.allclose(np.asarray(out), np.asarray(ref), rtol=2e-2, atol=2e-2), max_err

    # Also exercise the B == 1 path (conv3 channel-sharded across a second
    # parallel grid axis so both v7x TensorCores stay busy for small batches).
    out1 = jax.block_until_ready(stnkd_forward(x[:1], params))
    max_err1 = float(np.max(np.abs(np.asarray(out1) - np.asarray(ref[:1]))))
    assert np.allclose(np.asarray(out1), np.asarray(ref[:1]), rtol=2e-2, atol=2e-2), max_err1

    print("KERNEL_OK")
</pallas_src>

<mosaic_0001>
module attributes {stable_mosaic.version = 11 : i64} {
  func.func @stn_conv_pool_kernel(%arg0: i32, %arg1: i32, %arg2: i32, %arg3: memref<1x16x128xf32, #tpu.memory_space<vmem>>, %arg4: memref<128x16xbf16, #tpu.memory_space<vmem>>, %arg5: memref<128x2xf32, #tpu.memory_space<vmem>>, %arg6: memref<128x128xbf16, #tpu.memory_space<vmem>>, %arg7: memref<1024x128xbf16, #tpu.memory_space<vmem>>, %arg8: memref<1024x1xf32, #tpu.memory_space<vmem>>, %arg9: memref<1x1024x1xf32, #tpu.memory_space<vmem>>, %arg10: memref<1024x128xf32, #tpu.memory_space<vmem>>) attributes {dimension_semantics = [#tpu.dimension_semantics<parallel>, #tpu.dimension_semantics<parallel>, #tpu.dimension_semantics<arbitrary>], iteration_bounds = array<i64: 2, 1, 1>, scalar_prefetch = 0 : i64, scratch_operands = 1 : i64, tpu.core_type = #tpu.core_type<tc>, window_params = [{transform_indices = @transform_0, window_bounds = array<i64: 1, 16, 128>}, {pipeline_mode = #tpu.pipeline_mode<synchronous>, transform_indices = @transform_1, window_bounds = array<i64: 128, 16>}, {pipeline_mode = #tpu.pipeline_mode<synchronous>, transform_indices = @transform_2, window_bounds = array<i64: 128, 2>}, {pipeline_mode = #tpu.pipeline_mode<synchronous>, transform_indices = @transform_3, window_bounds = array<i64: 128, 128>}, {transform_indices = @transform_4, window_bounds = array<i64: 1024, 128>}, {transform_indices = @transform_5, window_bounds = array<i64: 1024, 1>}, {transform_indices = @transform_6, window_bounds = array<i64: 1, 1024, 1>}]} {
    %c0_i32 = arith.constant 0 : i32
    %0 = arith.cmpi eq, %arg2, %c0_i32 : i32
    %1 = arith.extui %0 : i1 to i32
    %c0_i32_0 = arith.constant 0 : i32
    %2 = arith.cmpi ne, %1, %c0_i32_0 : i32
    scf.if %2 {
      %cst_21 = arith.constant 0xFF800000 : f32
      %31 = vector.broadcast %cst_21 : f32 to vector<1024x128xf32>
      %c0_22 = arith.constant 0 : index
      %c0_23 = arith.constant 0 : index
      %32 = vector.load %arg10[%c0_22, %c0_23] : memref<1024x128xf32, #tpu.memory_space<vmem>>, vector<1024x128xf32>
      tpu.vector_store %arg10[%c0_22, %c0_23], %31 {strides = array<i32>} : memref<1024x128xf32, #tpu.memory_space<vmem>>, vector<1024x128xf32>,
    } else {
    }
    %c0 = arith.constant 0 : index
    %c0_1 = arith.constant 0 : index
    %c0_2 = arith.constant 0 : index
    %3 = vector.load %arg3[%c0, %c0_1, %c0_2] : memref<1x16x128xf32, #tpu.memory_space<vmem>>, vector<1x16x128xf32>
    %4 = vector.shape_cast %3 : vector<1x16x128xf32> to vector<16x128xf32>
    %5 = arith.truncf %4 : vector<16x128xf32> to vector<16x128xbf16>
    %c0_3 = arith.constant 0 : index
    %c0_4 = arith.constant 0 : index
    %6 = vector.load %arg5[%c0_3, %c0_4] : memref<128x2xf32, #tpu.memory_space<vmem>>, vector<128x2xf32>
    %7 = vector.extract_strided_slice %6 {offsets = [0, 0], sizes = [128, 1], strides = [1, 1]} : vector<128x2xf32> to vector<128x1xf32>
    %8 = vector.extract_strided_slice %6 {offsets = [0, 1], sizes = [128, 1], strides = [1, 1]} : vector<128x2xf32> to vector<128x1xf32>
    %c0_5 = arith.constant 0 : index
    %c0_6 = arith.constant 0 : index
    %9 = vector.load %arg4[%c0_5, %c0_6] : memref<128x16xbf16, #tpu.memory_space<vmem>>, vector<128x16xbf16>
    %cst = arith.constant dense<0.000000e+00> : vector<128x128xf32>
    %10 = tpu.matmul %9, %5, %cst {dimension_numbers = #tpu.dot_dimension_numbers<[1], [0], [0], [1], [0, 0, 1, 1], [], []>} : vector<128x16xbf16>, vector<16x128xbf16>, vector<128x128xf32> -> vector<128x128xf32>
    %11 = vector.broadcast %7 : vector<128x1xf32> to vector<128x128xf32>
    %12 = arith.addf %10, %11 : vector<128x128xf32>
    %cst_7 = arith.constant 0.000000e+00 : f32
    %13 = vector.broadcast %cst_7 : f32 to vector<128x128xf32>
    %14 = arith.maximumf %12, %13 : vector<128x128xf32>
    %c0_8 = arith.constant 0 : index
    %c0_9 = arith.constant 0 : index
    %15 = vector.load %arg6[%c0_8, %c0_9] : memref<128x128xbf16, #tpu.memory_space<vmem>>, vector<128x128xbf16>
    %16 = arith.truncf %14 : vector<128x128xf32> to vector<128x128xbf16>
    %cst_10 = arith.constant dense<0.000000e+00> : vector<128x128xf32>
    %17 = tpu.matmul %15, %16, %cst_10 {dimension_numbers = #tpu.dot_dimension_numbers<[1], [0], [0], [1], [0, 0, 1, 1], [], []>} : vector<128x128xbf16>, vector<128x128xbf16>, vector<128x128xf32> -> vector<128x128xf32>
    %18 = vector.broadcast %8 : vector<128x1xf32> to vector<128x128xf32>
    %19 = arith.addf %17, %18 : vector<128x128xf32>
    %cst_11 = arith.constant 0.000000e+00 : f32
    %20 = vector.broadcast %cst_11 : f32 to vector<128x128xf32>
    %21 = arith.maximumf %19, %20 : vector<128x128xf32>
    %c0_12 = arith.constant 0 : index
    %c0_13 = arith.constant 0 : index
    %22 = vector.load %arg7[%c0_12, %c0_13] : memref<1024x128xbf16, #tpu.memory_space<vmem>>, vector<1024x128xbf16>
    %23 = arith.truncf %21 : vector<128x128xf32> to vector<128x128xbf16>
    %cst_14 = arith.constant dense<0.000000e+00> : vector<1024x128xf32>
    %24 = tpu.matmul %22, %23, %cst_14 {dimension_numbers = #tpu.dot_dimension_numbers<[1], [0], [0], [1], [0, 0, 1, 1], [], []>} : vector<1024x128xbf16>, vector<128x128xbf16>, vector<1024x128xf32> -> vector<1024x128xf32>
    %c0_15 = arith.constant 0 : index
    %c0_16 = arith.constant 0 : index
    %25 = vector.load %arg10[%c0_15, %c0_16] : memref<1024x128xf32, #tpu.memory_space<vmem>>, vector<1024x128xf32>
    %26 = arith.maximumf %25, %24 : vector<1024x128xf32>
    %c0_17 = arith.constant 0 : index
    %c0_18 = arith.constant 0 : index
    %27 = vector.load %arg10[%c0_17, %c0_18] : memref<1024x128xf32, #tpu.memory_space<vmem>>, vector<1024x128xf32>
    tpu.vector_store %arg10[%c0_17, %c0_18], %26 {strides = array<i32>} : memref<1024x128xf32, #tpu.memory_space<vmem>>, vector<1024x128xf32>,
    %c0_i32_19 = arith.constant 0 : i32
    %28 = arith.cmpi eq, %arg2, %c0_i32_19 : i32
    %29 = arith.extui %28 : i1 to i32
    %c0_i32_20 = arith.constant 0 : i32
    %30 = arith.cmpi ne, %29, %c0_i32_20 : i32
    scf.if %30 {
      %c0_21 = arith.constant 0 : index
      %c0_22 = arith.constant 0 : index
      %31 = vector.load %arg10[%c0_21, %c0_22] : memref<1024x128xf32, #tpu.memory_space<vmem>>, vector<1024x128xf32>
      %cst_23 = arith.constant dense<0xFF800000> : vector<1024xf32>
      %32 = vector.multi_reduction <maximumf>, %31, %cst_23 [1] : vector<1024x128xf32> to vector<1024xf32>
      %33 = vector.shape_cast %32 : vector<1024xf32> to vector<1024x1xf32>
      %c0_24 = arith.constant 0 : index
      %c0_25 = arith.constant 0 : index
      %34 = vector.load %arg8[%c0_24, %c0_25] : memref<1024x1xf32, #tpu.memory_space<vmem>>, vector<1024x1xf32>
      %35 = arith.addf %33, %34 : vector<1024x1xf32>
      %cst_26 = arith.constant 0.000000e+00 : f32
      %36 = vector.broadcast %cst_26 : f32 to vector<1024x1xf32>
      %37 = arith.maximumf %35, %36 : vector<1024x1xf32>
      %c0_27 = arith.constant 0 : index
      %c0_28 = arith.constant 0 : index
      %c0_29 = arith.constant 0 : index
      %38 = vector.load %arg9[%c0_27, %c0_28, %c0_29] : memref<1x1024x1xf32, #tpu.memory_space<vmem>>, vector<1x1024x1xf32>
      %39 = vector.shape_cast %38 : vector<1x1024x1xf32> to vector<1024x1xf32>
      %40 = vector.shape_cast %37 : vector<1024x1xf32> to vector<1x1024x1xf32>
      tpu.vector_store %arg9[%c0_27, %c0_28, %c0_29], %40 {strides = array<i32>} : memref<1x1024x1xf32, #tpu.memory_space<vmem>>, vector<1x1024x1xf32>,
    } else {
    }
    return
  }
  func.func @transform_0(%arg0: i32, %arg1: i32, %arg2: i32) -> (i32, i32, i32) {
    %c0_i32 = arith.constant 0 : i32
    %c0_i32_0 = arith.constant 0 : i32
    return %arg0, %c0_i32, %arg2 : i32, i32, i32
  }
  func.func @transform_1(%arg0: i32, %arg1: i32, %arg2: i32) -> (i32, i32) {
    %c0_i32 = arith.constant 0 : i32
    %c0_i32_0 = arith.constant 0 : i32
    %c0_i32_1 = arith.constant 0 : i32
    return %c0_i32, %c0_i32_0 : i32, i32
  }
  func.func @transform_2(%arg0: i32, %arg1: i32, %arg2: i32) -> (i32, i32) {
    %c0_i32 = arith.constant 0 : i32
    %c0_i32_0 = arith.constant 0 : i32
    %c0_i32_1 = arith.constant 0 : i32
    return %c0_i32, %c0_i32_0 : i32, i32
  }
  func.func @transform_3(%arg0: i32, %arg1: i32, %arg2: i32) -> (i32, i32) {
    %c0_i32 = arith.constant 0 : i32
    %c0_i32_0 = arith.constant 0 : i32
    %c0_i32_1 = arith.constant 0 : i32
    return %c0_i32, %c0_i32_0 : i32, i32
  }
  func.func @transform_4(%arg0: i32, %arg1: i32, %arg2: i32) -> (i32, i32) {
    %c0_i32 = arith.constant 0 : i32
    %c0_i32_0 = arith.constant 0 : i32
    return %arg1, %c0_i32 : i32, i32
  }
  func.func @transform_5(%arg0: i32, %arg1: i32, %arg2: i32) -> (i32, i32) {
    %c0_i32 = arith.constant 0 : i32
    %c0_i32_0 = arith.constant 0 : i32
    return %arg1, %c0_i32 : i32, i32
  }
  func.func @transform_6(%arg0: i32, %arg1: i32, %arg2: i32) -> (i32, i32, i32) {
    %c0_i32 = arith.constant 0 : i32
    %c0_i32_0 = arith.constant 0 : i32
    return %arg0, %arg1, %c0_i32 : i32, i32, i32
  }
}

</mosaic_0001>

<llo_original>
// kernel: tpu_custom_call.1
$region0: #{tpu_custom_call.1}
  #allocation0 [shape = 'u32[]', space=smem, size = 0x4, offset = 0x4, fixed_abs, tag = 'smem constant byte address 0x4 - core index']
  #allocation1 [shape = 'u32[144,128]{1,0:T(1,128)}', space=vmem, size = 0x12000, scoped, tag = 'internal scratch']
  #allocation2 [shape = 'f32[1024,128]{1,0:T(8,128)}', space=vmem, size = 0x80000, scoped, tag = 'scratch operand']
  %s0 = inlined_call_operand.vmem [shape: f32[2,16,128], index: 0, kind: input, shape index: {}]
  %s1 = inlined_call_operand.vmem [shape: bf16[128,16], index: 1, kind: input, shape index: {}]
  %s2 = inlined_call_operand.vmem [shape: f32[128,2], index: 2, kind: input, shape index: {}]
  %s3 = inlined_call_operand.vmem [shape: bf16[128,128], index: 3, kind: input, shape index: {}]
  %s4 = inlined_call_operand.vmem [shape: bf16[1024,128], index: 4, kind: input, shape index: {}]
  %s5 = inlined_call_operand.vmem [shape: f32[1024,1], index: 5, kind: input, shape index: {}]
  %s6 = inlined_call_operand.vmem [shape: f32[2,1024,1], index: 6, kind: output, shape index: {}]
  %s7 = sld [smem:[#allocation0]]
  $region65: #{tpu_custom_call.1} parent=0
    _
  %s9 = ssub.s32 1, %s7
  %s10 = scalar_select 0, %s9, %s7
  loop: start=0, step=1, limit=4
  $region2: #{tpu_custom_call.1} parent=0 // loop_pre_header
    _
  $region3: #{tpu_custom_call.1} parent=0 // loop_header
    %s12 = sphi 0, %s16
    %p13 = scmp.ge.s32.totalorder %s12, 4
    %s19 = sphi 0, %s38
    %s20 = sphi 0, %s34
    %s21 = sphi 0, %s30
    %s22 = sphi 0, %s19
    %s23 = sphi 0, %s20
    %s24 = sphi 0, %s21
    %s25 = sphi 0, %s22
    %s26 = sphi 0, %s23
    %s27 = sphi 0, %s24
    %s43 = sphi 0, %s45
    %s46 = sphi 0, %s43
    %s47 = sphi 0, %s46
    %s63 = sphi 0, %s47
    %s67 = sphi 0, %s67
    %s69 = sphi 0, %s67
    %s70 = sphi 0, %s69
    %s84 = sphi 0, %s70
    %s88 = sphi 0, %s88
    %s90 = sphi 0, %s88
    %s91 = sphi 0, %s90
    %s105 = sphi 0, %s91
    %s109 = sphi 0, %s109
    %s111 = sphi 0, %s109
    %s112 = sphi 0, %s111
    %s126 = sphi 0, %s112
    %s132 = sphi 0, %s134
    %s135 = sphi 0, %s132
    %s136 = sphi 0, %s135
    %s152 = sphi 0, %s136
    %s158 = sphi 0, %s160
    %s161 = sphi 0, %s158
    %s162 = sphi 0, %s161
    %s178 = sphi 0, %s162
    %s186 = sphi 0, %s188
    %s189 = sphi 0, %s186
    %s190 = sphi 0, %s189
    %s206 = sphi 0, %s190
  $region4: #{tpu_custom_call.1} parent=0 // loop_header_branch
    %15 = sbr.rel (%p13) target = $region8
  $region5: #{tpu_custom_call.1} parent=0 // loop_body
    %s17 = ssub.s32 %s12, 1
    %s18 = ssub.s32 %s12, 2
    %s28 = sadd.s32 1, %s21
    %p29 = scmp.ge.s32.totalorder %s28, 1
    %s30 = scalar_select %p29, 0, %s28
    %s31 = sadd.s32 1, %s20
    %s32 = scalar_select %p29, %s31, %s20
    %p33 = scmp.ge.s32.totalorder %s32, 1
    %s34 = scalar_select %p33, 0, %s32
    %s35 = sadd.s32 1, %s19
    %s36 = scalar_select %p33, %s35, %s19
    %p37 = scmp.ge.s32.totalorder %s36, 2
    %s38 = scalar_select %p37, 0, %s36
    %s39 = ssub.s32 %s19, %s38
    %s40 = ssub.s32 %s21, %s30
    %s41 = sor.u32 %s39, %s40
    %p42 = scmp.eq.s32.totalorder %s41, 0
    %s44 = sadd.s32 %s43, 1
    %s45 = scalar_select %p42, %s43, %s44
    %p48 = pneg %p42
    %p49 = scmp.eq.s32.totalorder %s12, 1
    %p50 = por %p48, %p49
    %p51 = scmp.ne.s32.totalorder %s43, %s46
    %p52 = scmp.eq.s32.totalorder %s12, 0
    %p53 = por %p51, %p52
    %p54 = scmp.ne.s32.totalorder %s43, %s46
    %p55 = scmp.eq.s32.totalorder %s17, 1
    %p56 = por %p54, %p55
    %p57 = scmp.ne.s32.totalorder %s46, %s47
    %p58 = scmp.eq.s32.totalorder %s17, 0
    %p59 = por %p57, %p58
    %p60 = scmp.ne.s32.totalorder %s46, %s47
    %p61 = scmp.eq.s32.totalorder %s18, 1
    %p62 = por %p60, %p61
    %p64 = scmp.ne.s32.totalorder %s47, %s63
    %p65 = scmp.eq.s32.totalorder %s18, 0
    %p66 = por %p64, %p65
    %s68 = sadd.s32 %s67, 1
    %p71 = scmp.eq.s32.totalorder %s12, 1
    %p72 = scmp.ne.s32.totalorder %s67, %s69
    %p73 = scmp.eq.s32.totalorder %s12, 0
    %p74 = por %p72, %p73
    %p75 = scmp.ne.s32.totalorder %s67, %s69
    %p76 = scmp.eq.s32.totalorder %s17, 1
    %p77 = por %p75, %p76
    %p78 = scmp.ne.s32.totalorder %s69, %s70
    %p79 = scmp.eq.s32.totalorder %s17, 0
    %p80 = por %p78, %p79
    %p81 = scmp.ne.s32.totalorder %s69, %s70
    %p82 = scmp.eq.s32.totalorder %s18, 1
    %p83 = por %p81, %p82
    %p85 = scmp.ne.s32.totalorder %s70, %s84
    %p86 = scmp.eq.s32.totalorder %s18, 0
    %p87 = por %p85, %p86
    %s89 = sadd.s32 %s88, 1
    %p92 = scmp.eq.s32.totalorder %s12, 1
    %p93 = scmp.ne.s32.totalorder %s88, %s90
    %p94 = scmp.eq.s32.totalorder %s12, 0
    %p95 = por %p93, %p94
    %p96 = scmp.ne.s32.totalorder %s88, %s90
    %p97 = scmp.eq.s32.totalorder %s17, 1
    %p98 = por %p96, %p97
    %p99 = scmp.ne.s32.totalorder %s90, %s91
    %p100 = scmp.eq.s32.totalorder %s17, 0
    %p101 = por %p99, %p100
    %p102 = scmp.ne.s32.totalorder %s90, %s91
    %p103 = scmp.eq.s32.totalorder %s18, 1
    %p104 = por %p102, %p103
    %p106 = scmp.ne.s32.totalorder %s91, %s105
    %p107 = scmp.eq.s32.totalorder %s18, 0
    %p108 = por %p106, %p107
    %s110 = sadd.s32 %s109, 1
    %p113 = scmp.eq.s32.totalorder %s12, 1
    %p114 = scmp.ne.s32.totalorder %s109, %s111
    %p115 = scmp.eq.s32.totalorder %s12, 0
    %p116 = por %p114, %p115
    %p117 = scmp.ne.s32.totalorder %s109, %s111
    %p118 = scmp.eq.s32.totalorder %s17, 1
    %p119 = por %p117, %p118
    %p120 = scmp.ne.s32.totalorder %s111, %s112
    %p121 = scmp.eq.s32.totalorder %s17, 0
    %p122 = por %p120, %p121
    %p123 = scmp.ne.s32.totalorder %s111, %s112
    %p124 = scmp.eq.s32.totalorder %s18, 1
    %p125 = por %p123, %p124
    %p127 = scmp.ne.s32.totalorder %s112, %s126
    %p128 = scmp.eq.s32.totalorder %s18, 0
    %p129 = por %p127, %p128
    %s130 = ssub.s32 %s20, %s34
    %p131 = scmp.eq.s32.totalorder %s130, 0
    %s133 = sadd.s32 %s132, 1
    %s134 = scalar_select %p131, %s132, %s133
    %p137 = pneg %p131
    %p138 = scmp.eq.s32.totalorder %s12, 1
    %p139 = por %p137, %p138
    %p140 = scmp.ne.s32.totalorder %s132, %s135
    %p141 = scmp.eq.s32.totalorder %s12, 0
    %p142 = por %p140, %p141
    %p143 = scmp.ne.s32.totalorder %s132, %s135
    %p144 = scmp.eq.s32.totalorder %s17, 1
    %p145 = por %p143, %p144
    %p146 = scmp.ne.s32.totalorder %s135, %s136
    %p147 = scmp.eq.s32.totalorder %s17, 0
    %p148 = por %p146, %p147
    %p149 = scmp.ne.s32.totalorder %s135, %s136
    %p150 = scmp.eq.s32.totalorder %s18, 1
    %p151 = por %p149, %p150
    %p153 = scmp.ne.s32.totalorder %s136, %s152
    %p154 = scmp.eq.s32.totalorder %s18, 0
    %p155 = por %p153, %p154
    %s156 = ssub.s32 %s20, %s34
    %p157 = scmp.eq.s32.totalorder %s156, 0
    %s159 = sadd.s32 %s158, 1
    %s160 = scalar_select %p157, %s158, %s159
    %p163 = pneg %p157
    %p164 = scmp.eq.s32.totalorder %s12, 1
    %p165 = por %p163, %p164
    %p166 = scmp.ne.s32.totalorder %s158, %s161
    %p167 = scmp.eq.s32.totalorder %s12, 0
    %p168 = por %p166, %p167
    %p169 = scmp.ne.s32.totalorder %s158, %s161
    %p170 = scmp.eq.s32.totalorder %s17, 1
    %p171 = por %p169, %p170
    %p172 = scmp.ne.s32.totalorder %s161, %s162
    %p173 = scmp.eq.s32.totalorder %s17, 0
    %p174 = por %p172, %p173
    %p175 = scmp.ne.s32.totalorder %s161, %s162
    %p176 = scmp.eq.s32.totalorder %s18, 1
    %p177 = por %p175, %p176
    %p179 = scmp.ne.s32.totalorder %s162, %s178
    %p180 = scmp.eq.s32.totalorder %s18, 0
    %p181 = por %p179, %p180
    %s182 = ssub.s32 %s19, %s38
    %s183 = ssub.s32 %s20, %s34
    %s184 = sor.u32 %s182, %s183
    %p185 = scmp.eq.s32.totalorder %s184, 0
    %s187 = sadd.s32 %s186, 1
    %s188 = scalar_select %p185, %s186, %s187
    %p191 = pneg %p185
    %p192 = scmp.eq.s32.totalorder %s12, 1
    %p193 = por %p191, %p192
    %p194 = scmp.ne.s32.totalorder %s186, %s189
    %p195 = scmp.eq.s32.totalorder %s12, 0
    %p196 = por %p194, %p195
    %p197 = scmp.ne.s32.totalorder %s186, %s189
    %p198 = scmp.eq.s32.totalorder %s17, 1
    %p199 = por %p197, %p198
    %p200 = scmp.ne.s32.totalorder %s189, %s190
    %p201 = scmp.eq.s32.totalorder %s17, 0
    %p202 = por %p200, %p201
    %p203 = scmp.ne.s32.totalorder %s189, %s190
    %p204 = scmp.eq.s32.totalorder %s18, 1
    %p205 = por %p203, %p204
    %p207 = scmp.ne.s32.totalorder %s190, %s206
    %p208 = scmp.eq.s32.totalorder %s18, 0
    %p209 = por %p207, %p208
    %p210 = scmp.le.s32.totalorder 1, %s12
    %p211 = scmp.lt.s32.totalorder %s12, 3
    %p212 = pnand %p210, %p211
    %p213 = pneg %p212
    // Predicated region
    $region9: #{tpu_custom_call.1} parent=5 // pred_check
      _
    $region10: #{tpu_custom_call.1} parent=5 // pred_check_branch
      %215 = sbr.rel (%p212) target = $region12
    $region11: #{tpu_custom_call.1} parent=5 // pred_region
      %s216 = ssub.s32 %s12, 1
      // Predicated region
      $region13: #{tpu_custom_call.1} parent=11 // pred_check
        %p217 = pneg %p80
      $region14: #{tpu_custom_call.1} parent=11 // pred_check_branch
        %219 = sbr.rel (%p217) target = $region16
      $region15: #{tpu_custom_call.1} parent=11 // pred_region
        _
      $region16: #{tpu_custom_call.1} parent=11 // pred_fallthru
        _
      // Predicated region
      $region17: #{tpu_custom_call.1} parent=11 // pred_check
        %p220 = pneg %p101
      $region18: #{tpu_custom_call.1} parent=11 // pred_check_branch
        %222 = sbr.rel (%p220) target = $region20
      $region19: #{tpu_custom_call.1} parent=11 // pred_region
        _
      $region20: #{tpu_custom_call.1} parent=11 // pred_fallthru
        _
      // Predicated region
      $region21: #{tpu_custom_call.1} parent=11 // pred_check
        %p223 = pneg %p122
      $region22: #{tpu_custom_call.1} parent=11 // pred_check_branch
        %225 = sbr.rel (%p223) target = $region24
      $region23: #{tpu_custom_call.1} parent=11 // pred_region
        _
      $region24: #{tpu_custom_call.1} parent=11 // pred_fallthru
        _
      // Predicated region
      $region25: #{tpu_custom_call.1} parent=11 // pred_check
        %p226 = pneg %p148
      $region26: #{tpu_custom_call.1} parent=11 // pred_check_branch
        %228 = sbr.rel (%p226) target = $region28
      $region27: #{tpu_custom_call.1} parent=11 // pred_region
        %s229 = smul.u32 128, %s23
        %p230 = scmp.lt.s32.totalorder %s229, 127
        %s231 = scalar_select %p230, %s229, 127
        %s232 = smul.addr %s231, 4
        %s233 = scalar_lea.vmem %s4, %s232
        %s234 = smul.u32 128, %s23
      $region28: #{tpu_custom_call.1} parent=11 // pred_fallthru
        _
      // Predicated region
      $region29: #{tpu_custom_call.1} parent=11 // pred_check
        %p235 = pneg %p174
      $region30: #{tpu_custom_call.1} parent=11 // pred_check_branch
        %237 = sbr.rel (%p235) target = $region32
      $region31: #{tpu_custom_call.1} parent=11 // pred_region
        %s238 = smul.u32 128, %s23
        %p239 = scmp.lt.s32.totalorder %s238, 127
        %s240 = scalar_select %p239, %s238, 127
        %s241 = smul.addr %s240, 8
        %s242 = scalar_lea.vmem %s5, %s241
        %s243 = smul.u32 128, %s23
      $region32: #{tpu_custom_call.1} parent=11 // pred_fallthru
        _
    $region12: #{tpu_custom_call.1} parent=5 // pred_fallthru
      _
    %p244 = scmp.lt.s32.totalorder %s12, 2
    // Predicated region
    $region33: #{tpu_custom_call.1} parent=5 // pred_check
      %p245 = pneg %p244
    $region34: #{tpu_custom_call.1} parent=5 // pred_check_branch
      %247 = sbr.rel (%p245) target = $region36
    $region35: #{tpu_custom_call.1} parent=5 // pred_region
      // Predicated region
      $region37: #{tpu_custom_call.1} parent=35 // pred_check
        %p248 = pneg %p53
      $region38: #{tpu_custom_call.1} parent=35 // pred_check_branch
        %250 = sbr.rel (%p248) target = $region40
      $region39: #{tpu_custom_call.1} parent=35 // pred_region
        %p251 = scmp.lt.s32.totalorder %s19, 1
        %s252 = scalar_select %p251, %s19, 1
        %p253 = scmp.lt.s32.totalorder %s21, 0
        %s254 = scalar_select %p253, %s21, 0
        %s255 = smul.addr %s252, 2
        %s256 = sadd.s32 %s254, %s255
        %s257 = smul.addr %s256, 8
        %s258 = scalar_lea.vmem %s0, %s257
      $region40: #{tpu_custom_call.1} parent=35 // pred_fallthru
        _
    $region36: #{tpu_custom_call.1} parent=5 // pred_fallthru
      _
    %p259 = scmp.le.s32.totalorder 1, %s12
    %p260 = scmp.lt.s32.totalorder %s12, 3
    %p261 = pnand %p259, %p260
    %p262 = pneg %p261
    // Predicated region
    $region41: #{tpu_custom_call.1} parent=5 // pred_check
      _
    $region42: #{tpu_custom_call.1} parent=5 // pred_check_branch
      %264 = sbr.rel (%p261) target = $region44
    $region43: #{tpu_custom_call.1} parent=5 // pred_region
      %s265 = ssub.s32 %s12, 1
      %p266 = scmp.lt.s32.totalorder %s22, 1
      %s267 = scalar_select %p266, %s22, 1
      %p268 = scmp.lt.s32.totalorder %s24, 0
      %s269 = scalar_select %p268, %s24, 0
      %s270 = smul.addr %s267, 2
      %s271 = sadd.s32 %s269, %s270
      %s272 = smul.addr %s271, 8
      %s273 = scalar_lea.vmem %s0, %s272
      %p274 = pneg %p59
      %p275 = pneg %p56
      %p276 = pneg %p80
      %p277 = pneg %p77
      %p278 = pneg %p101
      %p279 = pneg %p98
      %p280 = pneg %p122
      %p281 = pneg %p119
      %s282 = smul.u32 128, %s23
      %p283 = scmp.lt.s32.totalorder %s282, 127
      %s284 = scalar_select %p283, %s282, 127
      %s285 = smul.addr %s284, 4
      %s286 = scalar_lea.vmem %s4, %s285
      %p287 = pneg %p148
      %p288 = pneg %p145
      %s289 = smul.u32 128, %s23
      %p290 = scmp.lt.s32.totalorder %s289, 127
      %s291 = scalar_select %p290, %s289, 127
      %s292 = smul.addr %s291, 8
      %s293 = scalar_lea.vmem %s5, %s292
      %p294 = pneg %p174
      %p295 = pneg %p171
      %p296 = pneg %p202
      %p297 = pneg %p199
      %s298 = smul.u32 128, %s23
      %p299 = scmp.lt.s32.totalorder %s22, 1
      %s300 = scalar_select %p299, %s22, 1
      %p301 = scmp.lt.s32.totalorder %s298, 127
      %s302 = scalar_select %p301, %s298, 127
      %s303 = smul.addr %s300, 128
      %s304 = sadd.s32 %s302, %s303
      %s305 = smul.addr %s304, 8
      %s306 = scalar_lea.vmem %s6, %s305
      %p307 = scmp.lt.s32.totalorder %s22, 1
      %s308 = scalar_select %p307, %s22, 1
      %p309 = scmp.lt.s32.totalorder %s24, 0
      %s310 = scalar_select %p309, %s24, 0
      %s311 = smul.addr %s308, 2
      %s312 = sadd.s32 %s310, %s311
      %s313 = smul.addr %s312, 8
      %s314 = scalar_lea.vmem %s0, %s313
      %s315 = smul.u32 128, %s23
      %p316 = scmp.lt.s32.totalorder %s315, 127
      %s317 = scalar_select %p316, %s315, 127
      %s318 = smul.addr %s317, 4
      %s319 = scalar_lea.vmem %s4, %s318
      %s320 = smul.u32 128, %s23
      %s321 = smul.u32 128, %s23
      %p322 = scmp.lt.s32.totalorder %s321, 127
      %s323 = scalar_select %p322, %s321, 127
      %s324 = smul.addr %s323, 8
      %s325 = scalar_lea.vmem %s5, %s324
      %s326 = smul.u32 128, %s23
      %s327 = smul.u32 128, %s23
      %p328 = scmp.lt.s32.totalorder %s22, 1
      %s329 = scalar_select %p328, %s22, 1
      %p330 = scmp.lt.s32.totalorder %s327, 127
      %s331 = scalar_select %p330, %s327, 127
      %s332 = smul.addr %s329, 128
      %s333 = sadd.s32 %s331, %s332
      %s334 = smul.addr %s333, 8
      %s335 = scalar_lea.vmem %s6, %s334
      %s336 = smul.u32 128, %s23
      %p338 = scmp.eq.s32.totalorder %s24, 0
      // Predicated region
      $region45: #{tpu_custom_call.1} parent=43 // pred_check
        %p339 = pneg %p338
      $region46: #{tpu_custom_call.1} parent=43 // pred_check_branch
        %341 = sbr.rel (%p339) target = $region48
      $region47: #{tpu_custom_call.1} parent=43 // pred_region
        %342 = vst [vmem:[#allocation2] sm:$0xff] -inf
        %343 = vst [vmem:[#allocation2 + $0x8] sm:$0xff] -inf
        %344 = vst [vmem:[#allocation2 + $0x10] sm:$0xff] -inf
        %345 = vst [vmem:[#allocation2 + $0x18] sm:$0xff] -inf
        %346 = vst [vmem:[#allocation2 + $0x20] sm:$0xff] -inf
        %347 = vst [vmem:[#allocation2 + $0x28] sm:$0xff] -inf
        %348 = vst [vmem:[#allocation2 + $0x30] sm:$0xff] -inf
        %349 = vst [vmem:[#allocation2 + $0x38] sm:$0xff] -inf
        %350 = vst [vmem:[#allocation2 + $0x40] sm:$0xff] -inf
        %351 = vst [vmem:[#allocation2 + $0x48] sm:$0xff] -inf
        %352 = vst [vmem:[#allocation2 + $0x50] sm:$0xff] -inf
        %353 = vst [vmem:[#allocation2 + $0x58] sm:$0xff] -inf
        %354 = vst [vmem:[#allocation2 + $0x60] sm:$0xff] -inf
        %355 = vst [vmem:[#allocation2 + $0x68] sm:$0xff] -inf
        %356 = vst [vmem:[#allocation2 + $0x70] sm:$0xff] -inf
        %357 = vst [vmem:[#allocation2 + $0x78] sm:$0xff] -inf
        %358 = vst [vmem:[#allocation2 + $0x80] sm:$0xff] -inf
        %359 = vst [vmem:[#allocation2 + $0x88] sm:$0xff] -inf
        %360 = vst [vmem:[#allocation2 + $0x90] sm:$0xff] -inf
        %361 = vst [vmem:[#allocation2 + $0x98] sm:$0xff] -inf
        %362 = vst [vmem:[#allocation2 + $0xa0] sm:$0xff] -inf
        %363 = vst [vmem:[#allocation2 + $0xa8] sm:$0xff] -inf
        %364 = vst [vmem:[#allocation2 + $0xb0] sm:$0xff] -inf
        %365 = vst [vmem:[#allocation2 + $0xb8] sm:$0xff] -inf
        %366 = vst [vmem:[#allocation2 + $0xc0] sm:$0xff] -inf
        %367 = vst [vmem:[#allocation2 + $0xc8] sm:$0xff] -inf
        %368 = vst [vmem:[#allocation2 + $0xd0] sm:$0xff] -inf
        %369 = vst [vmem:[#allocation2 + $0xd8] sm:$0xff] -inf
        %370 = vst [vmem:[#allocation2 + $0xe0] sm:$0xff] -inf
        %371 = vst [vmem:[#allocation2 + $0xe8] sm:$0xff] -inf
        %372 = vst [vmem:[#allocation2 + $0xf0] sm:$0xff] -inf
        %373 = vst [vmem:[#allocation2 + $0xf8] sm:$0xff] -inf
        %374 = vst [vmem:[#allocation2 + $0x100] sm:$0xff] -inf
        %375 = vst [vmem:[#allocation2 + $0x108] sm:$0xff] -inf
        %376 = vst [vmem:[#allocation2 + $0x110] sm:$0xff] -inf
        %377 = vst [vmem:[#allocation2 + $0x118] sm:$0xff] -inf
        %378 = vst [vmem:[#allocation2 + $0x120] sm:$0xff] -inf
        %379 = vst [vmem:[#allocation2 + $0x128] sm:$0xff] -inf
        %380 = vst [vmem:[#allocation2 + $0x130] sm:$0xff] -inf
        %381 = vst [vmem:[#allocation2 + $0x138] sm:$0xff] -inf
        %382 = vst [vmem:[#allocation2 + $0x140] sm:$0xff] -inf
        %383 = vst [vmem:[#allocation2 + $0x148] sm:$0xff] -inf
        %384 = vst [vmem:[#allocation2 + $0x150] sm:$0xff] -inf
        %385 = vst [vmem:[#allocation2 + $0x158] sm:$0xff] -inf
        %386 = vst [vmem:[#allocation2 + $0x160] sm:$0xff] -inf
        %387 = vst [vmem:[#allocation2 + $0x168] sm:$0xff] -inf
        %388 = vst [vmem:[#allocation2 + $0x170] sm:$0xff] -inf
        %389 = vst [vmem:[#allocation2 + $0x178] sm:$0xff] -inf
        %390 = vst [vmem:[#allocation2 + $0x180] sm:$0xff] -inf
        %391 = vst [vmem:[#allocation2 + $0x188] sm:$0xff] -inf
        %392 = vst [vmem:[#allocation2 + $0x190] sm:$0xff] -inf
        %393 = vst [vmem:[#allocation2 + $0x198] sm:$0xff] -inf
        %394 = vst [vmem:[#allocation2 + $0x1a0] sm:$0xff] -inf
        %395 = vst [vmem:[#allocation2 + $0x1a8] sm:$0xff] -inf
        %396 = vst [vmem:[#allocation2 + $0x1b0] sm:$0xff] -inf
        %397 = vst [vmem:[#allocation2 + $0x1b8] sm:$0xff] -inf
        %398 = vst [vmem:[#allocation2 + $0x1c0] sm:$0xff] -inf
        %399 = vst [vmem:[#allocation2 + $0x1c8] sm:$0xff] -inf
        %400 = vst [vmem:[#allocation2 + $0x1d0] sm:$0xff] -inf
        %401 = vst [vmem:[#allocation2 + $0x1d8] sm:$0xff] -inf
        %402 = vst [vmem:[#allocation2 + $0x1e0] sm:$0xff] -inf
        %403 = vst [vmem:[#allocation2 + $0x1e8] sm:$0xff] -inf
        %404 = vst [vmem:[#allocation2 + $0x1f0] sm:$0xff] -inf
        %405 = vst [vmem:[#allocation2 + $0x1f8] sm:$0xff] -inf
        %406 = vst [vmem:[#allocation2 + $0x200] sm:$0xff] -inf
        %407 = vst [vmem:[#allocation2 + $0x208] sm:$0xff] -inf
        %408 = vst [vmem:[#allocation2 + $0x210] sm:$0xff] -inf
        %409 = vst [vmem:[#allocation2 + $0x218] sm:$0xff] -inf
        %410 = vst [vmem:[#allocation2 + $0x220] sm:$0xff] -inf
        %411 = vst [vmem:[#allocation2 + $0x228] sm:$0xff] -inf
        %412 = vst [vmem:[#allocation2 + $0x230] sm:$0xff] -inf
        %413 = vst [vmem:[#allocation2 + $0x238] sm:$0xff] -inf
        %414 = vst [vmem:[#allocation2 + $0x240] sm:$0xff] -inf
        %415 = vst [vmem:[#allocation2 + $0x248] sm:$0xff] -inf
        %416 = vst [vmem:[#allocation2 + $0x250] sm:$0xff] -inf
        %417 = vst [vmem:[#allocation2 + $0x258] sm:$0xff] -inf
        %418 = vst [vmem:[#allocation2 + $0x260] sm:$0xff] -inf
        %419 = vst [vmem:[#allocation2 + $0x268] sm:$0xff] -inf
        %420 = vst [vmem:[#allocation2 + $0x270] sm:$0xff] -inf
        %421 = vst [vmem:[#allocation2 + $0x278] sm:$0xff] -inf
        %422 = vst [vmem:[#allocation2 + $0x280] sm:$0xff] -inf
        %423 = vst [vmem:[#allocation2 + $0x288] sm:$0xff] -inf
        %424 = vst [vmem:[#allocation2 + $0x290] sm:$0xff] -inf
        %425 = vst [vmem:[#allocation2 + $0x298] sm:$0xff] -inf
        %426 = vst [vmem:[#allocation2 + $0x2a0] sm:$0xff] -inf
        %427 = vst [vmem:[#allocation2 + $0x2a8] sm:$0xff] -inf
        %428 = vst [vmem:[#allocation2 + $0x2b0] sm:$0xff] -inf
        %429 = vst [vmem:[#allocation2 + $0x2b8] sm:$0xff] -inf
        %430 = vst [vmem:[#allocation2 + $0x2c0] sm:$0xff] -inf
        %431 = vst [vmem:[#allocation2 + $0x2c8] sm:$0xff] -inf
        %432 = vst [vmem:[#allocation2 + $0x2d0] sm:$0xff] -inf
        %433 = vst [vmem:[#allocation2 + $0x2d8] sm:$0xff] -inf
        %434 = vst [vmem:[#allocation2 + $0x2e0] sm:$0xff] -inf
        %435 = vst [vmem:[#allocation2 + $0x2e8] sm:$0xff] -inf
        %436 = vst [vmem:[#allocation2 + $0x2f0] sm:$0xff] -inf
        %437 = vst [vmem:[#allocation2 + $0x2f8] sm:$0xff] -inf
        %438 = vst [vmem:[#allocation2 + $0x300] sm:$0xff] -inf
        %439 = vst [vmem:[#allocation2 + $0x308] sm:$0xff] -inf
        %440 = vst [vmem:[#allocation2 + $0x310] sm:$0xff] -inf
        %441 = vst [vmem:[#allocation2 + $0x318] sm:$0xff] -inf
        %442 = vst [vmem:[#allocation2 + $0x320] sm:$0xff] -inf
        %443 = vst [vmem:[#allocation2 + $0x328] sm:$0xff] -inf
        %444 = vst [vmem:[#allocation2 + $0x330] sm:$0xff] -inf
        %445 = vst [vmem:[#allocation2 + $0x338] sm:$0xff] -inf
        %446 = vst [vmem:[#allocation2 + $0x340] sm:$0xff] -inf
        %447 = vst [vmem:[#allocation2 + $0x348] sm:$0xff] -inf
        %448 = vst [vmem:[#allocation2 + $0x350] sm:$0xff] -inf
        %449 = vst [vmem:[#allocation2 + $0x358] sm:$0xff] -inf
        %450 = vst [vmem:[#allocation2 + $0x360] sm:$0xff] -inf
        %451 = vst [vmem:[#allocation2 + $0x368] sm:$0xff] -inf
        %452 = vst [vmem:[#allocation2 + $0x370] sm:$0xff] -inf
        %453 = vst [vmem:[#allocation2 + $0x378] sm:$0xff] -inf
        %454 = vst [vmem:[#allocation2 + $0x380] sm:$0xff] -inf
        %455 = vst [vmem:[#allocation2 + $0x388] sm:$0xff] -inf
        %456 = vst [vmem:[#allocation2 + $0x390] sm:$0xff] -inf
        %457 = vst [vmem:[#allocation2 + $0x398] sm:$0xff] -inf
        %458 = vst [vmem:[#allocation2 + $0x3a0] sm:$0xff] -inf
        %459 = vst [vmem:[#allocation2 + $0x3a8] sm:$0xff] -inf
        %460 = vst [vmem:[#allocation2 + $0x3b0] sm:$0xff] -inf
        %461 = vst [vmem:[#allocation2 + $0x3b8] sm:$0xff] -inf
        %462 = vst [vmem:[#allocation2 + $0x3c0] sm:$0xff] -inf
        %463 = vst [vmem:[#allocation2 + $0x3c8] sm:$0xff] -inf
        %464 = vst [vmem:[#allocation2 + $0x3d0] sm:$0xff] -inf
        %465 = vst [vmem:[#allocation2 + $0x3d8] sm:$0xff] -inf
        %466 = vst [vmem:[#allocation2 + $0x3e0] sm:$0xff] -inf
        %467 = vst [vmem:[#allocation2 + $0x3e8] sm:$0xff] -inf
        %468 = vst [vmem:[#allocation2 + $0x3f0] sm:$0xff] -inf
        %469 = vst [vmem:[#allocation2 + $0x3f8] sm:$0xff] -inf
      $region48: #{tpu_custom_call.1} parent=43 // pred_fallthru
        _
      %v470 = vld [vmem:[%s314] sm:$0xff]
      %v471 = vld [vmem:[%s314 + $0x8] sm:$0xff]
      %v472 = vpack.c.bf16 %v471, %v470
      %v473 = vld [vmem:[%s2] sm:$0xff]
      %v474 = vld [vmem:[%s2 + $0x8] sm:$0xff]
      %v475 = vld [vmem:[%s2 + $0x10] sm:$0xff]
      %v476 = vld [vmem:[%s2 + $0x18] sm:$0xff]
      %v477 = vld [vmem:[%s2 + $0x20] sm:$0xff]
      %v478 = vld [vmem:[%s2 + $0x28] sm:$0xff]
      %v479 = vld [vmem:[%s2 + $0x30] sm:$0xff]
      %v480 = vld [vmem:[%s2 + $0x38] sm:$0xff]
      %v481 = vld [vmem:[%s2 + $0x40] sm:$0xff]
      %v482 = vld [vmem:[%s2 + $0x48] sm:$0xff]
      %v483 = vld [vmem:[%s2 + $0x50] sm:$0xff]
      %v484 = vld [vmem:[%s2 + $0x58] sm:$0xff]
      %v485 = vld [vmem:[%s2 + $0x60] sm:$0xff]
      %v486 = vld [vmem:[%s2 + $0x68] sm:$0xff]
      %v487 = vld [vmem:[%s2 + $0x70] sm:$0xff]
      %v488 = vld [vmem:[%s2 + $0x78] sm:$0xff]
      %v489 = vld [vmem:[%s1] sm:$0xf]
      %v490 = vld [vmem:[%s1 + $0x4] sm:$0xf]
      %v491 = vld [vmem:[%s1 + $0x8] sm:$0xf]
      %v492 = vld [vmem:[%s1 + $0xc] sm:$0xf]
      %v493 = vld [vmem:[%s1 + $0x10] sm:$0xf]
      %v494 = vld [vmem:[%s1 + $0x14] sm:$0xf]
      %v495 = vld [vmem:[%s1 + $0x18] sm:$0xf]
      %v496 = vld [vmem:[%s1 + $0x1c] sm:$0xf]
      %v497 = vld [vmem:[%s1 + $0x20] sm:$0xf]
      %v498 = vld [vmem:[%s1 + $0x24] sm:$0xf]
      %v499 = vld [vmem:[%s1 + $0x28] sm:$0xf]
      %v500 = vld [vmem:[%s1 + $0x2c] sm:$0xf]
      %v501 = vld [vmem:[%s1 + $0x30] sm:$0xf]
      %v502 = vld [vmem:[%s1 + $0x34] sm:$0xf]
      %v503 = vld [vmem:[%s1 + $0x38] sm:$0xf]
      %v504 = vld [vmem:[%s1 + $0x3c] sm:$0xf]
      %506 = vset.pattern.permute.xlu0 0
      %507 = vperm.xlu0 %506, %v473
      %v508 = vpop.permute.xlu0 %507
      %511 = vset.pattern.permute.xlu0 0
      %512 = vperm.xlu0 %511, %v474
      %v513 = vpop.permute.xlu0 %512
      %516 = vset.pattern.permute.xlu0 0
      %517 = vperm.xlu0 %516, %v475
      %v518 = vpop.permute.xlu0 %517
      %521 = vset.pattern.permute.xlu0 0
      %522 = vperm.xlu0 %521, %v476
      %v523 = vpop.permute.xlu0 %522
      %526 = vset.pattern.permute.xlu0 0
      %527 = vperm.xlu0 %526, %v477
      %v528 = vpop.permute.xlu0 %527
      %531 = vset.pattern.permute.xlu0 0
      %532 = vperm.xlu0 %531, %v478
      %v533 = vpop.permute.xlu0 %532
      %536 = vset.pattern.permute.xlu0 0
      %537 = vperm.xlu0 %536, %v479
      %v538 = vpop.permute.xlu0 %537
      %541 = vset.pattern.permute.xlu0 0
      %542 = vperm.xlu0 %541, %v480
      %v543 = vpop.permute.xlu0 %542
      %546 = vset.pattern.permute.xlu0 0
      %547 = vperm.xlu0 %546, %v481
      %v548 = vpop.permute.xlu0 %547
      %551 = vset.pattern.permute.xlu0 0
      %552 = vperm.xlu0 %551, %v482
      %v553 = vpop.permute.xlu0 %552
      %556 = vset.pattern.permute.xlu0 0
      %557 = vperm.xlu0 %556, %v483
      %v558 = vpop.permute.xlu0 %557
      %561 = vset.pattern.permute.xlu0 0
      %562 = vperm.xlu0 %561, %v484
      %v563 = vpop.permute.xlu0 %562
      %566 = vset.pattern.permute.xlu0 0
      %567 = vperm.xlu0 %566, %v485
      %v568 = vpop.permute.xlu0 %567
      %571 = vset.pattern.permute.xlu0 0
      %572 = vperm.xlu0 %571, %v486
      %v573 = vpop.permute.xlu0 %572
      %576 = vset.pattern.permute.xlu0 0
      %577 = vperm.xlu0 %576, %v487
      %v578 = vpop.permute.xlu0 %577
      %581 = vset.pattern.permute.xlu0 0
      %582 = vperm.xlu0 %581, %v488
      %v583 = vpop.permute.xlu0 %582
      %v601 = vunpack.c.l.b16 %v489
      %v602 = vunpack.c.l.b16 %v490
      %v603 = vunpack.c.l.b16 %v491
      %v604 = vunpack.c.l.b16 %v492
      %v605 = vunpack.c.l.b16 %v493
      %v606 = vunpack.c.l.b16 %v494
      %v607 = vunpack.c.l.b16 %v495
      %v608 = vunpack.c.l.b16 %v496
      %v609 = vunpack.c.l.b16 %v497
      %v610 = vunpack.c.l.b16 %v498
      %v611 = vunpack.c.l.b16 %v499
      %v612 = vunpack.c.l.b16 %v500
      %v613 = vunpack.c.l.b16 %v501
      %v614 = vunpack.c.l.b16 %v502
      %v615 = vunpack.c.l.b16 %v503
      %v616 = vunpack.c.l.b16 %v504
      %v617 = vpack.c.b16 %v602, %v601
      %v618 = vpack.c.b16 %v604, %v603
      %v619 = vpack.c.b16 %v606, %v605
      %v620 = vpack.c.b16 %v608, %v607
      %v621 = vpack.c.b16 %v610, %v609
      %v622 = vpack.c.b16 %v612, %v611
      %v623 = vpack.c.b16 %v614, %v613
      %v624 = vpack.c.b16 %v616, %v615
      %vm625 = vcmask 130048
      %v627 = vsel %vm625, %v617, 0
      %v630 = vsel %vm625, %v618, 0
      %v633 = vsel %vm625, %v619, 0
      %v636 = vsel %vm625, %v620, 0
      %v639 = vsel %vm625, %v621, 0
      %v642 = vsel %vm625, %v622, 0
      %v645 = vsel %vm625, %v623, 0
      %v648 = vsel %vm625, %v624, 0
      %650 = vmatprep.subr.bf16.mxu0 0
      %651 = vmatpush1.bf16.msra.mxu0 %v472
      %652 = vmatprep.subr.bf16.mxu0 0
      %653 = vmatpush1.bf16.msra.mxu0 0
      %654 = vmatprep.subr.bf16.mxu0 0
      %655 = vmatpush1.bf16.msra.mxu0 0
      %656 = vmatprep.subr.bf16.mxu0 0
      %657 = vmatpush1.bf16.msra.mxu0 0
      %658 = vmatprep.subr.bf16.mxu0 0
      %659 = vmatpush1.bf16.msra.mxu0 0
      %660 = vmatprep.subr.bf16.mxu0 0
      %661 = vmatpush1.bf16.msra.mxu0 0
      %662 = vmatprep.subr.bf16.mxu0 0
      %663 = vmatpush1.bf16.msra.mxu0 0
      %664 = vmatprep.subr.bf16.mxu0 0
      %665 = vmatpush1.bf16.msra.mxu0 0
      %666 = vmatprep.subr.bf16.mxu0 0
      %667 = vmatpush1.bf16.msra.mxu0 0
      %668 = vmatprep.subr.bf16.mxu0 0
      %669 = vmatpush1.bf16.msra.mxu0 0
      %670 = vmatprep.subr.bf16.mxu0 0
      %671 = vmatpush1.bf16.msra.mxu0 0
      %672 = vmatprep.subr.bf16.mxu0 0
      %673 = vmatpush1.bf16.msra.mxu0 0
      %674 = vmatprep.subr.bf16.mxu0 0
      %675 = vmatpush1.bf16.msra.mxu0 0
      %676 = vmatprep.subr.bf16.mxu0 0
      %677 = vmatpush1.bf16.msra.mxu0 0
      %678 = vmatprep.subr.bf16.mxu0 0
      %679 = vmatpush1.bf16.msra.mxu0 0
      %680 = vmatprep.subr.bf16.mxu0 0
      %681 = vmatpush1.bf16.msra.mxu0 0
      %682 = vmatprep.mubr.bf16.mxu0 0
      %683 = vmatmul.mubr.bf16.gmra.mrb[0].mxu0 %v627
      %v684 = vpop.f32.mrb[0].mxu0
      %v685 = vadd.f32 %v508, %v684
      %v686 = vpop.f32.mrb[0].mxu0
      %v687 = vpop.f32.mrb[0].mxu0
      %v688 = vadd.f32 %v513, %v687
      %v689 = vpop.f32.mrb[0].mxu0
      %690 = vmatprep.mubr.bf16.mxu0 0
      %691 = vmatmul.mubr.bf16.gmra.mrb[0].mxu0 %v630
      %v692 = vpop.f32.mrb[0].mxu0
      %v693 = vadd.f32 %v518, %v692
      %v694 = vpop.f32.mrb[0].mxu0
      %v695 = vpop.f32.mrb[0].mxu0
      %v696 = vadd.f32 %v523, %v695
      %v697 = vpop.f32.mrb[0].mxu0
      %698 = vmatprep.mubr.bf16.mxu0 0
      %699 = vmatmul.mubr.bf16.gmra.mrb[0].mxu0 %v633
      %v700 = vpop.f32.mrb[0].mxu0
      %v701 = vadd.f32 %v528, %v700
      %v702 = vpop.f32.mrb[0].mxu0
      %v703 = vpop.f32.mrb[0].mxu0
      %v704 = vadd.f32 %v533, %v703
      %v705 = vpop.f32.mrb[0].mxu0
      %706 = vmatprep.mubr.bf16.mxu0 0
      %707 = vmatmul.mubr.bf16.gmra.mrb[0].mxu0 %v636
      %v708 = vpop.f32.mrb[0].mxu0
      %v709 = vadd.f32 %v538, %v708
      %v710 = vpop.f32.mrb[0].mxu0
      %v711 = vpop.f32.mrb[0].mxu0
      %v712 = vadd.f32 %v543, %v711
      %v713 = vpop.f32.mrb[0].mxu0
      %714 = vmatprep.mubr.bf16.mxu0 0
      %715 = vmatmul.mubr.bf16.gmra.mrb[0].mxu0 %v639
      %v716 = vpop.f32.mrb[0].mxu0
      %v717 = vadd.f32 %v548, %v716
      %v718 = vpop.f32.mrb[0].mxu0
      %v719 = vpop.f32.mrb[0].mxu0
      %v720 = vadd.f32 %v553, %v719
      %v721 = vpop.f32.mrb[0].mxu0
      %722 = vmatprep.mubr.bf16.mxu0 0
      %723 = vmatmul.mubr.bf16.gmra.mrb[0].mxu0 %v642
      %v724 = vpop.f32.mrb[0].mxu0
      %v725 = vadd.f32 %v558, %v724
      %v726 = vpop.f32.mrb[0].mxu0
      %v727 = vpop.f32.mrb[0].mxu0
      %v728 = vadd.f32 %v563, %v727
      %v729 = vpop.f32.mrb[0].mxu0
      %730 = vmatprep.mubr.bf16.mxu0 0
      %731 = vmatmul.mubr.bf16.gmra.mrb[0].mxu0 %v645
      %v732 = vpop.f32.mrb[0].mxu0
      %v733 = vadd.f32 %v568, %v732
      %v734 = vpop.f32.mrb[0].mxu0
      %v735 = vpop.f32.mrb[0].mxu0
      %v736 = vadd.f32 %v573, %v735
      %v737 = vpop.f32.mrb[0].mxu0
      %738 = vmatprep.mubr.bf16.mxu0 0
      %739 = vmatmul.mubr.bf16.gmra.mrb[0].mxu0 %v648
      %v740 = vpop.f32.mrb[0].mxu0
      %v741 = vadd.f32 %v578, %v740
      %v742 = vpop.f32.mrb[0].mxu0
      %v743 = vpop.f32.mrb[0].mxu0
      %v744 = vadd.f32 %v583, %v743
      %v745 = vpop.f32.mrb[0].mxu0
      %746 = vdwg.mxu0
      %v747 = vmax.f32 %v685, 0.0
      %v748 = vmax.f32 %v688, 0.0
      %v749 = vmax.f32 %v693, 0.0
      %v750 = vmax.f32 %v696, 0.0
      %v751 = vmax.f32 %v701, 0.0
      %v752 = vmax.f32 %v704, 0.0
      %v753 = vmax.f32 %v709, 0.0
      %v754 = vmax.f32 %v712, 0.0
      %v755 = vmax.f32 %v717, 0.0
      %v756 = vmax.f32 %v720, 0.0
      %v757 = vmax.f32 %v725, 0.0
      %v758 = vmax.f32 %v728, 0.0
      %v759 = vmax.f32 %v733, 0.0
      %v760 = vmax.f32 %v736, 0.0
      %v761 = vmax.f32 %v741, 0.0
      %v762 = vmax.f32 %v744, 0.0
      %v763 = vld [vmem:[%s3] sm:$0xf]
      %v764 = vld [vmem:[%s3 + $0x4] sm:$0xf]
      %v765 = vld [vmem:[%s3 + $0x8] sm:$0xf]
      %v766 = vld [vmem:[%s3 + $0xc] sm:$0xf]
      %v767 = vld [vmem:[%s3 + $0x10] sm:$0xf]
      %v768 = vld [vmem:[%s3 + $0x14] sm:$0xf]
      %v769 = vld [vmem:[%s3 + $0x18] sm:$0xf]
      %v770 = vld [vmem:[%s3 + $0x1c] sm:$0xf]
      %v771 = vld [vmem:[%s3 + $0x20] sm:$0xf]
      %v772 = vld [vmem:[%s3 + $0x24] sm:$0xf]
      %v773 = vld [vmem:[%s3 + $0x28] sm:$0xf]
      %v774 = vld [vmem:[%s3 + $0x2c] sm:$0xf]
      %v775 = vld [vmem:[%s3 + $0x30] sm:$0xf]
      %v776 = vld [vmem:[%s3 + $0x34] sm:$0xf]
      %v777 = vld [vmem:[%s3 + $0x38] sm:$0xf]
      %v778 = vld [vmem:[%s3 + $0x3c] sm:$0xf]
      %v779 = vpack.c.bf16 %v748, %v747
      %v780 = vpack.c.bf16 %v750, %v749
      %v781 = vpack.c.bf16 %v752, %v751
      %v782 = vpack.c.bf16 %v754, %v753
      %v783 = vpack.c.bf16 %v756, %v755
      %v784 = vpack.c.bf16 %v758, %v757
      %v785 = vpack.c.bf16 %v760, %v759
      %v786 = vpack.c.bf16 %v762, %v761
      %787 = vset.pattern.permute.xlu0 1
      %788 = vperm.xlu0 %787, %v473
      %v789 = vpop.permute.xlu0 %788
      %791 = vset.pattern.permute.xlu0 1
      %792 = vperm.xlu0 %791, %v474
      %v793 = vpop.permute.xlu0 %792
      %795 = vset.pattern.permute.xlu0 1
      %796 = vperm.xlu0 %795, %v475
      %v797 = vpop.permute.xlu0 %796
      %799 = vset.pattern.permute.xlu0 1
      %800 = vperm.xlu0 %799, %v476
      %v801 = vpop.permute.xlu0 %800
      %803 = vset.pattern.permute.xlu0 1
      %804 = vperm.xlu0 %803, %v477
      %v805 = vpop.permute.xlu0 %804
      %807 = vset.pattern.permute.xlu0 1
      %808 = vperm.xlu0 %807, %v478
      %v809 = vpop.permute.xlu0 %808
      %811 = vset.pattern.permute.xlu0 1
      %812 = vperm.xlu0 %811, %v479
      %v813 = vpop.permute.xlu0 %812
      %815 = vset.pattern.permute.xlu0 1
      %816 = vperm.xlu0 %815, %v480
      %v817 = vpop.permute.xlu0 %816
      %819 = vset.pattern.permute.xlu0 1
      %820 = vperm.xlu0 %819, %v481
      %v821 = vpop.permute.xlu0 %820
      %823 = vset.pattern.permute.xlu0 1
      %824 = vperm.xlu0 %823, %v482
      %v825 = vpop.permute.xlu0 %824
      %827 = vset.pattern.permute.xlu0 1
      %828 = vperm.xlu0 %827, %v483
      %v829 = vpop.permute.xlu0 %828
      %831 = vset.pattern.permute.xlu0 1
      %832 = vperm.xlu0 %831, %v484
      %v833 = vpop.permute.xlu0 %832
      %835 = vset.pattern.permute.xlu0 1
      %836 = vperm.xlu0 %835, %v485
      %v837 = vpop.permute.xlu0 %836
      %839 = vset.pattern.permute.xlu0 1
      %840 = vperm.xlu0 %839, %v486
      %v841 = vpop.permute.xlu0 %840
      %843 = vset.pattern.permute.xlu0 1
      %844 = vperm.xlu0 %843, %v487
      %v845 = vpop.permute.xlu0 %844
      %847 = vset.pattern.permute.xlu0 1
      %848 = vperm.xlu0 %847, %v488
      %v849 = vpop.permute.xlu0 %848
      %v867 = vunpack.c.l.b16 %v763
      %v868 = vunpack.c.l.b16 %v764
      %v869 = vunpack.c.l.b16 %v765
      %v870 = vunpack.c.l.b16 %v766
      %v871 = vunpack.c.l.b16 %v767
      %v872 = vunpack.c.l.b16 %v768
      %v873 = vunpack.c.l.b16 %v769
      %v874 = vunpack.c.l.b16 %v770
      %v875 = vunpack.c.l.b16 %v771
      %v876 = vunpack.c.l.b16 %v772
      %v877 = vunpack.c.l.b16 %v773
      %v878 = vunpack.c.l.b16 %v774
      %v879 = vunpack.c.l.b16 %v775
      %v880 = vunpack.c.l.b16 %v776
      %v881 = vunpack.c.l.b16 %v777
      %v882 = vunpack.c.l.b16 %v778
      %v883 = vpack.c.b16 %v868, %v867
      %v884 = vpack.c.b16 %v870, %v869
      %v885 = vpack.c.b16 %v872, %v871
      %v886 = vpack.c.b16 %v874, %v873
      %v887 = vpack.c.b16 %v876, %v875
      %v888 = vpack.c.b16 %v878, %v877
      %v889 = vpack.c.b16 %v880, %v879
      %v890 = vpack.c.b16 %v882, %v881
      %899 = vmatprep.subr.bf16.mxu0 0
      %900 = vmatpush1.bf16.msra.mxu0 %v779
      %901 = vmatprep.subr.bf16.mxu0 0
      %902 = vmatpush1.bf16.msra.mxu0 %v780
      %903 = vmatprep.subr.bf16.mxu0 0
      %904 = vmatpush1.bf16.msra.mxu0 %v781
      %905 = vmatprep.subr.bf16.mxu0 0
      %906 = vmatpush1.bf16.msra.mxu0 %v782
      %907 = vmatprep.subr.bf16.mxu0 0
      %908 = vmatpush1.bf16.msra.mxu0 %v783
      %909 = vmatprep.subr.bf16.mxu0 0
      %910 = vmatpush1.bf16.msra.mxu0 %v784
      %911 = vmatprep.subr.bf16.mxu0 0
      %912 = vmatpush1.bf16.msra.mxu0 %v785
      %913 = vmatprep.subr.bf16.mxu0 0
      %914 = vmatpush1.bf16.msra.mxu0 %v786
      %915 = vmatprep.subr.bf16.mxu0 0
      %916 = vmatpush1.bf16.msra.mxu0 0
      %917 = vmatprep.subr.bf16.mxu0 0
      %918 = vmatpush1.bf16.msra.mxu0 0
      %919 = vmatprep.subr.bf16.mxu0 0
      %920 = vmatpush1.bf16.msra.mxu0 0
      %921 = vmatprep.subr.bf16.mxu0 0
      %922 = vmatpush1.bf16.msra.mxu0 0
      %923 = vmatprep.subr.bf16.mxu0 0
      %924 = vmatpush1.bf16.msra.mxu0 0
      %925 = vmatprep.subr.bf16.mxu0 0
      %926 = vmatpush1.bf16.msra.mxu0 0
      %927 = vmatprep.subr.bf16.mxu0 0
      %928 = vmatpush1.bf16.msra.mxu0 0
      %929 = vmatprep.subr.bf16.mxu0 0
      %930 = vmatpush1.bf16.msra.mxu0 0
      %931 = vmatprep.mubr.bf16.mxu0 0
      %932 = vmatmul.mubr.bf16.gmra.mrb[0].mxu0 %v883
      %v933 = vpop.f32.mrb[0].mxu0
      %v934 = vadd.f32 %v789, %v933
      %v935 = vpop.f32.mrb[0].mxu0
      %v936 = vpop.f32.mrb[0].mxu0
      %v937 = vadd.f32 %v793, %v936
      %v938 = vpop.f32.mrb[0].mxu0
      %939 = vmatprep.mubr.bf16.mxu0 0
      %940 = vmatmul.mubr.bf16.gmra.mrb[0].mxu0 %v884
      %v941 = vpop.f32.mrb[0].mxu0
      %v942 = vadd.f32 %v797, %v941
      %v943 = vpop.f32.mrb[0].mxu0
      %v944 = vpop.f32.mrb[0].mxu0
      %v945 = vadd.f32 %v801, %v944
      %v946 = vpop.f32.mrb[0].mxu0
      %947 = vmatprep.mubr.bf16.mxu0 0
      %948 = vmatmul.mubr.bf16.gmra.mrb[0].mxu0 %v885
      %v949 = vpop.f32.mrb[0].mxu0
      %v950 = vadd.f32 %v805, %v949
      %v951 = vpop.f32.mrb[0].mxu0
      %v952 = vpop.f32.mrb[0].mxu0
      %v953 = vadd.f32 %v809, %v952
      %v954 = vpop.f32.mrb[0].mxu0
      %955 = vmatprep.mubr.bf16.mxu0 0
      %956 = vmatmul.mubr.bf16.gmra.mrb[0].mxu0 %v886
      %v957 = vpop.f32.mrb[0].mxu0
      %v958 = vadd.f32 %v813, %v957
      %v959 = vpop.f32.mrb[0].mxu0
      %v960 = vpop.f32.mrb[0].mxu0
      %v961 = vadd.f32 %v817, %v960
      %v962 = vpop.f32.mrb[0].mxu0
      %963 = vmatprep.mubr.bf16.mxu0 0
      %964 = vmatmul.mubr.bf16.gmra.mrb[0].mxu0 %v887
      %v965 = vpop.f32.mrb[0].mxu0
      %v966 = vadd.f32 %v821, %v965
      %v967 = vpop.f32.mrb[0].mxu0
      %v968 = vpop.f32.mrb[0].mxu0
      %v969 = vadd.f32 %v825, %v968
      %v970 = vpop.f32.mrb[0].mxu0
      %971 = vmatprep.mubr.bf16.mxu0 0
      %972 = vmatmul.mubr.bf16.gmra.mrb[0].mxu0 %v888
      %v973 = vpop.f32.mrb[0].mxu0
      %v974 = vadd.f32 %v829, %v973
      %v975 = vpop.f32.mrb[0].mxu0
      %v976 = vpop.f32.mrb[0].mxu0
      %v977 = vadd.f32 %v833, %v976
      %v978 = vpop.f32.mrb[0].mxu0
      %979 = vmatprep.mubr.bf16.mxu0 0
      %980 = vmatmul.mubr.bf16.gmra.mrb[0].mxu0 %v889
      %v981 = vpop.f32.mrb[0].mxu0
      %v982 = vadd.f32 %v837, %v981
      %v983 = vpop.f32.mrb[0].mxu0
      %v984 = vpop.f32.mrb[0].mxu0
      %v985 = vadd.f32 %v841, %v984
      %v986 = vpop.f32.mrb[0].mxu0
      %987 = vmatprep.mubr.bf16.mxu0 0
      %988 = vmatmul.mubr.bf16.gmra.mrb[0].mxu0 %v890
      %v989 = vpop.f32.mrb[0].mxu0
      %v990 = vadd.f32 %v845, %v989
      %v991 = vpop.f32.mrb[0].mxu0
      %v992 = vpop.f32.mrb[0].mxu0
      %v993 = vadd.f32 %v849, %v992
      %v994 = vpop.f32.mrb[0].mxu0
      %995 = vdwg.mxu0
      %v996 = vmax.f32 %v934, 0.0
      %v997 = vmax.f32 %v937, 0.0
      %v998 = vmax.f32 %v942, 0.0
      %v999 = vmax.f32 %v945, 0.0
      %v1000 = vmax.f32 %v950, 0.0
      %v1001 = vmax.f32 %v953, 0.0
      %v1002 = vmax.f32 %v958, 0.0
      %v1003 = vmax.f32 %v961, 0.0
      %v1004 = vmax.f32 %v966, 0.0
      %v1005 = vmax.f32 %v969, 0.0
      %v1006 = vmax.f32 %v974, 0.0
      %v1007 = vmax.f32 %v977, 0.0
      %v1008 = vmax.f32 %v982, 0.0
      %v1009 = vmax.f32 %v985, 0.0
      %v1010 = vmax.f32 %v990, 0.0
      %v1011 = vmax.f32 %v993, 0.0
      %v1012 = vld [vmem:[%s319] sm:$0xf]
      %v1013 = vld [vmem:[%s319 + $0x4] sm:$0xf]
      %v1014 = vld [vmem:[%s319 + $0x8] sm:$0xf]
      %v1015 = vld [vmem:[%s319 + $0xc] sm:$0xf]
      %v1016 = vld [vmem:[%s319 + $0x10] sm:$0xf]
      %v1017 = vld [vmem:[%s319 + $0x14] sm:$0xf]
      %v1018 = vld [vmem:[%s319 + $0x18] sm:$0xf]
      %v1019 = vld [vmem:[%s319 + $0x1c] sm:$0xf]
      %v1020 = vld [vmem:[%s319 + $0x20] sm:$0xf]
      %v1021 = vld [vmem:[%s319 + $0x24] sm:$0xf]
      %v1022 = vld [vmem:[%s319 + $0x28] sm:$0xf]
      %v1023 = vld [vmem:[%s319 + $0x2c] sm:$0xf]
      %v1024 = vld [vmem:[%s319 + $0x30] sm:$0xf]
      %v1025 = vld [vmem:[%s319 + $0x34] sm:$0xf]
      %v1026 = vld [vmem:[%s319 + $0x38] sm:$0xf]
      %v1027 = vld [vmem:[%s319 + $0x3c] sm:$0xf]
      %v1028 = vld [vmem:[%s319 + $0x40] sm:$0xf]
      %v1029 = vld [vmem:[%s319 + $0x44] sm:$0xf]
      %v1030 = vld [vmem:[%s319 + $0x48] sm:$0xf]
      %v1031 = vld [vmem:[%s319 + $0x4c] sm:$0xf]
      %v1032 = vld [vmem:[%s319 + $0x50] sm:$0xf]
      %v1033 = vld [vmem:[%s319 + $0x54] sm:$0xf]
      %v1034 = vld [vmem:[%s319 + $0x58] sm:$0xf]
      %v1035 = vld [vmem:[%s319 + $0x5c] sm:$0xf]
      %v1036 = vld [vmem:[%s319 + $0x60] sm:$0xf]
      %v1037 = vld [vmem:[%s319 + $0x64] sm:$0xf]
      %v1038 = vld [vmem:[%s319 + $0x68] sm:$0xf]
      %v1039 = vld [vmem:[%s319 + $0x6c] sm:$0xf]
      %v1040 = vld [vmem:[%s319 + $0x70] sm:$0xf]
      %v1041 = vld [vmem:[%s319 + $0x74] sm:$0xf]
      %v1042 = vld [vmem:[%s319 + $0x78] sm:$0xf]
      %v1043 = vld [vmem:[%s319 + $0x7c] sm:$0xf]
      %v1044 = vld [vmem:[%s319 + $0x80] sm:$0xf]
      %v1045 = vld [vmem:[%s319 + $0x84] sm:$0xf]
      %v1046 = vld [vmem:[%s319 + $0x88] sm:$0xf]
      %v1047 = vld [vmem:[%s319 + $0x8c] sm:$0xf]
      %v1048 = vld [vmem:[%s319 + $0x90] sm:$0xf]
      %v1049 = vld [vmem:[%s319 + $0x94] sm:$0xf]
      %v1050 = vld [vmem:[%s319 + $0x98] sm:$0xf]
      %v1051 = vld [vmem:[%s319 + $0x9c] sm:$0xf]
      %v1052 = vld [vmem:[%s319 + $0xa0] sm:$0xf]
      %v1053 = vld [vmem:[%s319 + $0xa4] sm:$0xf]
      %v1054 = vld [vmem:[%s319 + $0xa8] sm:$0xf]
      %v1055 = vld [vmem:[%s319 + $0xac] sm:$0xf]
      %v1056 = vld [vmem:[%s319 + $0xb0] sm:$0xf]
      %v1057 = vld [vmem:[%s319 + $0xb4] sm:$0xf]
      %v1058 = vld [vmem:[%s319 + $0xb8] sm:$0xf]
      %v1059 = vld [vmem:[%s319 + $0xbc] sm:$0xf]
      %v1060 = vld [vmem:[%s319 + $0xc0] sm:$0xf]
      %v1061 = vld [vmem:[%s319 + $0xc4] sm:$0xf]
      %v1062 = vld [vmem:[%s319 + $0xc8] sm:$0xf]
      %v1063 = vld [vmem:[%s319 + $0xcc] sm:$0xf]
      %v1064 = vld [vmem:[%s319 + $0xd0] sm:$0xf]
      %v1065 = vld [vmem:[%s319 + $0xd4] sm:$0xf]
      %v1066 = vld [vmem:[%s319 + $0xd8] sm:$0xf]
      %v1067 = vld [vmem:[%s319 + $0xdc] sm:$0xf]
      %v1068 = vld [vmem:[%s319 + $0xe0] sm:$0xf]
      %v1069 = vld [vmem:[%s319 + $0xe4] sm:$0xf]
      %v1070 = vld [vmem:[%s319 + $0xe8] sm:$0xf]
      %v1071 = vld [vmem:[%s319 + $0xec] sm:$0xf]
      %v1072 = vld [vmem:[%s319 + $0xf0] sm:$0xf]
      %v1073 = vld [vmem:[%s319 + $0xf4] sm:$0xf]
      %v1074 = vld [vmem:[%s319 + $0xf8] sm:$0xf]
      %v1075 = vld [vmem:[%s319 + $0xfc] sm:$0xf]
      %v1076 = vld [vmem:[%s319 + $0x100] sm:$0xf]
      %v1077 = vld [vmem:[%s319 + $0x104] sm:$0xf]
      %v1078 = vld [vmem:[%s319 + $0x108] sm:$0xf]
      %v1079 = vld [vmem:[%s319 + $0x10c] sm:$0xf]
      %v1080 = vld [vmem:[%s319 + $0x110] sm:$0xf]
      %v1081 = vld [vmem:[%s319 + $0x114] sm:$0xf]
      %v1082 = vld [vmem:[%s319 + $0x118] sm:$0xf]
      %v1083 = vld [vmem:[%s319 + $0x11c] sm:$0xf]
      %v1084 = vld [vmem:[%s319 + $0x120] sm:$0xf]
      %v1085 = vld [vmem:[%s319 + $0x124] sm:$0xf]
      %v1086 = vld [vmem:[%s319 + $0x128] sm:$0xf]
      %v1087 = vld [vmem:[%s319 + $0x12c] sm:$0xf]
      %v1088 = vld [vmem:[%s319 + $0x130] sm:$0xf]
      %v1089 = vld [vmem:[%s319 + $0x134] sm:$0xf]
      %v1090 = vld [vmem:[%s319 + $0x138] sm:$0xf]
      %v1091 = vld [vmem:[%s319 + $0x13c] sm:$0xf]
      %v1092 = vld [vmem:[%s319 + $0x140] sm:$0xf]
      %v1093 = vld [vmem:[%s319 + $0x144] sm:$0xf]
      %v1094 = vld [vmem:[%s319 + $0x148] sm:$0xf]
      %v1095 = vld [vmem:[%s319 + $0x14c] sm:$0xf]
      %v1096 = vld [vmem:[%s319 + $0x150] sm:$0xf]
      %v1097 = vld [vmem:[%s319 + $0x154] sm:$0xf]
      %v1098 = vld [vmem:[%s319 + $0x158] sm:$0xf]
      %v1099 = vld [vmem:[%s319 + $0x15c] sm:$0xf]
      %v1100 = vld [vmem:[%s319 + $0x160] sm:$0xf]
      %v1101 = vld [vmem:[%s319 + $0x164] sm:$0xf]
      %v1102 = vld [vmem:[%s319 + $0x168] sm:$0xf]
      %v1103 = vld [vmem:[%s319 + $0x16c] sm:$0xf]
      %v1104 = vld [vmem:[%s319 + $0x170] sm:$0xf]
      %v1105 = vld [vmem:[%s319 + $0x174] sm:$0xf]
      %v1106 = vld [vmem:[%s319 + $0x178] sm:$0xf]
      %v1107 = vld [vmem:[%s319 + $0x17c] sm:$0xf]
      %v1108 = vld [vmem:[%s319 + $0x180] sm:$0xf]
      %v1109 = vld [vmem:[%s319 + $0x184] sm:$0xf]
      %v1110 = vld [vmem:[%s319 + $0x188] sm:$0xf]
      %v1111 = vld [vmem:[%s319 + $0x18c] sm:$0xf]
      %v1112 = vld [vmem:[%s319 + $0x190] sm:$0xf]
      %v1113 = vld [vmem:[%s319 + $0x194] sm:$0xf]
      %v1114 = vld [vmem:[%s319 + $0x198] sm:$0xf]
      %v1115 = vld [vmem:[%s319 + $0x19c] sm:$0xf]
      %v1116 = vld [vmem:[%s319 + $0x1a0] sm:$0xf]
      %v1117 = vld [vmem:[%s319 + $0x1a4] sm:$0xf]
      %v1118 = vld [vmem:[%s319 + $0x1a8] sm:$0xf]
      %v1119 = vld [vmem:[%s319 + $0x1ac] sm:$0xf]
      %v1120 = vld [vmem:[%s319 + $0x1b0] sm:$0xf]
      %v1121 = vld [vmem:[%s319 + $0x1b4] sm:$0xf]
      %v1122 = vld [vmem:[%s319 + $0x1b8] sm:$0xf]
      %v1123 = vld [vmem:[%s319 + $0x1bc] sm:$0xf]
      %v1124 = vld [vmem:[%s319 + $0x1c0] sm:$0xf]
      %v1125 = vld [vmem:[%s319 + $0x1c4] sm:$0xf]
      %v1126 = vld [vmem:[%s319 + $0x1c8] sm:$0xf]
      %v1127 = vld [vmem:[%s319 + $0x1cc] sm:$0xf]
      %v1128 = vld [vmem:[%s319 + $0x1d0] sm:$0xf]
      %v1129 = vld [vmem:[%s319 + $0x1d4] sm:$0xf]
      %v1130 = vld [vmem:[%s319 + $0x1d8] sm:$0xf]
      %v1131 = vld [vmem:[%s319 + $0x1dc] sm:$0xf]
      %v1132 = vld [vmem:[%s319 + $0x1e0] sm:$0xf]
      %v1133 = vld [vmem:[%s319 + $0x1e4] sm:$0xf]
      %v1134 = vld [vmem:[%s319 + $0x1e8] sm:$0xf]
      %v1135 = vld [vmem:[%s319 + $0x1ec] sm:$0xf]
      %v1136 = vld [vmem:[%s319 + $0x1f0] sm:$0xf]
      %v1137 = vld [vmem:[%s319 + $0x1f4] sm:$0xf]
      %v1138 = vld [vmem:[%s319 + $0x1f8] sm:$0xf]
      %v1139 = vld [vmem:[%s319 + $0x1fc] sm:$0xf]
      %v1140 = vpack.c.bf16 %v997, %v996
      %v1141 = vpack.c.bf16 %v999, %v998
      %v1142 = vpack.c.bf16 %v1001, %v1000
      %v1143 = vpack.c.bf16 %v1003, %v1002
      %v1144 = vpack.c.bf16 %v1005, %v1004
      %v1145 = vpack.c.bf16 %v1007, %v1006
      %v1146 = vpack.c.bf16 %v1009, %v1008
      %v1147 = vpack.c.bf16 %v1011, %v1010
      %v1276 = vunpack.c.l.b16 %v1012
      %v1277 = vunpack.c.l.b16 %v1013
      %v1278 = vunpack.c.l.b16 %v1014
      %v1279 = vunpack.c.l.b16 %v1015
      %v1280 = vunpack.c.l.b16 %v1016
      %v1281 = vunpack.c.l.b16 %v1017
      %v1282 = vunpack.c.l.b16 %v1018
      %v1283 = vunpack.c.l.b16 %v1019
      %v1284 = vunpack.c.l.b16 %v1020
      %v1285 = vunpack.c.l.b16 %v1021
      %v1286 = vunpack.c.l.b16 %v1022
      %v1287 = vunpack.c.l.b16 %v1023
      %v1288 = vunpack.c.l.b16 %v1024
      %v1289 = vunpack.c.l.b16 %v1025
      %v1290 = vunpack.c.l.b16 %v1026
      %v1291 = vunpack.c.l.b16 %v1027
      %v1292 = vunpack.c.l.b16 %v1028
      %v1293 = vunpack.c.l.b16 %v1029
      %v1294 = vunpack.c.l.b16 %v1030
      %v1295 = vunpack.c.l.b16 %v1031
      %v1296 = vunpack.c.l.b16 %v1032
      %v1297 = vunpack.c.l.b16 %v1033
      %v1298 = vunpack.c.l.b16 %v1034
      %v1299 = vunpack.c.l.b16 %v1035
      %v1300 = vunpack.c.l.b16 %v1036
      %v1301 = vunpack.c.l.b16 %v1037
      %v1302 = vunpack.c.l.b16 %v1038
      %v1303 = vunpack.c.l.b16 %v1039
      %v1304 = vunpack.c.l.b16 %v1040
      %v1305 = vunpack.c.l.b16 %v1041
      %v1306 = vunpack.c.l.b16 %v1042
      %v1307 = vunpack.c.l.b16 %v1043
      %v1308 = vunpack.c.l.b16 %v1044
      %v1309 = vunpack.c.l.b16 %v1045
      %v1310 = vunpack.c.l.b16 %v1046
      %v1311 = vunpack.c.l.b16 %v1047
      %v1312 = vunpack.c.l.b16 %v1048
      %v1313 = vunpack.c.l.b16 %v1049
      %v1314 = vunpack.c.l.b16 %v1050
      %v1315 = vunpack.c.l.b16 %v1051
      %v1316 = vunpack.c.l.b16 %v1052
      %v1317 = vunpack.c.l.b16 %v1053
      %v1318 = vunpack.c.l.b16 %v1054
      %v1319 = vunpack.c.l.b16 %v1055
      %v1320 = vunpack.c.l.b16 %v1056
      %v1321 = vunpack.c.l.b16 %v1057
      %v1322 = vunpack.c.l.b16 %v1058
      %v1323 = vunpack.c.l.b16 %v1059
      %v1324 = vunpack.c.l.b16 %v1060
      %v1325 = vunpack.c.l.b16 %v1061
      %v1326 = vunpack.c.l.b16 %v1062
      %v1327 = vunpack.c.l.b16 %v1063
      %v1328 = vunpack.c.l.b16 %v1064
      %v1329 = vunpack.c.l.b16 %v1065
      %v1330 = vunpack.c.l.b16 %v1066
      %v1331 = vunpack.c.l.b16 %v1067
      %v1332 = vunpack.c.l.b16 %v1068
      %v1333 = vunpack.c.l.b16 %v1069
      %v1334 = vunpack.c.l.b16 %v1070
      %v1335 = vunpack.c.l.b16 %v1071
      %v1336 = vunpack.c.l.b16 %v1072
      %v1337 = vunpack.c.l.b16 %v1073
      %v1338 = vunpack.c.l.b16 %v1074
      %v1339 = vunpack.c.l.b16 %v1075
      %v1340 = vunpack.c.l.b16 %v1076
      %v1341 = vunpack.c.l.b16 %v1077
      %v1342 = vunpack.c.l.b16 %v1078
      %v1343 = vunpack.c.l.b16 %v1079
      %v1344 = vunpack.c.l.b16 %v1080
      %v1345 = vunpack.c.l.b16 %v1081
      %v1346 = vunpack.c.l.b16 %v1082
      %v1347 = vunpack.c.l.b16 %v1083
      %v1348 = vunpack.c.l.b16 %v1084
      %v1349 = vunpack.c.l.b16 %v1085
      %v1350 = vunpack.c.l.b16 %v1086
      %v1351 = vunpack.c.l.b16 %v1087
      %v1352 = vunpack.c.l.b16 %v1088
      %v1353 = vunpack.c.l.b16 %v1089
      %v1354 = vunpack.c.l.b16 %v1090
      %v1355 = vunpack.c.l.b16 %v1091
      %v1356 = vunpack.c.l.b16 %v1092
      %v1357 = vunpack.c.l.b16 %v1093
      %v1358 = vunpack.c.l.b16 %v1094
      %v1359 = vunpack.c.l.b16 %v1095
      %v1360 = vunpack.c.l.b16 %v1096
      %v1361 = vunpack.c.l.b16 %v1097
      %v1362 = vunpack.c.l.b16 %v1098
      %v1363 = vunpack.c.l.b16 %v1099
      %v1364 = vunpack.c.l.b16 %v1100
      %v1365 = vunpack.c.l.b16 %v1101
      %v1366 = vunpack.c.l.b16 %v1102
      %v1367 = vunpack.c.l.b16 %v1103
      %v1368 = vunpack.c.l.b16 %v1104
      %v1369 = vunpack.c.l.b16 %v1105
      %v1370 = vunpack.c.l.b16 %v1106
      %v1371 = vunpack.c.l.b16 %v1107
      %v1372 = vunpack.c.l.b16 %v1108
      %v1373 = vunpack.c.l.b16 %v1109
      %v1374 = vunpack.c.l.b16 %v1110
      %v1375 = vunpack.c.l.b16 %v1111
      %v1376 = vunpack.c.l.b16 %v1112
      %v1377 = vunpack.c.l.b16 %v1113
      %v1378 = vunpack.c.l.b16 %v1114
      %v1379 = vunpack.c.l.b16 %v1115
      %v1380 = vunpack.c.l.b16 %v1116
      %v1381 = vunpack.c.l.b16 %v1117
      %v1382 = vunpack.c.l.b16 %v1118
      %v1383 = vunpack.c.l.b16 %v1119
      %v1384 = vunpack.c.l.b16 %v1120
      %v1385 = vunpack.c.l.b16 %v1121
      %v1386 = vunpack.c.l.b16 %v1122
      %v1387 = vunpack.c.l.b16 %v1123
      %v1388 = vunpack.c.l.b16 %v1124
      %v1389 = vunpack.c.l.b16 %v1125
      %v1390 = vunpack.c.l.b16 %v1126
      %v1391 = vunpack.c.l.b16 %v1127
      %v1392 = vunpack.c.l.b16 %v1128
      %v1393 = vunpack.c.l.b16 %v1129
      %v1394 = vunpack.c.l.b16 %v1130
      %v1395 = vunpack.c.l.b16 %v1131
      %v1396 = vunpack.c.l.b16 %v1132
      %v1397 = vunpack.c.l.b16 %v1133
      %v1398 = vunpack.c.l.b16 %v1134
      %v1399 = vunpack.c.l.b16 %v1135
      %v1400 = vunpack.c.l.b16 %v1136
      %v1401 = vunpack.c.l.b16 %v1137
      %v1402 = vunpack.c.l.b16 %v1138
      %v1403 = vunpack.c.l.b16 %v1139
      %v1404 = vpack.c.b16 %v1277, %v1276
      %v1405 = vpack.c.b16 %v1279, %v1278
      %v1406 = vpack.c.b16 %v1281, %v1280
      %v1407 = vpack.c.b16 %v1283, %v1282
      %v1408 = vpack.c.b16 %v1285, %v1284
      %v1409 = vpack.c.b16 %v1287, %v1286
      %v1410 = vpack.c.b16 %v1289, %v1288
      %v1411 = vpack.c.b16 %v1291, %v1290
      %v1412 = vpack.c.b16 %v1293, %v1292
      %v1413 = vpack.c.b16 %v1295, %v1294
      %v1414 = vpack.c.b16 %v1297, %v1296
      %v1415 = vpack.c.b16 %v1299, %v1298
      %v1416 = vpack.c.b16 %v1301, %v1300
      %v1417 = vpack.c.b16 %v1303, %v1302
      %v1418 = vpack.c.b16 %v1305, %v1304
      %v1419 = vpack.c.b16 %v1307, %v1306
      %v1420 = vpack.c.b16 %v1309, %v1308
      %v1421 = vpack.c.b16 %v1311, %v1310
      %v1422 = vpack.c.b16 %v1313, %v1312
      %v1423 = vpack.c.b16 %v1315, %v1314
      %v1424 = vpack.c.b16 %v1317, %v1316
      %v1425 = vpack.c.b16 %v1319, %v1318
      %v1426 = vpack.c.b16 %v1321, %v1320
      %v1427 = vpack.c.b16 %v1323, %v1322
      %v1428 = vpack.c.b16 %v1325, %v1324
      %v1429 = vpack.c.b16 %v1327, %v1326
      %v1430 = vpack.c.b16 %v1329, %v1328
      %v1431 = vpack.c.b16 %v1331, %v1330
      %v1432 = vpack.c.b16 %v1333, %v1332
      %v1433 = vpack.c.b16 %v1335, %v1334
      %v1434 = vpack.c.b16 %v1337, %v1336
      %v1435 = vpack.c.b16 %v1339, %v1338
      %v1436 = vpack.c.b16 %v1341, %v1340
      %v1437 = vpack.c.b16 %v1343, %v1342
      %v1438 = vpack.c.b16 %v1345, %v1344
      %v1439 = vpack.c.b16 %v1347, %v1346
      %v1440 = vpack.c.b16 %v1349, %v1348
      %v1441 = vpack.c.b16 %v1351, %v1350
      %v1442 = vpack.c.b16 %v1353, %v1352
      %v1443 = vpack.c.b16 %v1355, %v1354
      %v1444 = vpack.c.b16 %v1357, %v1356
      %v1445 = vpack.c.b16 %v1359, %v1358
      %v1446 = vpack.c.b16 %v1361, %v1360
      %v1447 = vpack.c.b16 %v1363, %v1362
      %v1448 = vpack.c.b16 %v1365, %v1364
      %v1449 = vpack.c.b16 %v1367, %v1366
      %v1450 = vpack.c.b16 %v1369, %v1368
      %v1451 = vpack.c.b16 %v1371, %v1370
      %v1452 = vpack.c.b16 %v1373, %v1372
      %v1453 = vpack.c.b16 %v1375, %v1374
      %v1454 = vpack.c.b16 %v1377, %v1376
      %v1455 = vpack.c.b16 %v1379, %v1378
      %v1456 = vpack.c.b16 %v1381, %v1380
      %v1457 = vpack.c.b16 %v1383, %v1382
      %v1458 = vpack.c.b16 %v1385, %v1384
      %v1459 = vpack.c.b16 %v1387, %v1386
      %v1460 = vpack.c.b16 %v1389, %v1388
      %v1461 = vpack.c.b16 %v1391, %v1390
      %v1462 = vpack.c.b16 %v1393, %v1392
      %v1463 = vpack.c.b16 %v1395, %v1394
      %v1464 = vpack.c.b16 %v1397, %v1396
      %v1465 = vpack.c.b16 %v1399, %v1398
      %v1466 = vpack.c.b16 %v1401, %v1400
      %v1467 = vpack.c.b16 %v1403, %v1402
      %1532 = vmatprep.subr.bf16.mxu0 0
      %1533 = vmatpush1.bf16.msra.mxu0 %v1140
      %1534 = vmatprep.subr.bf16.mxu0 0
      %1535 = vmatpush1.bf16.msra.mxu0 %v1141
      %1536 = vmatprep.subr.bf16.mxu0 0
      %1537 = vmatpush1.bf16.msra.mxu0 %v1142
      %1538 = vmatprep.subr.bf16.mxu0 0
      %1539 = vmatpush1.bf16.msra.mxu0 %v1143
      %1540 = vmatprep.subr.bf16.mxu0 0
      %1541 = vmatpush1.bf16.msra.mxu0 %v1144
      %1542 = vmatprep.subr.bf16.mxu0 0
      %1543 = vmatpush1.bf16.msra.mxu0 %v1145
      %1544 = vmatprep.subr.bf16.mxu0 0
      %1545 = vmatpush1.bf16.msra.mxu0 %v1146
      %1546 = vmatprep.subr.bf16.mxu0 0
      %1547 = vmatpush1.bf16.msra.mxu0 %v1147
      %1548 = vmatprep.subr.bf16.mxu0 0
      %1549 = vmatpush1.bf16.msra.mxu0 0
      %1550 = vmatprep.subr.bf16.mxu0 0
      %1551 = vmatpush1.bf16.msra.mxu0 0
      %1552 = vmatprep.subr.bf16.mxu0 0
      %1553 = vmatpush1.bf16.msra.mxu0 0
      %1554 = vmatprep.subr.bf16.mxu0 0
      %1555 = vmatpush1.bf16.msra.mxu0 0
      %1556 = vmatprep.subr.bf16.mxu0 0
      %1557 = vmatpush1.bf16.msra.mxu0 0
      %1558 = vmatprep.subr.bf16.mxu0 0
      %1559 = vmatpush1.bf16.msra.mxu0 0
      %1560 = vmatprep.subr.bf16.mxu0 0
      %1561 = vmatpush1.bf16.msra.mxu0 0
      %1562 = vmatprep.subr.bf16.mxu0 0
      %1563 = vmatpush1.bf16.msra.mxu0 0
      %1564 = vmatprep.mubr.bf16.mxu0 0
      %1565 = vmatmul.mubr.bf16.gmra.mrb[0].mxu0 %v1404
      %v1566 = vpop.f32.mrb[0].mxu0
      %v1567 = vadd.f32 0.0, %v1566
      %v1568 = vpop.f32.mrb[0].mxu0
      %v1569 = vpop.f32.mrb[0].mxu0
      %v1570 = vadd.f32 0.0, %v1569
      %v1571 = vpop.f32.mrb[0].mxu0
      %1572 = vmatprep.mubr.bf16.mxu0 0
      %1573 = vmatmul.mubr.bf16.gmra.mrb[0].mxu0 %v1405
      %v1574 = vpop.f32.mrb[0].mxu0
      %v1575 = vadd.f32 0.0, %v1574
      %v1576 = vpop.f32.mrb[0].mxu0
      %v1577 = vpop.f32.mrb[0].mxu0
      %v1578 = vadd.f32 0.0, %v1577
      %v1579 = vpop.f32.mrb[0].mxu0
      %1580 = vmatprep.mubr.bf16.mxu0 0
      %1581 = vmatmul.mubr.bf16.gmra.mrb[0].mxu0 %v1406
      %v1582 = vpop.f32.mrb[0].mxu0
      %v1583 = vadd.f32 0.0, %v1582
      %v1584 = vpop.f32.mrb[0].mxu0
      %v1585 = vpop.f32.mrb[0].mxu0
      %v1586 = vadd.f32 0.0, %v1585
      %v1587 = vpop.f32.mrb[0].mxu0
      %1588 = vmatprep.mubr.bf16.mxu0 0
      %1589 = vmatmul.mubr.bf16.gmra.mrb[0].mxu0 %v1407
      %v1590 = vpop.f32.mrb[0].mxu0
      %v1591 = vadd.f32 0.0, %v1590
      %v1592 = vpop.f32.mrb[0].mxu0
      %v1593 = vpop.f32.mrb[0].mxu0
      %v1594 = vadd.f32 0.0, %v1593
      %v1595 = vpop.f32.mrb[0].mxu0
      %1596 = vmatprep.mubr.bf16.mxu0 0
      %1597 = vmatmul.mubr.bf16.gmra.mrb[0].mxu0 %v1408
      %v1598 = vpop.f32.mrb[0].mxu0
      %v1599 = vadd.f32 0.0, %v1598
      %v1600 = vpop.f32.mrb[0].mxu0
      %v1601 = vpop.f32.mrb[0].mxu0
      %v1602 = vadd.f32 0.0, %v1601
      %v1603 = vpop.f32.mrb[0].mxu0
      %1604 = vmatprep.mubr.bf16.mxu0 0
      %1605 = vmatmul.mubr.bf16.gmra.mrb[0].mxu0 %v1409
      %v1606 = vpop.f32.mrb[0].mxu0
      %v1607 = vadd.f32 0.0, %v1606
      %v1608 = vpop.f32.mrb[0].mxu0
      %v1609 = vpop.f32.mrb[0].mxu0
      %v1610 = vadd.f32 0.0, %v1609
      %v1611 = vpop.f32.mrb[0].mxu0
      %1612 = vmatprep.mubr.bf16.mxu0 0
      %1613 = vmatmul.mubr.bf16.gmra.mrb[0].mxu0 %v1410
      %v1614 = vpop.f32.mrb[0].mxu0
      %v1615 = vadd.f32 0.0, %v1614
      %v1616 = vpop.f32.mrb[0].mxu0
      %v1617 = vpop.f32.mrb[0].mxu0
      %v1618 = vadd.f32 0.0, %v1617
      %v1619 = vpop.f32.mrb[0].mxu0
      %1620 = vmatprep.mubr.bf16.mxu0 0
      %1621 = vmatmul.mubr.bf16.gmra.mrb[0].mxu0 %v1411
      %v1622 = vpop.f32.mrb[0].mxu0
      %v1623 = vadd.f32 0.0, %v1622
      %v1624 = vpop.f32.mrb[0].mxu0
      %v1625 = vpop.f32.mrb[0].mxu0
      %v1626 = vadd.f32 0.0, %v1625
      %v1627 = vpop.f32.mrb[0].mxu0
      %1628 = vmatprep.mubr.bf16.mxu0 0
      %1629 = vmatmul.mubr.bf16.gmra.mrb[0].mxu0 %v1412
      %v1630 = vpop.f32.mrb[0].mxu0
      %v1631 = vadd.f32 0.0, %v1630
      %v1632 = vpop.f32.mrb[0].mxu0
      %v1633 = vpop.f32.mrb[0].mxu0
      %v1634 = vadd.f32 0.0, %v1633
      %v1635 = vpop.f32.mrb[0].mxu0
      %1636 = vmatprep.mubr.bf16.mxu0 0
      %1637 = vmatmul.mubr.bf16.gmra.mrb[0].mxu0 %v1413
      %v1638 = vpop.f32.mrb[0].mxu0
      %v1639 = vadd.f32 0.0, %v1638
      %v1640 = vpop.f32.mrb[0].mxu0
      %v1641 = vpop.f32.mrb[0].mxu0
      %v1642 = vadd.f32 0.0, %v1641
      %v1643 = vpop.f32.mrb[0].mxu0
      %1644 = vmatprep.mubr.bf16.mxu0 0
      %1645 = vmatmul.mubr.bf16.gmra.mrb[0].mxu0 %v1414
      %v1646 = vpop.f32.mrb[0].mxu0
      %v1647 = vadd.f32 0.0, %v1646
      %v1648 = vpop.f32.mrb[0].mxu0
      %v1649 = vpop.f32.mrb[0].mxu0
      %v1650 = vadd.f32 0.0, %v1649
      %v1651 = vpop.f32.mrb[0].mxu0
      %1652 = vmatprep.mubr.bf16.mxu0 0
      %1653 = vmatmul.mubr.bf16.gmra.mrb[0].mxu0 %v1415
      %v1654 = vpop.f32.mrb[0].mxu0
      %v1655 = vadd.f32 0.0, %v1654
      %v1656 = vpop.f32.mrb[0].mxu0
      %v1657 = vpop.f32.mrb[0].mxu0
      %v1658 = vadd.f32 0.0, %v1657
      %v1659 = vpop.f32.mrb[0].mxu0
      %1660 = vmatprep.mubr.bf16.mxu0 0
      %1661 = vmatmul.mubr.bf16.gmra.mrb[0].mxu0 %v1416
      %v1662 = vpop.f32.mrb[0].mxu0
      %v1663 = vadd.f32 0.0, %v1662
      %v1664 = vpop.f32.mrb[0].mxu0
      %v1665 = vpop.f32.mrb[0].mxu0
      %v1666 = vadd.f32 0.0, %v1665
      %v1667 = vpop.f32.mrb[0].mxu0
      %1668 = vmatprep.mubr.bf16.mxu0 0
      %1669 = vmatmul.mubr.bf16.gmra.mrb[0].mxu0 %v1417
      %v1670 = vpop.f32.mrb[0].mxu0
      %v1671 = vadd.f32 0.0, %v1670
      %v1672 = vpop.f32.mrb[0].mxu0
      %v1673 = vpop.f32.mrb[0].mxu0
      %v1674 = vadd.f32 0.0, %v1673
      %v1675 = vpop.f32.mrb[0].mxu0
      %1676 = vmatprep.mubr.bf16.mxu0 0
      %1677 = vmatmul.mubr.bf16.gmra.mrb[0].mxu0 %v1418
      %v1678 = vpop.f32.mrb[0].mxu0
      %v1679 = vadd.f32 0.0, %v1678
      %v1680 = vpop.f32.mrb[0].mxu0
      %v1681 = vpop.f32.mrb[0].mxu0
      %v1682 = vadd.f32 0.0, %v1681
      %v1683 = vpop.f32.mrb[0].mxu0
      %1684 = vmatprep.mubr.bf16.mxu0 0
      %1685 = vmatmul.mubr.bf16.gmra.mrb[0].mxu0 %v1419
      %v1686 = vpop.f32.mrb[0].mxu0
      %v1687 = vadd.f32 0.0, %v1686
      %v1688 = vpop.f32.mrb[0].mxu0
      %v1689 = vpop.f32.mrb[0].mxu0
      %v1690 = vadd.f32 0.0, %v1689
      %v1691 = vpop.f32.mrb[0].mxu0
      %1692 = vmatprep.mubr.bf16.mxu0 0
      %1693 = vmatmul.mubr.bf16.gmra.mrb[0].mxu0 %v1420
      %v1694 = vpop.f32.mrb[0].mxu0
      %v1695 = vadd.f32 0.0, %v1694
      %v1696 = vpop.f32.mrb[0].mxu0
      %v1697 = vpop.f32.mrb[0].mxu0
      %v1698 = vadd.f32 0.0, %v1697
      %v1699 = vpop.f32.mrb[0].mxu0
      %1700 = vmatprep.mubr.bf16.mxu0 0
      %1701 = vmatmul.mubr.bf16.gmra.mrb[0].mxu0 %v1421
      %v1702 = vpop.f32.mrb[0].mxu0
      %v1703 = vadd.f32 0.0, %v1702
      %v1704 = vpop.f32.mrb[0].mxu0
      %v1705 = vpop.f32.mrb[0].mxu0
      %v1706 = vadd.f32 0.0, %v1705
      %v1707 = vpop.f32.mrb[0].mxu0
      %1708 = vmatprep.mubr.bf16.mxu0 0
      %1709 = vmatmul.mubr.bf16.gmra.mrb[0].mxu0 %v1422
      %v1710 = vpop.f32.mrb[0].mxu0
      %v1711 = vadd.f32 0.0, %v1710
      %v1712 = vpop.f32.mrb[0].mxu0
      %v1713 = vpop.f32.mrb[0].mxu0
      %v1714 = vadd.f32 0.0, %v1713
      %v1715 = vpop.f32.mrb[0].mxu0
      %1716 = vmatprep.mubr.bf16.mxu0 0
      %1717 = vmatmul.mubr.bf16.gmra.mrb[0].mxu0 %v1423
      %v1718 = vpop.f32.mrb[0].mxu0
      %v1719 = vadd.f32 0.0, %v1718
      %v1720 = vpop.f32.mrb[0].mxu0
      %v1721 = vpop.f32.mrb[0].mxu0
      %v1722 = vadd.f32 0.0, %v1721
      %v1723 = vpop.f32.mrb[0].mxu0
      %1724 = vmatprep.mubr.bf16.mxu0 0
      %1725 = vmatmul.mubr.bf16.gmra.mrb[0].mxu0 %v1424
      %v1726 = vpop.f32.mrb[0].mxu0
      %v1727 = vadd.f32 0.0, %v1726
      %v1728 = vpop.f32.mrb[0].mxu0
      %v1729 = vpop.f32.mrb[0].mxu0
      %v1730 = vadd.f32 0.0, %v1729
      %v1731 = vpop.f32.mrb[0].mxu0
      %1732 = vmatprep.mubr.bf16.mxu0 0
      %1733 = vmatmul.mubr.bf16.gmra.mrb[0].mxu0 %v1425
      %v1734 = vpop.f32.mrb[0].mxu0
      %v1735 = vadd.f32 0.0, %v1734
      %v1736 = vpop.f32.mrb[0].mxu0
      %v1737 = vpop.f32.mrb[0].mxu0
      %v1738 = vadd.f32 0.0, %v1737
      %v1739 = vpop.f32.mrb[0].mxu0
      %1740 = vmatprep.mubr.bf16.mxu0 0
      %1741 = vmatmul.mubr.bf16.gmra.mrb[0].mxu0 %v1426
      %v1742 = vpop.f32.mrb[0].mxu0
      %v1743 = vadd.f32 0.0, %v1742
      %v1744 = vpop.f32.mrb[0].mxu0
      %v1745 = vpop.f32.mrb[0].mxu0
      %v1746 = vadd.f32 0.0, %v1745
      %v1747 = vpop.f32.mrb[0].mxu0
      %1748 = vmatprep.mubr.bf16.mxu0 0
      %1749 = vmatmul.mubr.bf16.gmra.mrb[0].mxu0 %v1427
      %v1750 = vpop.f32.mrb[0].mxu0
      %v1751 = vadd.f32 0.0, %v1750
      %v1752 = vpop.f32.mrb[0].mxu0
      %v1753 = vpop.f32.mrb[0].mxu0
      %v1754 = vadd.f32 0.0, %v1753
      %v1755 = vpop.f32.mrb[0].mxu0
      %1756 = vmatprep.mubr.bf16.mxu0 0
      %1757 = vmatmul.mubr.bf16.gmra.mrb[0].mxu0 %v1428
      %v1758 = vpop.f32.mrb[0].mxu0
      %v1759 = vadd.f32 0.0, %v1758
      %v1760 = vpop.f32.mrb[0].mxu0
      %v1761 = vpop.f32.mrb[0].mxu0
      %v1762 = vadd.f32 0.0, %v1761
      %v1763 = vpop.f32.mrb[0].mxu0
      %1764 = vmatprep.mubr.bf16.mxu0 0
      %1765 = vmatmul.mubr.bf16.gmra.mrb[0].mxu0 %v1429
      %v1766 = vpop.f32.mrb[0].mxu0
      %v1767 = vadd.f32 0.0, %v1766
      %v1768 = vpop.f32.mrb[0].mxu0
      %v1769 = vpop.f32.mrb[0].mxu0
      %v1770 = vadd.f32 0.0, %v1769
      %v1771 = vpop.f32.mrb[0].mxu0
      %1772 = vmatprep.mubr.bf16.mxu0 0
      %1773 = vmatmul.mubr.bf16.gmra.mrb[0].mxu0 %v1430
      %v1774 = vpop.f32.mrb[0].mxu0
      %v1775 = vadd.f32 0.0, %v1774
      %v1776 = vpop.f32.mrb[0].mxu0
      %v1777 = vpop.f32.mrb[0].mxu0
      %v1778 = vadd.f32 0.0, %v1777
      %v1779 = vpop.f32.mrb[0].mxu0
      %1780 = vmatprep.mubr.bf16.mxu0 0
      %1781 = vmatmul.mubr.bf16.gmra.mrb[0].mxu0 %v1431
      %v1782 = vpop.f32.mrb[0].mxu0
      %v1783 = vadd.f32 0.0, %v1782
      %v1784 = vpop.f32.mrb[0].mxu0
      %v1785 = vpop.f32.mrb[0].mxu0
      %v1786 = vadd.f32 0.0, %v1785
      %v1787 = vpop.f32.mrb[0].mxu0
      %1788 = vmatprep.mubr.bf16.mxu0 0
      %1789 = vmatmul.mubr.bf16.gmra.mrb[0].mxu0 %v1432
      %v1790 = vpop.f32.mrb[0].mxu0
      %v1791 = vadd.f32 0.0, %v1790
      %v1792 = vpop.f32.mrb[0].mxu0
      %v1793 = vpop.f32.mrb[0].mxu0
      %v1794 = vadd.f32 0.0, %v1793
      %v1795 = vpop.f32.mrb[0].mxu0
      %1796 = vmatprep.mubr.bf16.mxu0 0
      %1797 = vmatmul.mubr.bf16.gmra.mrb[0].mxu0 %v1433
      %v1798 = vpop.f32.mrb[0].mxu0
      %v1799 = vadd.f32 0.0, %v1798
      %v1800 = vpop.f32.mrb[0].mxu0
      %v1801 = vpop.f32.mrb[0].mxu0
      %v1802 = vadd.f32 0.0, %v1801
      %v1803 = vpop.f32.mrb[0].mxu0
      %1804 = vmatprep.mubr.bf16.mxu0 0
      %1805 = vmatmul.mubr.bf16.gmra.mrb[0].mxu0 %v1434
      %v1806 = vpop.f32.mrb[0].mxu0
      %v1807 = vadd.f32 0.0, %v1806
      %v1808 = vpop.f32.mrb[0].mxu0
      %v1809 = vpop.f32.mrb[0].mxu0
      %v1810 = vadd.f32 0.0, %v1809
      %v1811 = vpop.f32.mrb[0].mxu0
      %1812 = vmatprep.mubr.bf16.mxu0 0
      %1813 = vmatmul.mubr.bf16.gmra.mrb[0].mxu0 %v1435
      %v1814 = vpop.f32.mrb[0].mxu0
      %v1815 = vadd.f32 0.0, %v1814
      %v1816 = vpop.f32.mrb[0].mxu0
      %v1817 = vpop.f32.mrb[0].mxu0
      %v1818 = vadd.f32 0.0, %v1817
      %v1819 = vpop.f32.mrb[0].mxu0
      %1820 = vmatprep.mubr.bf16.mxu0 0
      %1821 = vmatmul.mubr.bf16.gmra.mrb[0].mxu0 %v1436
      %v1822 = vpop.f32.mrb[0].mxu0
      %v1823 = vadd.f32 0.0, %v1822
      %v1824 = vpop.f32.mrb[0].mxu0
      %v1825 = vpop.f32.mrb[0].mxu0
      %v1826 = vadd.f32 0.0, %v1825
      %v1827 = vpop.f32.mrb[0].mxu0
      %1828 = vmatprep.mubr.bf16.mxu0 0
      %1829 = vmatmul.mubr.bf16.gmra.mrb[0].mxu0 %v1437
      %v1830 = vpop.f32.mrb[0].mxu0
      %v1831 = vadd.f32 0.0, %v1830
      %v1832 = vpop.f32.mrb[0].mxu0
      %v1833 = vpop.f32.mrb[0].mxu0
      %v1834 = vadd.f32 0.0, %v1833
      %v1835 = vpop.f32.mrb[0].mxu0
      %1836 = vmatprep.mubr.bf16.mxu0 0
      %1837 = vmatmul.mubr.bf16.gmra.mrb[0].mxu0 %v1438
      %v1838 = vpop.f32.mrb[0].mxu0
      %v1839 = vadd.f32 0.0, %v1838
      %v1840 = vpop.f32.mrb[0].mxu0
      %v1841 = vpop.f32.mrb[0].mxu0
      %v1842 = vadd.f32 0.0, %v1841
      %v1843 = vpop.f32.mrb[0].mxu0
      %1844 = vmatprep.mubr.bf16.mxu0 0
      %1845 = vmatmul.mubr.bf16.gmra.mrb[0].mxu0 %v1439
      %v1846 = vpop.f32.mrb[0].mxu0
      %v1847 = vadd.f32 0.0, %v1846
      %v1848 = vpop.f32.mrb[0].mxu0
      %v1849 = vpop.f32.mrb[0].mxu0
      %v1850 = vadd.f32 0.0, %v1849
      %v1851 = vpop.f32.mrb[0].mxu0
      %1852 = vmatprep.mubr.bf16.mxu0 0
      %1853 = vmatmul.mubr.bf16.gmra.mrb[0].mxu0 %v1440
      %v1854 = vpop.f32.mrb[0].mxu0
      %v1855 = vadd.f32 0.0, %v1854
      %v1856 = vpop.f32.mrb[0].mxu0
      %v1857 = vpop.f32.mrb[0].mxu0
      %v1858 = vadd.f32 0.0, %v1857
      %v1859 = vpop.f32.mrb[0].mxu0
      %1860 = vmatprep.mubr.bf16.mxu0 0
      %1861 = vmatmul.mubr.bf16.gmra.mrb[0].mxu0 %v1441
      %v1862 = vpop.f32.mrb[0].mxu0
      %v1863 = vadd.f32 0.0, %v1862
      %v1864 = vpop.f32.mrb[0].mxu0
      %v1865 = vpop.f32.mrb[0].mxu0
      %v1866 = vadd.f32 0.0, %v1865
      %v1867 = vpop.f32.mrb[0].mxu0
      %1868 = vmatprep.mubr.bf16.mxu0 0
      %1869 = vmatmul.mubr.bf16.gmra.mrb[0].mxu0 %v1442
      %v1870 = vpop.f32.mrb[0].mxu0
      %v1871 = vadd.f32 0.0, %v1870
      %v1872 = vpop.f32.mrb[0].mxu0
      %v1873 = vpop.f32.mrb[0].mxu0
      %v1874 = vadd.f32 0.0, %v1873
      %v1875 = vpop.f32.mrb[0].mxu0
      %1876 = vmatprep.mubr.bf16.mxu0 0
      %1877 = vmatmul.mubr.bf16.gmra.mrb[0].mxu0 %v1443
      %v1878 = vpop.f32.mrb[0].mxu0
      %v1879 = vadd.f32 0.0, %v1878
      %v1880 = vpop.f32.mrb[0].mxu0
      %v1881 = vpop.f32.mrb[0].mxu0
      %v1882 = vadd.f32 0.0, %v1881
      %v1883 = vpop.f32.mrb[0].mxu0
      %1884 = vmatprep.mubr.bf16.mxu0 0
      %1885 = vmatmul.mubr.bf16.gmra.mrb[0].mxu0 %v1444
      %v1886 = vpop.f32.mrb[0].mxu0
      %v1887 = vadd.f32 0.0, %v1886
      %v1888 = vpop.f32.mrb[0].mxu0
      %v1889 = vpop.f32.mrb[0].mxu0
      %v1890 = vadd.f32 0.0, %v1889
      %v1891 = vpop.f32.mrb[0].mxu0
      %1892 = vmatprep.mubr.bf16.mxu0 0
      %1893 = vmatmul.mubr.bf16.gmra.mrb[0].mxu0 %v1445
      %v1894 = vpop.f32.mrb[0].mxu0
      %v1895 = vadd.f32 0.0, %v1894
      %v1896 = vpop.f32.mrb[0].mxu0
      %v1897 = vpop.f32.mrb[0].mxu0
      %v1898 = vadd.f32 0.0, %v1897
      %v1899 = vpop.f32.mrb[0].mxu0
      %1900 = vmatprep.mubr.bf16.mxu0 0
      %1901 = vmatmul.mubr.bf16.gmra.mrb[0].mxu0 %v1446
      %v1902 = vpop.f32.mrb[0].mxu0
      %v1903 = vadd.f32 0.0, %v1902
      %v1904 = vpop.f32.mrb[0].mxu0
      %v1905 = vpop.f32.mrb[0].mxu0
      %v1906 = vadd.f32 0.0, %v1905
      %v1907 = vpop.f32.mrb[0].mxu0
      %1908 = vmatprep.mubr.bf16.mxu0 0
      %1909 = vmatmul.mubr.bf16.gmra.mrb[0].mxu0 %v1447
      %v1910 = vpop.f32.mrb[0].mxu0
      %v1911 = vadd.f32 0.0, %v1910
      %v1912 = vpop.f32.mrb[0].mxu0
      %v1913 = vpop.f32.mrb[0].mxu0
      %v1914 = vadd.f32 0.0, %v1913
      %v1915 = vpop.f32.mrb[0].mxu0
      %1916 = vmatprep.mubr.bf16.mxu0 0
      %1917 = vmatmul.mubr.bf16.gmra.mrb[0].mxu0 %v1448
      %v1918 = vpop.f32.mrb[0].mxu0
      %v1919 = vadd.f32 0.0, %v1918
      %v1920 = vpop.f32.mrb[0].mxu0
      %v1921 = vpop.f32.mrb[0].mxu0
      %v1922 = vadd.f32 0.0, %v1921
      %v1923 = vpop.f32.mrb[0].mxu0
      %1924 = vmatprep.mubr.bf16.mxu0 0
      %1925 = vmatmul.mubr.bf16.gmra.mrb[0].mxu0 %v1449
      %v1926 = vpop.f32.mrb[0].mxu0
      %v1927 = vadd.f32 0.0, %v1926
      %v1928 = vpop.f32.mrb[0].mxu0
      %v1929 = vpop.f32.mrb[0].mxu0
      %v1930 = vadd.f32 0.0, %v1929
      %v1931 = vpop.f32.mrb[0].mxu0
      %1932 = vmatprep.mubr.bf16.mxu0 0
      %1933 = vmatmul.mubr.bf16.gmra.mrb[0].mxu0 %v1450
      %v1934 = vpop.f32.mrb[0].mxu0
      %v1935 = vadd.f32 0.0, %v1934
      %v1936 = vpop.f32.mrb[0].mxu0
      %v1937 = vpop.f32.mrb[0].mxu0
      %v1938 = vadd.f32 0.0, %v1937
      %v1939 = vpop.f32.mrb[0].mxu0
      %1940 = vmatprep.mubr.bf16.mxu0 0
      %1941 = vmatmul.mubr.bf16.gmra.mrb[0].mxu0 %v1451
      %v1942 = vpop.f32.mrb[0].mxu0
      %v1943 = vadd.f32 0.0, %v1942
      %v1944 = vpop.f32.mrb[0].mxu0
      %v1945 = vpop.f32.mrb[0].mxu0
      %v1946 = vadd.f32 0.0, %v1945
      %v1947 = vpop.f32.mrb[0].mxu0
      %1948 = vmatprep.mubr.bf16.mxu0 0
      %1949 = vmatmul.mubr.bf16.gmra.mrb[0].mxu0 %v1452
      %v1950 = vpop.f32.mrb[0].mxu0
      %v1951 = vadd.f32 0.0, %v1950
      %v1952 = vpop.f32.mrb[0].mxu0
      %v1953 = vpop.f32.mrb[0].mxu0
      %v1954 = vadd.f32 0.0, %v1953
      %v1955 = vpop.f32.mrb[0].mxu0
      %1956 = vmatprep.mubr.bf16.mxu0 0
      %1957 = vmatmul.mubr.bf16.gmra.mrb[0].mxu0 %v1453
      %v1958 = vpop.f32.mrb[0].mxu0
      %v1959 = vadd.f32 0.0, %v1958
      %v1960 = vpop.f32.mrb[0].mxu0
      %v1961 = vpop.f32.mrb[0].mxu0
      %v1962 = vadd.f32 0.0, %v1961
      %v1963 = vpop.f32.mrb[0].mxu0
      %1964 = vmatprep.mubr.bf16.mxu0 0
      %1965 = vmatmul.mubr.bf16.gmra.mrb[0].mxu0 %v1454
      %v1966 = vpop.f32.mrb[0].mxu0
      %v1967 = vadd.f32 0.0, %v1966
      %v1968 = vpop.f32.mrb[0].mxu0
      %v1969 = vpop.f32.mrb[0].mxu0
      %v1970 = vadd.f32 0.0, %v1969
      %v1971 = vpop.f32.mrb[0].mxu0
      %1972 = vmatprep.mubr.bf16.mxu0 0
      %1973 = vmatmul.mubr.bf16.gmra.mrb[0].mxu0 %v1455
      %v1974 = vpop.f32.mrb[0].mxu0
      %v1975 = vadd.f32 0.0, %v1974
      %v1976 = vpop.f32.mrb[0].mxu0
      %v1977 = vpop.f32.mrb[0].mxu0
      %v1978 = vadd.f32 0.0, %v1977
      %v1979 = vpop.f32.mrb[0].mxu0
      %1980 = vmatprep.mubr.bf16.mxu0 0
      %1981 = vmatmul.mubr.bf16.gmra.mrb[0].mxu0 %v1456
      %v1982 = vpop.f32.mrb[0].mxu0
      %v1983 = vadd.f32 0.0, %v1982
      %v1984 = vpop.f32.mrb[0].mxu0
      %v1985 = vpop.f32.mrb[0].mxu0
      %v1986 = vadd.f32 0.0, %v1985
      %v1987 = vpop.f32.mrb[0].mxu0
      %1988 = vmatprep.mubr.bf16.mxu0 0
      %1989 = vmatmul.mubr.bf16.gmra.mrb[0].mxu0 %v1457
      %v1990 = vpop.f32.mrb[0].mxu0
      %v1991 = vadd.f32 0.0, %v1990
      %v1992 = vpop.f32.mrb[0].mxu0
      %v1993 = vpop.f32.mrb[0].mxu0
      %v1994 = vadd.f32 0.0, %v1993
      %v1995 = vpop.f32.mrb[0].mxu0
      %1996 = vmatprep.mubr.bf16.mxu0 0
      %1997 = vmatmul.mubr.bf16.gmra.mrb[0].mxu0 %v1458
      %v1998 = vpop.f32.mrb[0].mxu0
      %v1999 = vadd.f32 0.0, %v1998
      %v2000 = vpop.f32.mrb[0].mxu0
      %v2001 = vpop.f32.mrb[0].mxu0
      %v2002 = vadd.f32 0.0, %v2001
      %v2003 = vpop.f32.mrb[0].mxu0
      %2004 = vmatprep.mubr.bf16.mxu0 0
      %2005 = vmatmul.mubr.bf16.gmra.mrb[0].mxu0 %v1459
      %v2006 = vpop.f32.mrb[0].mxu0
      %v2007 = vadd.f32 0.0, %v2006
      %v2008 = vpop.f32.mrb[0].mxu0
      %v2009 = vpop.f32.mrb[0].mxu0
      %v2010 = vadd.f32 0.0, %v2009
      %v2011 = vpop.f32.mrb[0].mxu0
      %2012 = vmatprep.mubr.bf16.mxu0 0
      %2013 = vmatmul.mubr.bf16.gmra.mrb[0].mxu0 %v1460
      %v2014 = vpop.f32.mrb[0].mxu0
      %v2015 = vadd.f32 0.0, %v2014
      %v2016 = vpop.f32.mrb[0].mxu0
      %v2017 = vpop.f32.mrb[0].mxu0
      %v2018 = vadd.f32 0.0, %v2017
      %v2019 = vpop.f32.mrb[0].mxu0
      %2020 = vmatprep.mubr.bf16.mxu0 0
      %2021 = vmatmul.mubr.bf16.gmra.mrb[0].mxu0 %v1461
      %v2022 = vpop.f32.mrb[0].mxu0
      %v2023 = vadd.f32 0.0, %v2022
      %v2024 = vpop.f32.mrb[0].mxu0
      %v2025 = vpop.f32.mrb[0].mxu0
      %v2026 = vadd.f32 0.0, %v2025
      %v2027 = vpop.f32.mrb[0].mxu0
      %2028 = vmatprep.mubr.bf16.mxu0 0
      %2029 = vmatmul.mubr.bf16.gmra.mrb[0].mxu0 %v1462
      %v2030 = vpop.f32.mrb[0].mxu0
      %v2031 = vadd.f32 0.0, %v2030
      %v2032 = vpop.f32.mrb[0].mxu0
      %v2033 = vpop.f32.mrb[0].mxu0
      %v2034 = vadd.f32 0.0, %v2033
      %v2035 = vpop.f32.mrb[0].mxu0
      %2036 = vmatprep.mubr.bf16.mxu0 0
      %2037 = vmatmul.mubr.bf16.gmra.mrb[0].mxu0 %v1463
      %v2038 = vpop.f32.mrb[0].mxu0
      %v2039 = vadd.f32 0.0, %v2038
      %v2040 = vpop.f32.mrb[0].mxu0
      %v2041 = vpop.f32.mrb[0].mxu0
      %v2042 = vadd.f32 0.0, %v2041
      %v2043 = vpop.f32.mrb[0].mxu0
      %2044 = vmatprep.mubr.bf16.mxu0 0
      %2045 = vmatmul.mubr.bf16.gmra.mrb[0].mxu0 %v1464
      %v2046 = vpop.f32.mrb[0].mxu0
      %v2047 = vadd.f32 0.0, %v2046
      %v2048 = vpop.f32.mrb[0].mxu0
      %v2049 = vpop.f32.mrb[0].mxu0
      %v2050 = vadd.f32 0.0, %v2049
      %v2051 = vpop.f32.mrb[0].mxu0
      %2052 = vmatprep.mubr.bf16.mxu0 0
      %2053 = vmatmul.mubr.bf16.gmra.mrb[0].mxu0 %v1465
      %v2054 = vpop.f32.mrb[0].mxu0
      %v2055 = vadd.f32 0.0, %v2054
      %v2056 = vpop.f32.mrb[0].mxu0
      %v2057 = vpop.f32.mrb[0].mxu0
      %v2058 = vadd.f32 0.0, %v2057
      %v2059 = vpop.f32.mrb[0].mxu0
      %2060 = vmatprep.mubr.bf16.mxu0 0
      %2061 = vmatmul.mubr.bf16.gmra.mrb[0].mxu0 %v1466
      %v2062 = vpop.f32.mrb[0].mxu0
      %v2063 = vadd.f32 0.0, %v2062
      %v2064 = vpop.f32.mrb[0].mxu0
      %v2065 = vpop.f32.mrb[0].mxu0
      %v2066 = vadd.f32 0.0, %v2065
      %v2067 = vpop.f32.mrb[0].mxu0
      %2068 = vmatprep.mubr.bf16.mxu0 0
      %2069 = vmatmul.mubr.bf16.gmra.mrb[0].mxu0 %v1467
      %v2070 = vpop.f32.mrb[0].mxu0
      %v2071 = vadd.f32 0.0, %v2070
      %v2072 = vpop.f32.mrb[0].mxu0
      %v2073 = vpop.f32.mrb[0].mxu0
      %v2074 = vadd.f32 0.0, %v2073
      %v2075 = vpop.f32.mrb[0].mxu0
      %2076 = vdwg.mxu0
      %v2077 = vld [vmem:[#allocation2] sm:$0xff]
      %v2078 = vld [vmem:[#allocation2 + $0x8] sm:$0xff]
      %v2079 = vld [vmem:[#allocation2 + $0x10] sm:$0xff]
      %v2080 = vld [vmem:[#allocation2 + $0x18] sm:$0xff]
      %v2081 = vld [vmem:[#allocation2 + $0x20] sm:$0xff]
      %v2082 = vld [vmem:[#allocation2 + $0x28] sm:$0xff]
      %v2083 = vld [vmem:[#allocation2 + $0x30] sm:$0xff]
      %v2084 = vld [vmem:[#allocation2 + $0x38] sm:$0xff]
      %v2085 = vld [vmem:[#allocation2 + $0x40] sm:$0xff]
      %v2086 = vld [vmem:[#allocation2 + $0x48] sm:$0xff]
      %v2087 = vld [vmem:[#allocation2 + $0x50] sm:$0xff]
      %v2088 = vld [vmem:[#allocation2 + $0x58] sm:$0xff]
      %v2089 = vld [vmem:[#allocation2 + $0x60] sm:$0xff]
      %v2090 = vld [vmem:[#allocation2 + $0x68] sm:$0xff]
      %v2091 = vld [vmem:[#allocation2 + $0x70] sm:$0xff]
      %v2092 = vld [vmem:[#allocation2 + $0x78] sm:$0xff]
      %v2093 = vld [vmem:[#allocation2 + $0x80] sm:$0xff]
      %v2094 = vld [vmem:[#allocation2 + $0x88] sm:$0xff]
      %v2095 = vld [vmem:[#allocation2 + $0x90] sm:$0xff]
      %v2096 = vld [vmem:[#allocation2 + $0x98] sm:$0xff]
      %v2097 = vld [vmem:[#allocation2 + $0xa0] sm:$0xff]
      %v2098 = vld [vmem:[#allocation2 + $0xa8] sm:$0xff]
      %v2099 = vld [vmem:[#allocation2 + $0xb0] sm:$0xff]
      %v2100 = vld [vmem:[#allocation2 + $0xb8] sm:$0xff]
      %v2101 = vld [vmem:[#allocation2 + $0xc0] sm:$0xff]
      %v2102 = vld [vmem:[#allocation2 + $0xc8] sm:$0xff]
      %v2103 = vld [vmem:[#allocation2 + $0xd0] sm:$0xff]
      %v2104 = vld [vmem:[#allocation2 + $0xd8] sm:$0xff]
      %v2105 = vld [vmem:[#allocation2 + $0xe0] sm:$0xff]
      %v2106 = vld [vmem:[#allocation2 + $0xe8] sm:$0xff]
      %v2107 = vld [vmem:[#allocation2 + $0xf0] sm:$0xff]
      %v2108 = vld [vmem:[#allocation2 + $0xf8] sm:$0xff]
      %v2109 = vld [vmem:[#allocation2 + $0x100] sm:$0xff]
      %v2110 = vld [vmem:[#allocation2 + $0x108] sm:$0xff]
      %v2111 = vld [vmem:[#allocation2 + $0x110] sm:$0xff]
      %v2112 = vld [vmem:[#allocation2 + $0x118] sm:$0xff]
      %v2113 = vld [vmem:[#allocation2 + $0x120] sm:$0xff]
      %v2114 = vld [vmem:[#allocation2 + $0x128] sm:$0xff]
      %v2115 = vld [vmem:[#allocation2 + $0x130] sm:$0xff]
      %v2116 = vld [vmem:[#allocation2 + $0x138] sm:$0xff]
      %v2117 = vld [vmem:[#allocation2 + $0x140] sm:$0xff]
      %v2118 = vld [vmem:[#allocation2 + $0x148] sm:$0xff]
      %v2119 = vld [vmem:[#allocation2 + $0x150] sm:$0xff]
      %v2120 = vld [vmem:[#allocation2 + $0x158] sm:$0xff]
      %v2121 = vld [vmem:[#allocation2 + $0x160] sm:$0xff]
      %v2122 = vld [vmem:[#allocation2 + $0x168] sm:$0xff]
      %v2123 = vld [vmem:[#allocation2 + $0x170] sm:$0xff]
      %v2124 = vld [vmem:[#allocation2 + $0x178] sm:$0xff]
      %v2125 = vld [vmem:[#allocation2 + $0x180] sm:$0xff]
      %v2126 = vld [vmem:[#allocation2 + $0x188] sm:$0xff]
      %v2127 = vld [vmem:[#allocation2 + $0x190] sm:$0xff]
      %v2128 = vld [vmem:[#allocation2 + $0x198] sm:$0xff]
      %v2129 = vld [vmem:[#allocation2 + $0x1a0] sm:$0xff]
      %v2130 = vld [vmem:[#allocation2 + $0x1a8] sm:$0xff]
      %v2131 = vld [vmem:[#allocation2 + $0x1b0] sm:$0xff]
      %v2132 = vld [vmem:[#allocation2 + $0x1b8] sm:$0xff]
      %v2133 = vld [vmem:[#allocation2 + $0x1c0] sm:$0xff]
      %v2134 = vld [vmem:[#allocation2 + $0x1c8] sm:$0xff]
      %v2135 = vld [vmem:[#allocation2 + $0x1d0] sm:$0xff]
      %v2136 = vld [vmem:[#allocation2 + $0x1d8] sm:$0xff]
      %v2137 = vld [vmem:[#allocation2 + $0x1e0] sm:$0xff]
      %v2138 = vld [vmem:[#allocation2 + $0x1e8] sm:$0xff]
      %v2139 = vld [vmem:[#allocation2 + $0x1f0] sm:$0xff]
      %v2140 = vld [vmem:[#allocation2 + $0x1f8] sm:$0xff]
      %v2141 = vld [vmem:[#allocation2 + $0x200] sm:$0xff]
      %v2142 = vld [vmem:[#allocation2 + $0x208] sm:$0xff]
      %v2143 = vld [vmem:[#allocation2 + $0x210] sm:$0xff]
      %v2144 = vld [vmem:[#allocation2 + $0x218] sm:$0xff]
      %v2145 = vld [vmem:[#allocation2 + $0x220] sm:$0xff]
      %v2146 = vld [vmem:[#allocation2 + $0x228] sm:$0xff]
      %v2147 = vld [vmem:[#allocation2 + $0x230] sm:$0xff]
      %v2148 = vld [vmem:[#allocation2 + $0x238] sm:$0xff]
      %v2149 = vld [vmem:[#allocation2 + $0x240] sm:$0xff]
      %v2150 = vld [vmem:[#allocation2 + $0x248] sm:$0xff]
      %v2151 = vld [vmem:[#allocation2 + $0x250] sm:$0xff]
      %v2152 = vld [vmem:[#allocation2 + $0x258] sm:$0xff]
      %v2153 = vld [vmem:[#allocation2 + $0x260] sm:$0xff]
      %v2154 = vld [vmem:[#allocation2 + $0x268] sm:$0xff]
      %v2155 = vld [vmem:[#allocation2 + $0x270] sm:$0xff]
      %v2156 = vld [vmem:[#allocation2 + $0x278] sm:$0xff]
      %v2157 = vld [vmem:[#allocation2 + $0x280] sm:$0xff]
      %v2158 = vld [vmem:[#allocation2 + $0x288] sm:$0xff]
      %v2159 = vld [vmem:[#allocation2 + $0x290] sm:$0xff]
      %v2160 = vld [vmem:[#allocation2 + $0x298] sm:$0xff]
      %v2161 = vld [vmem:[#allocation2 + $0x2a0] sm:$0xff]
      %v2162 = vld [vmem:[#allocation2 + $0x2a8] sm:$0xff]
      %v2163 = vld [vmem:[#allocation2 + $0x2b0] sm:$0xff]
      %v2164 = vld [vmem:[#allocation2 + $0x2b8] sm:$0xff]
      %v2165 = vld [vmem:[#allocation2 + $0x2c0] sm:$0xff]
      %v2166 = vld [vmem:[#allocation2 + $0x2c8] sm:$0xff]
      %v2167 = vld [vmem:[#allocation2 + $0x2d0] sm:$0xff]
      %v2168 = vld [vmem:[#allocation2 + $0x2d8] sm:$0xff]
      %v2169 = vld [vmem:[#allocation2 + $0x2e0] sm:$0xff]
      %v2170 = vld [vmem:[#allocation2 + $0x2e8] sm:$0xff]
      %v2171 = vld [vmem:[#allocation2 + $0x2f0] sm:$0xff]
      %v2172 = vld [vmem:[#allocation2 + $0x2f8] sm:$0xff]
      %v2173 = vld [vmem:[#allocation2 + $0x300] sm:$0xff]
      %v2174 = vld [vmem:[#allocation2 + $0x308] sm:$0xff]
      %v2175 = vld [vmem:[#allocation2 + $0x310] sm:$0xff]
      %v2176 = vld [vmem:[#allocation2 + $0x318] sm:$0xff]
      %v2177 = vld [vmem:[#allocation2 + $0x320] sm:$0xff]
      %v2178 = vld [vmem:[#allocation2 + $0x328] sm:$0xff]
      %v2179 = vld [vmem:[#allocation2 + $0x330] sm:$0xff]
      %v2180 = vld [vmem:[#allocation2 + $0x338] sm:$0xff]
      %v2181 = vld [vmem:[#allocation2 + $0x340] sm:$0xff]
      %v2182 = vld [vmem:[#allocation2 + $0x348] sm:$0xff]
      %v2183 = vld [vmem:[#allocation2 + $0x350] sm:$0xff]
      %v2184 = vld [vmem:[#allocation2 + $0x358] sm:$0xff]
      %v2185 = vld [vmem:[#allocation2 + $0x360] sm:$0xff]
      %v2186 = vld [vmem:[#allocation2 + $0x368] sm:$0xff]
      %v2187 = vld [vmem:[#allocation2 + $0x370] sm:$0xff]
      %v2188 = vld [vmem:[#allocation2 + $0x378] sm:$0xff]
      %v2189 = vld [vmem:[#allocation2 + $0x380] sm:$0xff]
      %v2190 = vld [vmem:[#allocation2 + $0x388] sm:$0xff]
      %v2191 = vld [vmem:[#allocation2 + $0x390] sm:$0xff]
      %v2192 = vld [vmem:[#allocation2 + $0x398] sm:$0xff]
      %v2193 = vld [vmem:[#allocation2 + $0x3a0] sm:$0xff]
      %v2194 = vld [vmem:[#allocation2 + $0x3a8] sm:$0xff]
      %v2195 = vld [vmem:[#allocation2 + $0x3b0] sm:$0xff]
      %v2196 = vld [vmem:[#allocation2 + $0x3b8] sm:$0xff]
      %v2197 = vld [vmem:[#allocation2 + $0x3c0] sm:$0xff]
      %v2198 = vld [vmem:[#allocation2 + $0x3c8] sm:$0xff]
      %v2199 = vld [vmem:[#allocation2 + $0x3d0] sm:$0xff]
      %v2200 = vld [vmem:[#allocation2 + $0x3d8] sm:$0xff]
      %v2201 = vld [vmem:[#allocation2 + $0x3e0] sm:$0xff]
      %v2202 = vld [vmem:[#allocation2 + $0x3e8] sm:$0xff]
      %v2203 = vld [vmem:[#allocation2 + $0x3f0] sm:$0xff]
      %v2204 = vld [vmem:[#allocation2 + $0x3f8] sm:$0xff]
      %v2205 = vmax.f32 %v2077, %v1567
      %v2206 = vmax.f32 %v2078, %v1570
      %v2207 = vmax.f32 %v2079, %v1575
      %v2208 = vmax.f32 %v2080, %v1578
      %v2209 = vmax.f32 %v2081, %v1583
      %v2210 = vmax.f32 %v2082, %v1586
      %v2211 = vmax.f32 %v2083, %v1591
      %v2212 = vmax.f32 %v2084, %v1594
      %v2213 = vmax.f32 %v2085, %v1599
      %v2214 = vmax.f32 %v2086, %v1602
      %v2215 = vmax.f32 %v2087, %v1607
      %v2216 = vmax.f32 %v2088, %v1610
      %v2217 = vmax.f32 %v2089, %v1615
      %v2218 = vmax.f32 %v2090, %v1618
      %v2219 = vmax.f32 %v2091, %v1623
      %v2220 = vmax.f32 %v2092, %v1626
      %v2221 = vmax.f32 %v2093, %v1631
      %v2222 = vmax.f32 %v2094, %v1634
      %v2223 = vmax.f32 %v2095, %v1639
      %v2224 = vmax.f32 %v2096, %v1642
      %v2225 = vmax.f32 %v2097, %v1647
      %v2226 = vmax.f32 %v2098, %v1650
      %v2227 = vmax.f32 %v2099, %v1655
      %v2228 = vmax.f32 %v2100, %v1658
      %v2229 = vmax.f32 %v2101, %v1663
      %v2230 = vmax.f32 %v2102, %v1666
      %v2231 = vmax.f32 %v2103, %v1671
      %v2232 = vmax.f32 %v2104, %v1674
      %v2233 = vmax.f32 %v2105, %v1679
      %v2234 = vmax.f32 %v2106, %v1682
      %v2235 = vmax.f32 %v2107, %v1687
      %v2236 = vmax.f32 %v2108, %v1690
      %v2237 = vmax.f32 %v2109, %v1695
      %v2238 = vmax.f32 %v2110, %v1698
      %v2239 = vmax.f32 %v2111, %v1703
      %v2240 = vmax.f32 %v2112, %v1706
      %v2241 = vmax.f32 %v2113, %v1711
      %v2242 = vmax.f32 %v2114, %v1714
      %v2243 = vmax.f32 %v2115, %v1719
      %v2244 = vmax.f32 %v2116, %v1722
      %v2245 = vmax.f32 %v2117, %v1727
      %v2246 = vmax.f32 %v2118, %v1730
      %v2247 = vmax.f32 %v2119, %v1735
      %v2248 = vmax.f32 %v2120, %v1738
      %v2249 = vmax.f32 %v2121, %v1743
      %v2250 = vmax.f32 %v2122, %v1746
      %v2251 = vmax.f32 %v2123, %v1751
      %v2252 = vmax.f32 %v2124, %v1754
      %v2253 = vmax.f32 %v2125, %v1759
      %v2254 = vmax.f32 %v2126, %v1762
      %v2255 = vmax.f32 %v2127, %v1767
      %v2256 = vmax.f32 %v2128, %v1770
      %v2257 = vmax.f32 %v2129, %v1775
      %v2258 = vmax.f32 %v2130, %v1778
      %v2259 = vmax.f32 %v2131, %v1783
      %v2260 = vmax.f32 %v2132, %v1786
      %v2261 = vmax.f32 %v2133, %v1791
      %v2262 = vmax.f32 %v2134, %v1794
      %v2263 = vmax.f32 %v2135, %v1799
      %v2264 = vmax.f32 %v2136, %v1802
      %v2265 = vmax.f32 %v2137, %v1807
      %v2266 = vmax.f32 %v2138, %v1810
      %v2267 = vmax.f32 %v2139, %v1815
      %v2268 = vmax.f32 %v2140, %v1818
      %v2269 = vmax.f32 %v2141, %v1823
      %v2270 = vmax.f32 %v2142, %v1826
      %v2271 = vmax.f32 %v2143, %v1831
      %v2272 = vmax.f32 %v2144, %v1834
      %v2273 = vmax.f32 %v2145, %v1839
      %v2274 = vmax.f32 %v2146, %v1842
      %v2275 = vmax.f32 %v2147, %v1847
      %v2276 = vmax.f32 %v2148, %v1850
      %v2277 = vmax.f32 %v2149, %v1855
      %v2278 = vmax.f32 %v2150, %v1858
      %v2279 = vmax.f32 %v2151, %v1863
      %v2280 = vmax.f32 %v2152, %v1866
      %v2281 = vmax.f32 %v2153, %v1871
      %v2282 = vmax.f32 %v2154, %v1874
      %v2283 = vmax.f32 %v2155, %v1879
      %v2284 = vmax.f32 %v2156, %v1882
      %v2285 = vmax.f32 %v2157, %v1887
      %v2286 = vmax.f32 %v2158, %v1890
      %v2287 = vmax.f32 %v2159, %v1895
      %v2288 = vmax.f32 %v2160, %v1898
      %v2289 = vmax.f32 %v2161, %v1903
      %v2290 = vmax.f32 %v2162, %v1906
      %v2291 = vmax.f32 %v2163, %v1911
      %v2292 = vmax.f32 %v2164, %v1914
      %v2293 = vmax.f32 %v2165, %v1919
      %v2294 = vmax.f32 %v2166, %v1922
      %v2295 = vmax.f32 %v2167, %v1927
      %v2296 = vmax.f32 %v2168, %v1930
      %v2297 = vmax.f32 %v2169, %v1935
      %v2298 = vmax.f32 %v2170, %v1938
      %v2299 = vmax.f32 %v2171, %v1943
      %v2300 = vmax.f32 %v2172, %v1946
      %v2301 = vmax.f32 %v2173, %v1951
      %v2302 = vmax.f32 %v2174, %v1954
      %v2303 = vmax.f32 %v2175, %v1959
      %v2304 = vmax.f32 %v2176, %v1962
      %v2305 = vmax.f32 %v2177, %v1967
      %v2306 = vmax.f32 %v2178, %v1970
      %v2307 = vmax.f32 %v2179, %v1975
      %v2308 = vmax.f32 %v2180, %v1978
      %v2309 = vmax.f32 %v2181, %v1983
      %v2310 = vmax.f32 %v2182, %v1986
      %v2311 = vmax.f32 %v2183, %v1991
      %v2312 = vmax.f32 %v2184, %v1994
      %v2313 = vmax.f32 %v2185, %v1999
      %v2314 = vmax.f32 %v2186, %v2002
      %v2315 = vmax.f32 %v2187, %v2007
      %v2316 = vmax.f32 %v2188, %v2010
      %v2317 = vmax.f32 %v2189, %v2015
      %v2318 = vmax.f32 %v2190, %v2018
      %v2319 = vmax.f32 %v2191, %v2023
      %v2320 = vmax.f32 %v2192, %v2026
      %v2321 = vmax.f32 %v2193, %v2031
      %v2322 = vmax.f32 %v2194, %v2034
      %v2323 = vmax.f32 %v2195, %v2039
      %v2324 = vmax.f32 %v2196, %v2042
      %v2325 = vmax.f32 %v2197, %v2047
      %v2326 = vmax.f32 %v2198, %v2050
      %v2327 = vmax.f32 %v2199, %v2055
      %v2328 = vmax.f32 %v2200, %v2058
      %v2329 = vmax.f32 %v2201, %v2063
      %v2330 = vmax.f32 %v2202, %v2066
      %v2331 = vmax.f32 %v2203, %v2071
      %v2332 = vmax.f32 %v2204, %v2074
      %2333 = vst [vmem:[#allocation2] sm:$0xff] %v2205
      %2334 = vst [vmem:[#allocation2 + $0x8] sm:$0xff] %v2206
      %2335 = vst [vmem:[#allocation2 + $0x10] sm:$0xff] %v2207
      %2336 = vst [vmem:[#allocation2 + $0x18] sm:$0xff] %v2208
      %2337 = vst [vmem:[#allocation2 + $0x20] sm:$0xff] %v2209
      %2338 = vst [vmem:[#allocation2 + $0x28] sm:$0xff] %v2210
      %2339 = vst [vmem:[#allocation2 + $0x30] sm:$0xff] %v2211
      %2340 = vst [vmem:[#allocation2 + $0x38] sm:$0xff] %v2212
      %2341 = vst [vmem:[#allocation2 + $0x40] sm:$0xff] %v2213
      %2342 = vst [vmem:[#allocation2 + $0x48] sm:$0xff] %v2214
      %2343 = vst [vmem:[#allocation2 + $0x50] sm:$0xff] %v2215
      %2344 = vst [vmem:[#allocation2 + $0x58] sm:$0xff] %v2216
      %2345 = vst [vmem:[#allocation2 + $0x60] sm:$0xff] %v2217
      %2346 = vst [vmem:[#allocation2 + $0x68] sm:$0xff] %v2218
      %2347 = vst [vmem:[#allocation2 + $0x70] sm:$0xff] %v2219
      %2348 = vst [vmem:[#allocation2 + $0x78] sm:$0xff] %v2220
      %2349 = vst [vmem:[#allocation2 + $0x80] sm:$0xff] %v2221
      %2350 = vst [vmem:[#allocation2 + $0x88] sm:$0xff] %v2222
      %2351 = vst [vmem:[#allocation2 + $0x90] sm:$0xff] %v2223
      %2352 = vst [vmem:[#allocation2 + $0x98] sm:$0xff] %v2224
      %2353 = vst [vmem:[#allocation2 + $0xa0] sm:$0xff] %v2225
      %2354 = vst [vmem:[#allocation2 + $0xa8] sm:$0xff] %v2226
      %2355 = vst [vmem:[#allocation2 + $0xb0] sm:$0xff] %v2227
      %2356 = vst [vmem:[#allocation2 + $0xb8] sm:$0xff] %v2228
      %2357 = vst [vmem:[#allocation2 + $0xc0] sm:$0xff] %v2229
      %2358 = vst [vmem:[#allocation2 + $0xc8] sm:$0xff] %v2230
      %2359 = vst [vmem:[#allocation2 + $0xd0] sm:$0xff] %v2231
      %2360 = vst [vmem:[#allocation2 + $0xd8] sm:$0xff] %v2232
      %2361 = vst [vmem:[#allocation2 + $0xe0] sm:$0xff] %v2233
      %2362 = vst [vmem:[#allocation2 + $0xe8] sm:$0xff] %v2234
      %2363 = vst [vmem:[#allocation2 + $0xf0] sm:$0xff] %v2235
      %2364 = vst [vmem:[#allocation2 + $0xf8] sm:$0xff] %v2236
      %2365 = vst [vmem:[#allocation2 + $0x100] sm:$0xff] %v2237
      %2366 = vst [vmem:[#allocation2 + $0x108] sm:$0xff] %v2238
      %2367 = vst [vmem:[#allocation2 + $0x110] sm:$0xff] %v2239
      %2368 = vst [vmem:[#allocation2 + $0x118] sm:$0xff] %v2240
      %2369 = vst [vmem:[#allocation2 + $0x120] sm:$0xff] %v2241
      %2370 = vst [vmem:[#allocation2 + $0x128] sm:$0xff] %v2242
      %2371 = vst [vmem:[#allocation2 + $0x130] sm:$0xff] %v2243
      %2372 = vst [vmem:[#allocation2 + $0x138] sm:$0xff] %v2244
      %2373 = vst [vmem:[#allocation2 + $0x140] sm:$0xff] %v2245
      %2374 = vst [vmem:[#allocation2 + $0x148] sm:$0xff] %v2246
      %2375 = vst [vmem:[#allocation2 + $0x150] sm:$0xff] %v2247
      %2376 = vst [vmem:[#allocation2 + $0x158] sm:$0xff] %v2248
      %2377 = vst [vmem:[#allocation2 + $0x160] sm:$0xff] %v2249
      %2378 = vst [vmem:[#allocation2 + $0x168] sm:$0xff] %v2250
      %2379 = vst [vmem:[#allocation2 + $0x170] sm:$0xff] %v2251
      %2380 = vst [vmem:[#allocation2 + $0x178] sm:$0xff] %v2252
      %2381 = vst [vmem:[#allocation2 + $0x180] sm:$0xff] %v2253
      %2382 = vst [vmem:[#allocation2 + $0x188] sm:$0xff] %v2254
      %2383 = vst [vmem:[#allocation2 + $0x190] sm:$0xff] %v2255
      %2384 = vst [vmem:[#allocation2 + $0x198] sm:$0xff] %v2256
      %2385 = vst [vmem:[#allocation2 + $0x1a0] sm:$0xff] %v2257
      %2386 = vst [vmem:[#allocation2 + $0x1a8] sm:$0xff] %v2258
      %2387 = vst [vmem:[#allocation2 + $0x1b0] sm:$0xff] %v2259
      %2388 = vst [vmem:[#allocation2 + $0x1b8] sm:$0xff] %v2260
      %2389 = vst [vmem:[#allocation2 + $0x1c0] sm:$0xff] %v2261
      %2390 = vst [vmem:[#allocation2 + $0x1c8] sm:$0xff] %v2262
      %2391 = vst [vmem:[#allocation2 + $0x1d0] sm:$0xff] %v2263
      %2392 = vst [vmem:[#allocation2 + $0x1d8] sm:$0xff] %v2264
      %2393 = vst [vmem:[#allocation2 + $0x1e0] sm:$0xff] %v2265
      %2394 = vst [vmem:[#allocation2 + $0x1e8] sm:$0xff] %v2266
      %2395 = vst [vmem:[#allocation2 + $0x1f0] sm:$0xff] %v2267
      %2396 = vst [vmem:[#allocation2 + $0x1f8] sm:$0xff] %v2268
      %2397 = vst [vmem:[#allocation2 + $0x200] sm:$0xff] %v2269
      %2398 = vst [vmem:[#allocation2 + $0x208] sm:$0xff] %v2270
      %2399 = vst [vmem:[#allocation2 + $0x210] sm:$0xff] %v2271
      %2400 = vst [vmem:[#allocation2 + $0x218] sm:$0xff] %v2272
      %2401 = vst [vmem:[#allocation2 + $0x220] sm:$0xff] %v2273
      %2402 = vst [vmem:[#allocation2 + $0x228] sm:$0xff] %v2274
      %2403 = vst [vmem:[#allocation2 + $0x230] sm:$0xff] %v2275
      %2404 = vst [vmem:[#allocation2 + $0x238] sm:$0xff] %v2276
      %2405 = vst [vmem:[#allocation2 + $0x240] sm:$0xff] %v2277
      %2406 = vst [vmem:[#allocation2 + $0x248] sm:$0xff] %v2278
      %2407 = vst [vmem:[#allocation2 + $0x250] sm:$0xff] %v2279
      %2408 = vst [vmem:[#allocation2 + $0x258] sm:$0xff] %v2280
      %2409 = vst [vmem:[#allocation2 + $0x260] sm:$0xff] %v2281
      %2410 = vst [vmem:[#allocation2 + $0x268] sm:$0xff] %v2282
      %2411 = vst [vmem:[#allocation2 + $0x270] sm:$0xff] %v2283
      %2412 = vst [vmem:[#allocation2 + $0x278] sm:$0xff] %v2284
      %2413 = vst [vmem:[#allocation2 + $0x280] sm:$0xff] %v2285
      %2414 = vst [vmem:[#allocation2 + $0x288] sm:$0xff] %v2286
      %2415 = vst [vmem:[#allocation2 + $0x290] sm:$0xff] %v2287
      %2416 = vst [vmem:[#allocation2 + $0x298] sm:$0xff] %v2288
      %2417 = vst [vmem:[#allocation2 + $0x2a0] sm:$0xff] %v2289
      %2418 = vst [vmem:[#allocation2 + $0x2a8] sm:$0xff] %v2290
      %2419 = vst [vmem:[#allocation2 + $0x2b0] sm:$0xff] %v2291
      %2420 = vst [vmem:[#allocation2 + $0x2b8] sm:$0xff] %v2292
      %2421 = vst [vmem:[#allocation2 + $0x2c0] sm:$0xff] %v2293
      %2422 = vst [vmem:[#allocation2 + $0x2c8] sm:$0xff] %v2294
      %2423 = vst [vmem:[#allocation2 + $0x2d0] sm:$0xff] %v2295
      %2424 = vst [vmem:[#allocation2 + $0x2d8] sm:$0xff] %v2296
      %2425 = vst [vmem:[#allocation2 + $0x2e0] sm:$0xff] %v2297
      %2426 = vst [vmem:[#allocation2 + $0x2e8] sm:$0xff] %v2298
      %2427 = vst [vmem:[#allocation2 + $0x2f0] sm:$0xff] %v2299
      %2428 = vst [vmem:[#allocation2 + $0x2f8] sm:$0xff] %v2300
      %2429 = vst [vmem:[#allocation2 + $0x300] sm:$0xff] %v2301
      %2430 = vst [vmem:[#allocation2 + $0x308] sm:$0xff] %v2302
      %2431 = vst [vmem:[#allocation2 + $0x310] sm:$0xff] %v2303
      %2432 = vst [vmem:[#allocation2 + $0x318] sm:$0xff] %v2304
      %2433 = vst [vmem:[#allocation2 + $0x320] sm:$0xff] %v2305
      %2434 = vst [vmem:[#allocation2 + $0x328] sm:$0xff] %v2306
      %2435 = vst [vmem:[#allocation2 + $0x330] sm:$0xff] %v2307
      %2436 = vst [vmem:[#allocation2 + $0x338] sm:$0xff] %v2308
      %2437 = vst [vmem:[#allocation2 + $0x340] sm:$0xff] %v2309
      %2438 = vst [vmem:[#allocation2 + $0x348] sm:$0xff] %v2310
      %2439 = vst [vmem:[#allocation2 + $0x350] sm:$0xff] %v2311
      %2440 = vst [vmem:[#allocation2 + $0x358] sm:$0xff] %v2312
      %2441 = vst [vmem:[#allocation2 + $0x360] sm:$0xff] %v2313
      %2442 = vst [vmem:[#allocation2 + $0x368] sm:$0xff] %v2314
      %2443 = vst [vmem:[#allocation2 + $0x370] sm:$0xff] %v2315
      %2444 = vst [vmem:[#allocation2 + $0x378] sm:$0xff] %v2316
      %2445 = vst [vmem:[#allocation2 + $0x380] sm:$0xff] %v2317
      %2446 = vst [vmem:[#allocation2 + $0x388] sm:$0xff] %v2318
      %2447 = vst [vmem:[#allocation2 + $0x390] sm:$0xff] %v2319
      %2448 = vst [vmem:[#allocation2 + $0x398] sm:$0xff] %v2320
      %2449 = vst [vmem:[#allocation2 + $0x3a0] sm:$0xff] %v2321
      %2450 = vst [vmem:[#allocation2 + $0x3a8] sm:$0xff] %v2322
      %2451 = vst [vmem:[#allocation2 + $0x3b0] sm:$0xff] %v2323
      %2452 = vst [vmem:[#allocation2 + $0x3b8] sm:$0xff] %v2324
      %2453 = vst [vmem:[#allocation2 + $0x3c0] sm:$0xff] %v2325
      %2454 = vst [vmem:[#allocation2 + $0x3c8] sm:$0xff] %v2326
      %2455 = vst [vmem:[#allocation2 + $0x3d0] sm:$0xff] %v2327
      %2456 = vst [vmem:[#allocation2 + $0x3d8] sm:$0xff] %v2328
      %2457 = vst [vmem:[#allocation2 + $0x3e0] sm:$0xff] %v2329
      %2458 = vst [vmem:[#allocation2 + $0x3e8] sm:$0xff] %v2330
      %2459 = vst [vmem:[#allocation2 + $0x3f0] sm:$0xff] %v2331
      %2460 = vst [vmem:[#allocation2 + $0x3f8] sm:$0xff] %v2332
      // Predicated region
      $region49: #{tpu_custom_call.1} parent=43 // pred_check
        %p2461 = pneg %p338
      $region50: #{tpu_custom_call.1} parent=43 // pred_check_branch
        %2463 = sbr.rel (%p2461) target = $region52
      $region51: #{tpu_custom_call.1} parent=43 // pred_region
        %v2464 = vld [vmem:[#allocation2] sm:$0xff]
        %v2465 = vld [vmem:[#allocation2 + $0x8] sm:$0xff]
        %v2466 = vld [vmem:[#allocation2 + $0x10] sm:$0xff]
        %v2467 = vld [vmem:[#allocation2 + $0x18] sm:$0xff]
        %v2468 = vld [vmem:[#allocation2 + $0x20] sm:$0xff]
        %v2469 = vld [vmem:[#allocation2 + $0x28] sm:$0xff]
        %v2470 = vld [vmem:[#allocation2 + $0x30] sm:$0xff]
        %v2471 = vld [vmem:[#allocation2 + $0x38] sm:$0xff]
        %v2472 = vld [vmem:[#allocation2 + $0x40] sm:$0xff]
        %v2473 = vld [vmem:[#allocation2 + $0x48] sm:$0xff]
        %v2474 = vld [vmem:[#allocation2 + $0x50] sm:$0xff]
        %v2475 = vld [vmem:[#allocation2 + $0x58] sm:$0xff]
        %v2476 = vld [vmem:[#allocation2 + $0x60] sm:$0xff]
        %v2477 = vld [vmem:[#allocation2 + $0x68] sm:$0xff]
        %v2478 = vld [vmem:[#allocation2 + $0x70] sm:$0xff]
        %v2479 = vld [vmem:[#allocation2 + $0x78] sm:$0xff]
        %v2480 = vld [vmem:[#allocation2 + $0x80] sm:$0xff]
        %v2481 = vld [vmem:[#allocation2 + $0x88] sm:$0xff]
        %v2482 = vld [vmem:[#allocation2 + $0x90] sm:$0xff]
        %v2483 = vld [vmem:[#allocation2 + $0x98] sm:$0xff]
        %v2484 = vld [vmem:[#allocation2 + $0xa0] sm:$0xff]
        %v2485 = vld [vmem:[#allocation2 + $0xa8] sm:$0xff]
        %v2486 = vld [vmem:[#allocation2 + $0xb0] sm:$0xff]
        %v2487 = vld [vmem:[#allocation2 + $0xb8] sm:$0xff]
        %v2488 = vld [vmem:[#allocation2 + $0xc0] sm:$0xff]
        %v2489 = vld [vmem:[#allocation2 + $0xc8] sm:$0xff]
        %v2490 = vld [vmem:[#allocation2 + $0xd0] sm:$0xff]
        %v2491 = vld [vmem:[#allocation2 + $0xd8] sm:$0xff]
        %v2492 = vld [vmem:[#allocation2 + $0xe0] sm:$0xff]
        %v2493 = vld [vmem:[#allocation2 + $0xe8] sm:$0xff]
        %v2494 = vld [vmem:[#allocation2 + $0xf0] sm:$0xff]
        %v2495 = vld [vmem:[#allocation2 + $0xf8] sm:$0xff]
        %v2496 = vld [vmem:[#allocation2 + $0x100] sm:$0xff]
        %v2497 = vld [vmem:[#allocation2 + $0x108] sm:$0xff]
        %v2498 = vld [vmem:[#allocation2 + $0x110] sm:$0xff]
        %v2499 = vld [vmem:[#allocation2 + $0x118] sm:$0xff]
        %v2500 = vld [vmem:[#allocation2 + $0x120] sm:$0xff]
        %v2501 = vld [vmem:[#allocation2 + $0x128] sm:$0xff]
        %v2502 = vld [vmem:[#allocation2 + $0x130] sm:$0xff]
        %v2503 = vld [vmem:[#allocation2 + $0x138] sm:$0xff]
        %v2504 = vld [vmem:[#allocation2 + $0x140] sm:$0xff]
        %v2505 = vld [vmem:[#allocation2 + $0x148] sm:$0xff]
        %v2506 = vld [vmem:[#allocation2 + $0x150] sm:$0xff]
        %v2507 = vld [vmem:[#allocation2 + $0x158] sm:$0xff]
        %v2508 = vld [vmem:[#allocation2 + $0x160] sm:$0xff]
        %v2509 = vld [vmem:[#allocation2 + $0x168] sm:$0xff]
        %v2510 = vld [vmem:[#allocation2 + $0x170] sm:$0xff]
        %v2511 = vld [vmem:[#allocation2 + $0x178] sm:$0xff]
        %v2512 = vld [vmem:[#allocation2 + $0x180] sm:$0xff]
        %v2513 = vld [vmem:[#allocation2 + $0x188] sm:$0xff]
        %v2514 = vld [vmem:[#allocation2 + $0x190] sm:$0xff]
        %v2515 = vld [vmem:[#allocation2 + $0x198] sm:$0xff]
        %v2516 = vld [vmem:[#allocation2 + $0x1a0] sm:$0xff]
        %v2517 = vld [vmem:[#allocation2 + $0x1a8] sm:$0xff]
        %v2518 = vld [vmem:[#allocation2 + $0x1b0] sm:$0xff]
        %v2519 = vld [vmem:[#allocation2 + $0x1b8] sm:$0xff]
        %v2520 = vld [vmem:[#allocation2 + $0x1c0] sm:$0xff]
        %v2521 = vld [vmem:[#allocation2 + $0x1c8] sm:$0xff]
        %v2522 = vld [vmem:[#allocation2 + $0x1d0] sm:$0xff]
        %v2523 = vld [vmem:[#allocation2 + $0x1d8] sm:$0xff]
        %v2524 = vld [vmem:[#allocation2 + $0x1e0] sm:$0xff]
        %v2525 = vld [vmem:[#allocation2 + $0x1e8] sm:$0xff]
        %v2526 = vld [vmem:[#allocation2 + $0x1f0] sm:$0xff]
        %v2527 = vld [vmem:[#allocation2 + $0x1f8] sm:$0xff]
        %v2528 = vld [vmem:[#allocation2 + $0x200] sm:$0xff]
        %v2529 = vld [vmem:[#allocation2 + $0x208] sm:$0xff]
        %v2530 = vld [vmem:[#allocation2 + $0x210] sm:$0xff]
        %v2531 = vld [vmem:[#allocation2 + $0x218] sm:$0xff]
        %v2532 = vld [vmem:[#allocation2 + $0x220] sm:$0xff]
        %v2533 = vld [vmem:[#allocation2 + $0x228] sm:$0xff]
        %v2534 = vld [vmem:[#allocation2 + $0x230] sm:$0xff]
        %v2535 = vld [vmem:[#allocation2 + $0x238] sm:$0xff]
        %v2536 = vld [vmem:[#allocation2 + $0x240] sm:$0xff]
        %v2537 = vld [vmem:[#allocation2 + $0x248] sm:$0xff]
        %v2538 = vld [vmem:[#allocation2 + $0x250] sm:$0xff]
        %v2539 = vld [vmem:[#allocation2 + $0x258] sm:$0xff]
        %v2540 = vld [vmem:[#allocation2 + $0x260] sm:$0xff]
        %v2541 = vld [vmem:[#allocation2 + $0x268] sm:$0xff]
        %v2542 = vld [vmem:[#allocation2 + $0x270] sm:$0xff]
        %v2543 = vld [vmem:[#allocation2 + $0x278] sm:$0xff]
        %v2544 = vld [vmem:[#allocation2 + $0x280] sm:$0xff]
        %v2545 = vld [vmem:[#allocation2 + $0x288] sm:$0xff]
        %v2546 = vld [vmem:[#allocation2 + $0x290] sm:$0xff]
        %v2547 = vld [vmem:[#allocation2 + $0x298] sm:$0xff]
        %v2548 = vld [vmem:[#allocation2 + $0x2a0] sm:$0xff]
        %v2549 = vld [vmem:[#allocation2 + $0x2a8] sm:$0xff]
        %v2550 = vld [vmem:[#allocation2 + $0x2b0] sm:$0xff]
        %v2551 = vld [vmem:[#allocation2 + $0x2b8] sm:$0xff]
        %v2552 = vld [vmem:[#allocation2 + $0x2c0] sm:$0xff]
        %v2553 = vld [vmem:[#allocation2 + $0x2c8] sm:$0xff]
        %v2554 = vld [vmem:[#allocation2 + $0x2d0] sm:$0xff]
        %v2555 = vld [vmem:[#allocation2 + $0x2d8] sm:$0xff]
        %v2556 = vld [vmem:[#allocation2 + $0x2e0] sm:$0xff]
        %v2557 = vld [vmem:[#allocation2 + $0x2e8] sm:$0xff]
        %v2558 = vld [vmem:[#allocation2 + $0x2f0] sm:$0xff]
        %v2559 = vld [vmem:[#allocation2 + $0x2f8] sm:$0xff]
        %v2560 = vld [vmem:[#allocation2 + $0x300] sm:$0xff]
        %v2561 = vld [vmem:[#allocation2 + $0x308] sm:$0xff]
        %v2562 = vld [vmem:[#allocation2 + $0x310] sm:$0xff]
        %v2563 = vld [vmem:[#allocation2 + $0x318] sm:$0xff]
        %v2564 = vld [vmem:[#allocation2 + $0x320] sm:$0xff]
        %v2565 = vld [vmem:[#allocation2 + $0x328] sm:$0xff]
        %v2566 = vld [vmem:[#allocation2 + $0x330] sm:$0xff]
        %v2567 = vld [vmem:[#allocation2 + $0x338] sm:$0xff]
        %v2568 = vld [vmem:[#allocation2 + $0x340] sm:$0xff]
        %v2569 = vld [vmem:[#allocation2 + $0x348] sm:$0xff]
        %v2570 = vld [vmem:[#allocation2 + $0x350] sm:$0xff]
        %v2571 = vld [vmem:[#allocation2 + $0x358] sm:$0xff]
        %v2572 = vld [vmem:[#allocation2 + $0x360] sm:$0xff]
        %v2573 = vld [vmem:[#allocation2 + $0x368] sm:$0xff]
        %v2574 = vld [vmem:[#allocation2 + $0x370] sm:$0xff]
        %v2575 = vld [vmem:[#allocation2 + $0x378] sm:$0xff]
        %v2576 = vld [vmem:[#allocation2 + $0x380] sm:$0xff]
        %v2577 = vld [vmem:[#allocation2 + $0x388] sm:$0xff]
        %v2578 = vld [vmem:[#allocation2 + $0x390] sm:$0xff]
        %v2579 = vld [vmem:[#allocation2 + $0x398] sm:$0xff]
        %v2580 = vld [vmem:[#allocation2 + $0x3a0] sm:$0xff]
        %v2581 = vld [vmem:[#allocation2 + $0x3a8] sm:$0xff]
        %v2582 = vld [vmem:[#allocation2 + $0x3b0] sm:$0xff]
        %v2583 = vld [vmem:[#allocation2 + $0x3b8] sm:$0xff]
        %v2584 = vld [vmem:[#allocation2 + $0x3c0] sm:$0xff]
        %v2585 = vld [vmem:[#allocation2 + $0x3c8] sm:$0xff]
        %v2586 = vld [vmem:[#allocation2 + $0x3d0] sm:$0xff]
        %v2587 = vld [vmem:[#allocation2 + $0x3d8] sm:$0xff]
        %v2588 = vld [vmem:[#allocation2 + $0x3e0] sm:$0xff]
        %v2589 = vld [vmem:[#allocation2 + $0x3e8] sm:$0xff]
        %v2590 = vld [vmem:[#allocation2 + $0x3f0] sm:$0xff]
        %v2591 = vld [vmem:[#allocation2 + $0x3f8] sm:$0xff]
        %2592 = vmax.xlane.f32.xlu0 %v2464
        %v2593 = vpop.xlane.xlu0 %2592
        %2594 = vmax.xlane.f32.xlu0 %v2465
        %v2595 = vpop.xlane.xlu0 %2594
        %2596 = vmax.xlane.f32.xlu0 %v2466
        %v2597 = vpop.xlane.xlu0 %2596
        %2598 = vmax.xlane.f32.xlu0 %v2467
        %v2599 = vpop.xlane.xlu0 %2598
        %2600 = vmax.xlane.f32.xlu0 %v2468
        %v2601 = vpop.xlane.xlu0 %2600
        %2602 = vmax.xlane.f32.xlu0 %v2469
        %v2603 = vpop.xlane.xlu0 %2602
        %2604 = vmax.xlane.f32.xlu0 %v2470
        %v2605 = vpop.xlane.xlu0 %2604
        %2606 = vmax.xlane.f32.xlu0 %v2471
        %v2607 = vpop.xlane.xlu0 %2606
        %2608 = vmax.xlane.f32.xlu0 %v2472
        %v2609 = vpop.xlane.xlu0 %2608
        %2610 = vmax.xlane.f32.xlu0 %v2473
        %v2611 = vpop.xlane.xlu0 %2610
        %2612 = vmax.xlane.f32.xlu0 %v2474
        %v2613 = vpop.xlane.xlu0 %2612
        %2614 = vmax.xlane.f32.xlu0 %v2475
        %v2615 = vpop.xlane.xlu0 %2614
        %2616 = vmax.xlane.f32.xlu0 %v2476
        %v2617 = vpop.xlane.xlu0 %2616
        %2618 = vmax.xlane.f32.xlu0 %v2477
        %v2619 = vpop.xlane.xlu0 %2618
        %2620 = vmax.xlane.f32.xlu0 %v2478
        %v2621 = vpop.xlane.xlu0 %2620
        %2622 = vmax.xlane.f32.xlu0 %v2479
        %v2623 = vpop.xlane.xlu0 %2622
        %2624 = vmax.xlane.f32.xlu0 %v2480
        %v2625 = vpop.xlane.xlu0 %2624
        %2626 = vmax.xlane.f32.xlu0 %v2481
        %v2627 = vpop.xlane.xlu0 %2626
        %2628 = vmax.xlane.f32.xlu0 %v2482
        %v2629 = vpop.xlane.xlu0 %2628
        %2630 = vmax.xlane.f32.xlu0 %v2483
        %v2631 = vpop.xlane.xlu0 %2630
        %2632 = vmax.xlane.f32.xlu0 %v2484
        %v2633 = vpop.xlane.xlu0 %2632
        %2634 = vmax.xlane.f32.xlu0 %v2485
        %v2635 = vpop.xlane.xlu0 %2634
        %2636 = vmax.xlane.f32.xlu0 %v2486
        %v2637 = vpop.xlane.xlu0 %2636
        %2638 = vmax.xlane.f32.xlu0 %v2487
        %v2639 = vpop.xlane.xlu0 %2638
        %2640 = vmax.xlane.f32.xlu0 %v2488
        %v2641 = vpop.xlane.xlu0 %2640
        %2642 = vmax.xlane.f32.xlu0 %v2489
        %v2643 = vpop.xlane.xlu0 %2642
        %2644 = vmax.xlane.f32.xlu0 %v2490
        %v2645 = vpop.xlane.xlu0 %2644
        %2646 = vmax.xlane.f32.xlu0 %v2491
        %v2647 = vpop.xlane.xlu0 %2646
        %2648 = vmax.xlane.f32.xlu0 %v2492
        %v2649 = vpop.xlane.xlu0 %2648
        %2650 = vmax.xlane.f32.xlu0 %v2493
        %v2651 = vpop.xlane.xlu0 %2650
        %2652 = vmax.xlane.f32.xlu0 %v2494
        %v2653 = vpop.xlane.xlu0 %2652
        %2654 = vmax.xlane.f32.xlu0 %v2495
        %v2655 = vpop.xlane.xlu0 %2654
        %2656 = vmax.xlane.f32.xlu0 %v2496
        %v2657 = vpop.xlane.xlu0 %2656
        %2658 = vmax.xlane.f32.xlu0 %v2497
        %v2659 = vpop.xlane.xlu0 %2658
        %2660 = vmax.xlane.f32.xlu0 %v2498
        %v2661 = vpop.xlane.xlu0 %2660
        %2662 = vmax.xlane.f32.xlu0 %v2499
        %v2663 = vpop.xlane.xlu0 %2662
        %2664 = vmax.xlane.f32.xlu0 %v2500
        %v2665 = vpop.xlane.xlu0 %2664
        %2666 = vmax.xlane.f32.xlu0 %v2501
        %v2667 = vpop.xlane.xlu0 %2666
        %2668 = vmax.xlane.f32.xlu0 %v2502
        %v2669 = vpop.xlane.xlu0 %2668
        %2670 = vmax.xlane.f32.xlu0 %v2503
        %v2671 = vpop.xlane.xlu0 %2670
        %2672 = vmax.xlane.f32.xlu0 %v2504
        %v2673 = vpop.xlane.xlu0 %2672
        %2674 = vmax.xlane.f32.xlu0 %v2505
        %v2675 = vpop.xlane.xlu0 %2674
        %2676 = vmax.xlane.f32.xlu0 %v2506
        %v2677 = vpop.xlane.xlu0 %2676
        %2678 = vmax.xlane.f32.xlu0 %v2507
        %v2679 = vpop.xlane.xlu0 %2678
        %2680 = vmax.xlane.f32.xlu0 %v2508
        %v2681 = vpop.xlane.xlu0 %2680
        %2682 = vmax.xlane.f32.xlu0 %v2509
        %v2683 = vpop.xlane.xlu0 %2682
        %2684 = vmax.xlane.f32.xlu0 %v2510
        %v2685 = vpop.xlane.xlu0 %2684
        %2686 = vmax.xlane.f32.xlu0 %v2511
        %v2687 = vpop.xlane.xlu0 %2686
        %2688 = vmax.xlane.f32.xlu0 %v2512
        %v2689 = vpop.xlane.xlu0 %2688
        %2690 = vmax.xlane.f32.xlu0 %v2513
        %v2691 = vpop.xlane.xlu0 %2690
        %2692 = vmax.xlane.f32.xlu0 %v2514
        %v2693 = vpop.xlane.xlu0 %2692
        %2694 = vmax.xlane.f32.xlu0 %v2515
        %v2695 = vpop.xlane.xlu0 %2694
        %2696 = vmax.xlane.f32.xlu0 %v2516
        %v2697 = vpop.xlane.xlu0 %2696
        %2698 = vmax.xlane.f32.xlu0 %v2517
        %v2699 = vpop.xlane.xlu0 %2698
        %2700 = vmax.xlane.f32.xlu0 %v2518
        %v2701 = vpop.xlane.xlu0 %2700
        %2702 = vmax.xlane.f32.xlu0 %v2519
        %v2703 = vpop.xlane.xlu0 %2702
        %2704 = vmax.xlane.f32.xlu0 %v2520
        %v2705 = vpop.xlane.xlu0 %2704
        %2706 = vmax.xlane.f32.xlu0 %v2521
        %v2707 = vpop.xlane.xlu0 %2706
        %2708 = vmax.xlane.f32.xlu0 %v2522
        %v2709 = vpop.xlane.xlu0 %2708
        %2710 = vmax.xlane.f32.xlu0 %v2523
        %v2711 = vpop.xlane.xlu0 %2710
        %2712 = vmax.xlane.f32.xlu0 %v2524
        %v2713 = vpop.xlane.xlu0 %2712
        %2714 = vmax.xlane.f32.xlu0 %v2525
        %v2715 = vpop.xlane.xlu0 %2714
        %2716 = vmax.xlane.f32.xlu0 %v2526
        %v2717 = vpop.xlane.xlu0 %2716
        %2718 = vmax.xlane.f32.xlu0 %v2527
        %v2719 = vpop.xlane.xlu0 %2718
        %2720 = vmax.xlane.f32.xlu0 %v2528
        %v2721 = vpop.xlane.xlu0 %2720
        %2722 = vmax.xlane.f32.xlu0 %v2529
        %v2723 = vpop.xlane.xlu0 %2722
        %2724 = vmax.xlane.f32.xlu0 %v2530
        %v2725 = vpop.xlane.xlu0 %2724
        %2726 = vmax.xlane.f32.xlu0 %v2531
        %v2727 = vpop.xlane.xlu0 %2726
        %2728 = vmax.xlane.f32.xlu0 %v2532
        %v2729 = vpop.xlane.xlu0 %2728
        %2730 = vmax.xlane.f32.xlu0 %v2533
        %v2731 = vpop.xlane.xlu0 %2730
        %2732 = vmax.xlane.f32.xlu0 %v2534
        %v2733 = vpop.xlane.xlu0 %2732
        %2734 = vmax.xlane.f32.xlu0 %v2535
        %v2735 = vpop.xlane.xlu0 %2734
        %2736 = vmax.xlane.f32.xlu0 %v2536
        %v2737 = vpop.xlane.xlu0 %2736
        %2738 = vmax.xlane.f32.xlu0 %v2537
        %v2739 = vpop.xlane.xlu0 %2738
        %2740 = vmax.xlane.f32.xlu0 %v2538
        %v2741 = vpop.xlane.xlu0 %2740
        %2742 = vmax.xlane.f32.xlu0 %v2539
        %v2743 = vpop.xlane.xlu0 %2742
        %2744 = vmax.xlane.f32.xlu0 %v2540
        %v2745 = vpop.xlane.xlu0 %2744
        %2746 = vmax.xlane.f32.xlu0 %v2541
        %v2747 = vpop.xlane.xlu0 %2746
        %2748 = vmax.xlane.f32.xlu0 %v2542
        %v2749 = vpop.xlane.xlu0 %2748
        %2750 = vmax.xlane.f32.xlu0 %v2543
        %v2751 = vpop.xlane.xlu0 %2750
        %2752 = vmax.xlane.f32.xlu0 %v2544
        %v2753 = vpop.xlane.xlu0 %2752
        %2754 = vmax.xlane.f32.xlu0 %v2545
        %v2755 = vpop.xlane.xlu0 %2754
        %2756 = vmax.xlane.f32.xlu0 %v2546
        %v2757 = vpop.xlane.xlu0 %2756
        %2758 = vmax.xlane.f32.xlu0 %v2547
        %v2759 = vpop.xlane.xlu0 %2758
        %2760 = vmax.xlane.f32.xlu0 %v2548
        %v2761 = vpop.xlane.xlu0 %2760
        %2762 = vmax.xlane.f32.xlu0 %v2549
        %v2763 = vpop.xlane.xlu0 %2762
        %2764 = vmax.xlane.f32.xlu0 %v2550
        %v2765 = vpop.xlane.xlu0 %2764
        %2766 = vmax.xlane.f32.xlu0 %v2551
        %v2767 = vpop.xlane.xlu0 %2766
        %2768 = vmax.xlane.f32.xlu0 %v2552
        %v2769 = vpop.xlane.xlu0 %2768
        %2770 = vmax.xlane.f32.xlu0 %v2553
        %v2771 = vpop.xlane.xlu0 %2770
        %2772 = vmax.xlane.f32.xlu0 %v2554
        %v2773 = vpop.xlane.xlu0 %2772
        %2774 = vmax.xlane.f32.xlu0 %v2555
        %v2775 = vpop.xlane.xlu0 %2774
        %2776 = vmax.xlane.f32.xlu0 %v2556
        %v2777 = vpop.xlane.xlu0 %2776
        %2778 = vmax.xlane.f32.xlu0 %v2557
        %v2779 = vpop.xlane.xlu0 %2778
        %2780 = vmax.xlane.f32.xlu0 %v2558
        %v2781 = vpop.xlane.xlu0 %2780
        %2782 = vmax.xlane.f32.xlu0 %v2559
        %v2783 = vpop.xlane.xlu0 %2782
        %2784 = vmax.xlane.f32.xlu0 %v2560
        %v2785 = vpop.xlane.xlu0 %2784
        %2786 = vmax.xlane.f32.xlu0 %v2561
        %v2787 = vpop.xlane.xlu0 %2786
        %2788 = vmax.xlane.f32.xlu0 %v2562
        %v2789 = vpop.xlane.xlu0 %2788
        %2790 = vmax.xlane.f32.xlu0 %v2563
        %v2791 = vpop.xlane.xlu0 %2790
        %2792 = vmax.xlane.f32.xlu0 %v2564
        %v2793 = vpop.xlane.xlu0 %2792
        %2794 = vmax.xlane.f32.xlu0 %v2565
        %v2795 = vpop.xlane.xlu0 %2794
        %2796 = vmax.xlane.f32.xlu0 %v2566
        %v2797 = vpop.xlane.xlu0 %2796
        %2798 = vmax.xlane.f32.xlu0 %v2567
        %v2799 = vpop.xlane.xlu0 %2798
        %2800 = vmax.xlane.f32.xlu0 %v2568
        %v2801 = vpop.xlane.xlu0 %2800
        %2802 = vmax.xlane.f32.xlu0 %v2569
        %v2803 = vpop.xlane.xlu0 %2802
        %2804 = vmax.xlane.f32.xlu0 %v2570
        %v2805 = vpop.xlane.xlu0 %2804
        %2806 = vmax.xlane.f32.xlu0 %v2571
        %v2807 = vpop.xlane.xlu0 %2806
        %2808 = vmax.xlane.f32.xlu0 %v2572
        %v2809 = vpop.xlane.xlu0 %2808
        %2810 = vmax.xlane.f32.xlu0 %v2573
        %v2811 = vpop.xlane.xlu0 %2810
        %2812 = vmax.xlane.f32.xlu0 %v2574
        %v2813 = vpop.xlane.xlu0 %2812
        %2814 = vmax.xlane.f32.xlu0 %v2575
        %v2815 = vpop.xlane.xlu0 %2814
        %2816 = vmax.xlane.f32.xlu0 %v2576
        %v2817 = vpop.xlane.xlu0 %2816
        %2818 = vmax.xlane.f32.xlu0 %v2577
        %v2819 = vpop.xlane.xlu0 %2818
        %2820 = vmax.xlane.f32.xlu0 %v2578
        %v2821 = vpop.xlane.xlu0 %2820
        %2822 = vmax.xlane.f32.xlu0 %v2579
        %v2823 = vpop.xlane.xlu0 %2822
        %2824 = vmax.xlane.f32.xlu0 %v2580
        %v2825 = vpop.xlane.xlu0 %2824
        %2826 = vmax.xlane.f32.xlu0 %v2581
        %v2827 = vpop.xlane.xlu0 %2826
        %2828 = vmax.xlane.f32.xlu0 %v2582
        %v2829 = vpop.xlane.xlu0 %2828
        %2830 = vmax.xlane.f32.xlu0 %v2583
        %v2831 = vpop.xlane.xlu0 %2830
        %2832 = vmax.xlane.f32.xlu0 %v2584
        %v2833 = vpop.xlane.xlu0 %2832
        %2834 = vmax.xlane.f32.xlu0 %v2585
        %v2835 = vpop.xlane.xlu0 %2834
        %2836 = vmax.xlane.f32.xlu0 %v2586
        %v2837 = vpop.xlane.xlu0 %2836
        %2838 = vmax.xlane.f32.xlu0 %v2587
        %v2839 = vpop.xlane.xlu0 %2838
        %2840 = vmax.xlane.f32.xlu0 %v2588
        %v2841 = vpop.xlane.xlu0 %2840
        %2842 = vmax.xlane.f32.xlu0 %v2589
        %v2843 = vpop.xlane.xlu0 %2842
        %2844 = vmax.xlane.f32.xlu0 %v2590
        %v2845 = vpop.xlane.xlu0 %2844
        %2846 = vmax.xlane.f32.xlu0 %v2591
        %v2847 = vpop.xlane.xlu0 %2846
        %v2848 = vld [vmem:[%s325] sm:$0xff]
        %v2849 = vld [vmem:[%s325 + $0x8] sm:$0xff]
        %v2850 = vld [vmem:[%s325 + $0x10] sm:$0xff]
        %v2851 = vld [vmem:[%s325 + $0x18] sm:$0xff]
        %v2852 = vld [vmem:[%s325 + $0x20] sm:$0xff]
        %v2853 = vld [vmem:[%s325 + $0x28] sm:$0xff]
        %v2854 = vld [vmem:[%s325 + $0x30] sm:$0xff]
        %v2855 = vld [vmem:[%s325 + $0x38] sm:$0xff]
        %v2856 = vld [vmem:[%s325 + $0x40] sm:$0xff]
        %v2857 = vld [vmem:[%s325 + $0x48] sm:$0xff]
        %v2858 = vld [vmem:[%s325 + $0x50] sm:$0xff]
        %v2859 = vld [vmem:[%s325 + $0x58] sm:$0xff]
        %v2860 = vld [vmem:[%s325 + $0x60] sm:$0xff]
        %v2861 = vld [vmem:[%s325 + $0x68] sm:$0xff]
        %v2862 = vld [vmem:[%s325 + $0x70] sm:$0xff]
        %v2863 = vld [vmem:[%s325 + $0x78] sm:$0xff]
        %v2864 = vld [vmem:[%s325 + $0x80] sm:$0xff]
        %v2865 = vld [vmem:[%s325 + $0x88] sm:$0xff]
        %v2866 = vld [vmem:[%s325 + $0x90] sm:$0xff]
        %v2867 = vld [vmem:[%s325 + $0x98] sm:$0xff]
        %v2868 = vld [vmem:[%s325 + $0xa0] sm:$0xff]
        %v2869 = vld [vmem:[%s325 + $0xa8] sm:$0xff]
        %v2870 = vld [vmem:[%s325 + $0xb0] sm:$0xff]
        %v2871 = vld [vmem:[%s325 + $0xb8] sm:$0xff]
        %v2872 = vld [vmem:[%s325 + $0xc0] sm:$0xff]
        %v2873 = vld [vmem:[%s325 + $0xc8] sm:$0xff]
        %v2874 = vld [vmem:[%s325 + $0xd0] sm:$0xff]
        %v2875 = vld [vmem:[%s325 + $0xd8] sm:$0xff]
        %v2876 = vld [vmem:[%s325 + $0xe0] sm:$0xff]
        %v2877 = vld [vmem:[%s325 + $0xe8] sm:$0xff]
        %v2878 = vld [vmem:[%s325 + $0xf0] sm:$0xff]
        %v2879 = vld [vmem:[%s325 + $0xf8] sm:$0xff]
        %v2880 = vld [vmem:[%s325 + $0x100] sm:$0xff]
        %v2881 = vld [vmem:[%s325 + $0x108] sm:$0xff]
        %v2882 = vld [vmem:[%s325 + $0x110] sm:$0xff]
        %v2883 = vld [vmem:[%s325 + $0x118] sm:$0xff]
        %v2884 = vld [vmem:[%s325 + $0x120] sm:$0xff]
        %v2885 = vld [vmem:[%s325 + $0x128] sm:$0xff]
        %v2886 = vld [vmem:[%s325 + $0x130] sm:$0xff]
        %v2887 = vld [vmem:[%s325 + $0x138] sm:$0xff]
        %v2888 = vld [vmem:[%s325 + $0x140] sm:$0xff]
        %v2889 = vld [vmem:[%s325 + $0x148] sm:$0xff]
        %v2890 = vld [vmem:[%s325 + $0x150] sm:$0xff]
        %v2891 = vld [vmem:[%s325 + $0x158] sm:$0xff]
        %v2892 = vld [vmem:[%s325 + $0x160] sm:$0xff]
        %v2893 = vld [vmem:[%s325 + $0x168] sm:$0xff]
        %v2894 = vld [vmem:[%s325 + $0x170] sm:$0xff]
        %v2895 = vld [vmem:[%s325 + $0x178] sm:$0xff]
        %v2896 = vld [vmem:[%s325 + $0x180] sm:$0xff]
        %v2897 = vld [vmem:[%s325 + $0x188] sm:$0xff]
        %v2898 = vld [vmem:[%s325 + $0x190] sm:$0xff]
        %v2899 = vld [vmem:[%s325 + $0x198] sm:$0xff]
        %v2900 = vld [vmem:[%s325 + $0x1a0] sm:$0xff]
        %v2901 = vld [vmem:[%s325 + $0x1a8] sm:$0xff]
        %v2902 = vld [vmem:[%s325 + $0x1b0] sm:$0xff]
        %v2903 = vld [vmem:[%s325 + $0x1b8] sm:$0xff]
        %v2904 = vld [vmem:[%s325 + $0x1c0] sm:$0xff]
        %v2905 = vld [vmem:[%s325 + $0x1c8] sm:$0xff]
        %v2906 = vld [vmem:[%s325 + $0x1d0] sm:$0xff]
        %v2907 = vld [vmem:[%s325 + $0x1d8] sm:$0xff]
        %v2908 = vld [vmem:[%s325 + $0x1e0] sm:$0xff]
        %v2909 = vld [vmem:[%s325 + $0x1e8] sm:$0xff]
        %v2910 = vld [vmem:[%s325 + $0x1f0] sm:$0xff]
        %v2911 = vld [vmem:[%s325 + $0x1f8] sm:$0xff]
        %v2912 = vld [vmem:[%s325 + $0x200] sm:$0xff]
        %v2913 = vld [vmem:[%s325 + $0x208] sm:$0xff]
        %v2914 = vld [vmem:[%s325 + $0x210] sm:$0xff]
        %v2915 = vld [vmem:[%s325 + $0x218] sm:$0xff]
        %v2916 = vld [vmem:[%s325 + $0x220] sm:$0xff]
        %v2917 = vld [vmem:[%s325 + $0x228] sm:$0xff]
        %v2918 = vld [vmem:[%s325 + $0x230] sm:$0xff]
        %v2919 = vld [vmem:[%s325 + $0x238] sm:$0xff]
        %v2920 = vld [vmem:[%s325 + $0x240] sm:$0xff]
        %v2921 = vld [vmem:[%s325 + $0x248] sm:$0xff]
        %v2922 = vld [vmem:[%s325 + $0x250] sm:$0xff]
        %v2923 = vld [vmem:[%s325 + $0x258] sm:$0xff]
        %v2924 = vld [vmem:[%s325 + $0x260] sm:$0xff]
        %v2925 = vld [vmem:[%s325 + $0x268] sm:$0xff]
        %v2926 = vld [vmem:[%s325 + $0x270] sm:$0xff]
        %v2927 = vld [vmem:[%s325 + $0x278] sm:$0xff]
        %v2928 = vld [vmem:[%s325 + $0x280] sm:$0xff]
        %v2929 = vld [vmem:[%s325 + $0x288] sm:$0xff]
        %v2930 = vld [vmem:[%s325 + $0x290] sm:$0xff]
        %v2931 = vld [vmem:[%s325 + $0x298] sm:$0xff]
        %v2932 = vld [vmem:[%s325 + $0x2a0] sm:$0xff]
        %v2933 = vld [vmem:[%s325 + $0x2a8] sm:$0xff]
        %v2934 = vld [vmem:[%s325 + $0x2b0] sm:$0xff]
        %v2935 = vld [vmem:[%s325 + $0x2b8] sm:$0xff]
        %v2936 = vld [vmem:[%s325 + $0x2c0] sm:$0xff]
        %v2937 = vld [vmem:[%s325 + $0x2c8] sm:$0xff]
        %v2938 = vld [vmem:[%s325 + $0x2d0] sm:$0xff]
        %v2939 = vld [vmem:[%s325 + $0x2d8] sm:$0xff]
        %v2940 = vld [vmem:[%s325 + $0x2e0] sm:$0xff]
        %v2941 = vld [vmem:[%s325 + $0x2e8] sm:$0xff]
        %v2942 = vld [vmem:[%s325 + $0x2f0] sm:$0xff]
        %v2943 = vld [vmem:[%s325 + $0x2f8] sm:$0xff]
        %v2944 = vld [vmem:[%s325 + $0x300] sm:$0xff]
        %v2945 = vld [vmem:[%s325 + $0x308] sm:$0xff]
        %v2946 = vld [vmem:[%s325 + $0x310] sm:$0xff]
        %v2947 = vld [vmem:[%s325 + $0x318] sm:$0xff]
        %v2948 = vld [vmem:[%s325 + $0x320] sm:$0xff]
        %v2949 = vld [vmem:[%s325 + $0x328] sm:$0xff]
        %v2950 = vld [vmem:[%s325 + $0x330] sm:$0xff]
        %v2951 = vld [vmem:[%s325 + $0x338] sm:$0xff]
        %v2952 = vld [vmem:[%s325 + $0x340] sm:$0xff]
        %v2953 = vld [vmem:[%s325 + $0x348] sm:$0xff]
        %v2954 = vld [vmem:[%s325 + $0x350] sm:$0xff]
        %v2955 = vld [vmem:[%s325 + $0x358] sm:$0xff]
        %v2956 = vld [vmem:[%s325 + $0x360] sm:$0xff]
        %v2957 = vld [vmem:[%s325 + $0x368] sm:$0xff]
        %v2958 = vld [vmem:[%s325 + $0x370] sm:$0xff]
        %v2959 = vld [vmem:[%s325 + $0x378] sm:$0xff]
        %v2960 = vld [vmem:[%s325 + $0x380] sm:$0xff]
        %v2961 = vld [vmem:[%s325 + $0x388] sm:$0xff]
        %v2962 = vld [vmem:[%s325 + $0x390] sm:$0xff]
        %v2963 = vld [vmem:[%s325 + $0x398] sm:$0xff]
        %v2964 = vld [vmem:[%s325 + $0x3a0] sm:$0xff]
        %v2965 = vld [vmem:[%s325 + $0x3a8] sm:$0xff]
        %v2966 = vld [vmem:[%s325 + $0x3b0] sm:$0xff]
        %v2967 = vld [vmem:[%s325 + $0x3b8] sm:$0xff]
        %v2968 = vld [vmem:[%s325 + $0x3c0] sm:$0xff]
        %v2969 = vld [vmem:[%s325 + $0x3c8] sm:$0xff]
        %v2970 = vld [vmem:[%s325 + $0x3d0] sm:$0xff]
        %v2971 = vld [vmem:[%s325 + $0x3d8] sm:$0xff]
        %v2972 = vld [vmem:[%s325 + $0x3e0] sm:$0xff]
        %v2973 = vld [vmem:[%s325 + $0x3e8] sm:$0xff]
        %v2974 = vld [vmem:[%s325 + $0x3f0] sm:$0xff]
        %v2975 = vld [vmem:[%s325 + $0x3f8] sm:$0xff]
        %v2976 = vadd.f32 %v2593, %v2848
        %v2977 = vadd.f32 %v2595, %v2849
        %v2978 = vadd.f32 %v2597, %v2850
        %v2979 = vadd.f32 %v2599, %v2851
        %v2980 = vadd.f32 %v2601, %v2852
        %v2981 = vadd.f32 %v2603, %v2853
        %v2982 = vadd.f32 %v2605, %v2854
        %v2983 = vadd.f32 %v2607, %v2855
        %v2984 = vadd.f32 %v2609, %v2856
        %v2985 = vadd.f32 %v2611, %v2857
        %v2986 = vadd.f32 %v2613, %v2858
        %v2987 = vadd.f32 %v2615, %v2859
        %v2988 = vadd.f32 %v2617, %v2860
        %v2989 = vadd.f32 %v2619, %v2861
        %v2990 = vadd.f32 %v2621, %v2862
        %v2991 = vadd.f32 %v2623, %v2863
        %v2992 = vadd.f32 %v2625, %v2864
        %v2993 = vadd.f32 %v2627, %v2865
        %v2994 = vadd.f32 %v2629, %v2866
        %v2995 = vadd.f32 %v2631, %v2867
        %v2996 = vadd.f32 %v2633, %v2868
        %v2997 = vadd.f32 %v2635, %v2869
        %v2998 = vadd.f32 %v2637, %v2870
        %v2999 = vadd.f32 %v2639, %v2871
        %v3000 = vadd.f32 %v2641, %v2872
        %v3001 = vadd.f32 %v2643, %v2873
        %v3002 = vadd.f32 %v2645, %v2874
        %v3003 = vadd.f32 %v2647, %v2875
        %v3004 = vadd.f32 %v2649, %v2876
        %v3005 = vadd.f32 %v2651, %v2877
        %v3006 = vadd.f32 %v2653, %v2878
        %v3007 = vadd.f32 %v2655, %v2879
        %v3008 = vadd.f32 %v2657, %v2880
        %v3009 = vadd.f32 %v2659, %v2881
        %v3010 = vadd.f32 %v2661, %v2882
        %v3011 = vadd.f32 %v2663, %v2883
        %v3012 = vadd.f32 %v2665, %v2884
        %v3013 = vadd.f32 %v2667, %v2885
        %v3014 = vadd.f32 %v2669, %v2886
        %v3015 = vadd.f32 %v2671, %v2887
        %v3016 = vadd.f32 %v2673, %v2888
        %v3017 = vadd.f32 %v2675, %v2889
        %v3018 = vadd.f32 %v2677, %v2890
        %v3019 = vadd.f32 %v2679, %v2891
        %v3020 = vadd.f32 %v2681, %v2892
        %v3021 = vadd.f32 %v2683, %v2893
        %v3022 = vadd.f32 %v2685, %v2894
        %v3023 = vadd.f32 %v2687, %v2895
        %v3024 = vadd.f32 %v2689, %v2896
        %v3025 = vadd.f32 %v2691, %v2897
        %v3026 = vadd.f32 %v2693, %v2898
        %v3027 = vadd.f32 %v2695, %v2899
        %v3028 = vadd.f32 %v2697, %v2900
        %v3029 = vadd.f32 %v2699, %v2901
        %v3030 = vadd.f32 %v2701, %v2902
        %v3031 = vadd.f32 %v2703, %v2903
        %v3032 = vadd.f32 %v2705, %v2904
        %v3033 = vadd.f32 %v2707, %v2905
        %v3034 = vadd.f32 %v2709, %v2906
        %v3035 = vadd.f32 %v2711, %v2907
        %v3036 = vadd.f32 %v2713, %v2908
        %v3037 = vadd.f32 %v2715, %v2909
        %v3038 = vadd.f32 %v2717, %v2910
        %v3039 = vadd.f32 %v2719, %v2911
        %v3040 = vadd.f32 %v2721, %v2912
        %v3041 = vadd.f32 %v2723, %v2913
        %v3042 = vadd.f32 %v2725, %v2914
        %v3043 = vadd.f32 %v2727, %v2915
        %v3044 = vadd.f32 %v2729, %v2916
        %v3045 = vadd.f32 %v2731, %v2917
        %v3046 = vadd.f32 %v2733, %v2918
        %v3047 = vadd.f32 %v2735, %v2919
        %v3048 = vadd.f32 %v2737, %v2920
        %v3049 = vadd.f32 %v2739, %v2921
        %v3050 = vadd.f32 %v2741, %v2922
        %v3051 = vadd.f32 %v2743, %v2923
        %v3052 = vadd.f32 %v2745, %v2924
        %v3053 = vadd.f32 %v2747, %v2925
        %v3054 = vadd.f32 %v2749, %v2926
        %v3055 = vadd.f32 %v2751, %v2927
        %v3056 = vadd.f32 %v2753, %v2928
        %v3057 = vadd.f32 %v2755, %v2929
        %v3058 = vadd.f32 %v2757, %v2930
        %v3059 = vadd.f32 %v2759, %v2931
        %v3060 = vadd.f32 %v2761, %v2932
        %v3061 = vadd.f32 %v2763, %v2933
        %v3062 = vadd.f32 %v2765, %v2934
        %v3063 = vadd.f32 %v2767, %v2935
        %v3064 = vadd.f32 %v2769, %v2936
        %v3065 = vadd.f32 %v2771, %v2937
        %v3066 = vadd.f32 %v2773, %v2938
        %v3067 = vadd.f32 %v2775, %v2939
        %v3068 = vadd.f32 %v2777, %v2940
        %v3069 = vadd.f32 %v2779, %v2941
        %v3070 = vadd.f32 %v2781, %v2942
        %v3071 = vadd.f32 %v2783, %v2943
        %v3072 = vadd.f32 %v2785, %v2944
        %v3073 = vadd.f32 %v2787, %v2945
        %v3074 = vadd.f32 %v2789, %v2946
        %v3075 = vadd.f32 %v2791, %v2947
        %v3076 = vadd.f32 %v2793, %v2948
        %v3077 = vadd.f32 %v2795, %v2949
        %v3078 = vadd.f32 %v2797, %v2950
        %v3079 = vadd.f32 %v2799, %v2951
        %v3080 = vadd.f32 %v2801, %v2952
        %v3081 = vadd.f32 %v2803, %v2953
        %v3082 = vadd.f32 %v2805, %v2954
        %v3083 = vadd.f32 %v2807, %v2955
        %v3084 = vadd.f32 %v2809, %v2956
        %v3085 = vadd.f32 %v2811, %v2957
        %v3086 = vadd.f32 %v2813, %v2958
        %v3087 = vadd.f32 %v2815, %v2959
        %v3088 = vadd.f32 %v2817, %v2960
        %v3089 = vadd.f32 %v2819, %v2961
        %v3090 = vadd.f32 %v2821, %v2962
        %v3091 = vadd.f32 %v2823, %v2963
        %v3092 = vadd.f32 %v2825, %v2964
        %v3093 = vadd.f32 %v2827, %v2965
        %v3094 = vadd.f32 %v2829, %v2966
        %v3095 = vadd.f32 %v2831, %v2967
        %v3096 = vadd.f32 %v2833, %v2968
        %v3097 = vadd.f32 %v2835, %v2969
        %v3098 = vadd.f32 %v2837, %v2970
        %v3099 = vadd.f32 %v2839, %v2971
        %v3100 = vadd.f32 %v2841, %v2972
        %v3101 = vadd.f32 %v2843, %v2973
        %v3102 = vadd.f32 %v2845, %v2974
        %v3103 = vadd.f32 %v2847, %v2975
        %v3104 = vmax.f32 %v2976, 0.0
        %v3105 = vmax.f32 %v2977, 0.0
        %v3106 = vmax.f32 %v2978, 0.0
        %v3107 = vmax.f32 %v2979, 0.0
        %v3108 = vmax.f32 %v2980, 0.0
        %v3109 = vmax.f32 %v2981, 0.0
        %v3110 = vmax.f32 %v2982, 0.0
        %v3111 = vmax.f32 %v2983, 0.0
        %v3112 = vmax.f32 %v2984, 0.0
        %v3113 = vmax.f32 %v2985, 0.0
        %v3114 = vmax.f32 %v2986, 0.0
        %v3115 = vmax.f32 %v2987, 0.0
        %v3116 = vmax.f32 %v2988, 0.0
        %v3117 = vmax.f32 %v2989, 0.0
        %v3118 = vmax.f32 %v2990, 0.0
        %v3119 = vmax.f32 %v2991, 0.0
        %v3120 = vmax.f32 %v2992, 0.0
        %v3121 = vmax.f32 %v2993, 0.0
        %v3122 = vmax.f32 %v2994, 0.0
        %v3123 = vmax.f32 %v2995, 0.0
        %v3124 = vmax.f32 %v2996, 0.0
        %v3125 = vmax.f32 %v2997, 0.0
        %v3126 = vmax.f32 %v2998, 0.0
        %v3127 = vmax.f32 %v2999, 0.0
        %v3128 = vmax.f32 %v3000, 0.0
        %v3129 = vmax.f32 %v3001, 0.0
        %v3130 = vmax.f32 %v3002, 0.0
        %v3131 = vmax.f32 %v3003, 0.0
        %v3132 = vmax.f32 %v3004, 0.0
        %v3133 = vmax.f32 %v3005, 0.0
        %v3134 = vmax.f32 %v3006, 0.0
        %v3135 = vmax.f32 %v3007, 0.0
        %v3136 = vmax.f32 %v3008, 0.0
        %v3137 = vmax.f32 %v3009, 0.0
        %v3138 = vmax.f32 %v3010, 0.0
        %v3139 = vmax.f32 %v3011, 0.0
        %v3140 = vmax.f32 %v3012, 0.0
        %v3141 = vmax.f32 %v3013, 0.0
        %v3142 = vmax.f32 %v3014, 0.0
        %v3143 = vmax.f32 %v3015, 0.0
        %v3144 = vmax.f32 %v3016, 0.0
        %v3145 = vmax.f32 %v3017, 0.0
        %v3146 = vmax.f32 %v3018, 0.0
        %v3147 = vmax.f32 %v3019, 0.0
        %v3148 = vmax.f32 %v3020, 0.0
        %v3149 = vmax.f32 %v3021, 0.0
        %v3150 = vmax.f32 %v3022, 0.0
        %v3151 = vmax.f32 %v3023, 0.0
        %v3152 = vmax.f32 %v3024, 0.0
        %v3153 = vmax.f32 %v3025, 0.0
        %v3154 = vmax.f32 %v3026, 0.0
        %v3155 = vmax.f32 %v3027, 0.0
        %v3156 = vmax.f32 %v3028, 0.0
        %v3157 = vmax.f32 %v3029, 0.0
        %v3158 = vmax.f32 %v3030, 0.0
        %v3159 = vmax.f32 %v3031, 0.0
        %v3160 = vmax.f32 %v3032, 0.0
        %v3161 = vmax.f32 %v3033, 0.0
        %v3162 = vmax.f32 %v3034, 0.0
        %v3163 = vmax.f32 %v3035, 0.0
        %v3164 = vmax.f32 %v3036, 0.0
        %v3165 = vmax.f32 %v3037, 0.0
        %v3166 = vmax.f32 %v3038, 0.0
        %v3167 = vmax.f32 %v3039, 0.0
        %v3168 = vmax.f32 %v3040, 0.0
        %v3169 = vmax.f32 %v3041, 0.0
        %v3170 = vmax.f32 %v3042, 0.0
        %v3171 = vmax.f32 %v3043, 0.0
        %v3172 = vmax.f32 %v3044, 0.0
        %v3173 = vmax.f32 %v3045, 0.0
        %v3174 = vmax.f32 %v3046, 0.0
        %v3175 = vmax.f32 %v3047, 0.0
        %v3176 = vmax.f32 %v3048, 0.0
        %v3177 = vmax.f32 %v3049, 0.0
        %v3178 = vmax.f32 %v3050, 0.0
        %v3179 = vmax.f32 %v3051, 0.0
        %v3180 = vmax.f32 %v3052, 0.0
        %v3181 = vmax.f32 %v3053, 0.0
        %v3182 = vmax.f32 %v3054, 0.0
        %v3183 = vmax.f32 %v3055, 0.0
        %v3184 = vmax.f32 %v3056, 0.0
        %v3185 = vmax.f32 %v3057, 0.0
        %v3186 = vmax.f32 %v3058, 0.0
        %v3187 = vmax.f32 %v3059, 0.0
        %v3188 = vmax.f32 %v3060, 0.0
        %v3189 = vmax.f32 %v3061, 0.0
        %v3190 = vmax.f32 %v3062, 0.0
        %v3191 = vmax.f32 %v3063, 0.0
        %v3192 = vmax.f32 %v3064, 0.0
        %v3193 = vmax.f32 %v3065, 0.0
        %v3194 = vmax.f32 %v3066, 0.0
        %v3195 = vmax.f32 %v3067, 0.0
        %v3196 = vmax.f32 %v3068, 0.0
        %v3197 = vmax.f32 %v3069, 0.0
        %v3198 = vmax.f32 %v3070, 0.0
        %v3199 = vmax.f32 %v3071, 0.0
        %v3200 = vmax.f32 %v3072, 0.0
        %v3201 = vmax.f32 %v3073, 0.0
        %v3202 = vmax.f32 %v3074, 0.0
        %v3203 = vmax.f32 %v3075, 0.0
        %v3204 = vmax.f32 %v3076, 0.0
        %v3205 = vmax.f32 %v3077, 0.0
        %v3206 = vmax.f32 %v3078, 0.0
        %v3207 = vmax.f32 %v3079, 0.0
        %v3208 = vmax.f32 %v3080, 0.0
        %v3209 = vmax.f32 %v3081, 0.0
        %v3210 = vmax.f32 %v3082, 0.0
        %v3211 = vmax.f32 %v3083, 0.0
        %v3212 = vmax.f32 %v3084, 0.0
        %v3213 = vmax.f32 %v3085, 0.0
        %v3214 = vmax.f32 %v3086, 0.0
        %v3215 = vmax.f32 %v3087, 0.0
        %v3216 = vmax.f32 %v3088, 0.0
        %v3217 = vmax.f32 %v3089, 0.0
        %v3218 = vmax.f32 %v3090, 0.0
        %v3219 = vmax.f32 %v3091, 0.0
        %v3220 = vmax.f32 %v3092, 0.0
        %v3221 = vmax.f32 %v3093, 0.0
        %v3222 = vmax.f32 %v3094, 0.0
        %v3223 = vmax.f32 %v3095, 0.0
        %v3224 = vmax.f32 %v3096, 0.0
        %v3225 = vmax.f32 %v3097, 0.0
        %v3226 = vmax.f32 %v3098, 0.0
        %v3227 = vmax.f32 %v3099, 0.0
        %v3228 = vmax.f32 %v3100, 0.0
        %v3229 = vmax.f32 %v3101, 0.0
        %v3230 = vmax.f32 %v3102, 0.0
        %v3231 = vmax.f32 %v3103, 0.0
        %vm3232 = vcmask 7168
        %3233 = vst.msk [vmem:[%s335] sm:$0xff] %vm3232, %v3104
        %3234 = vst.msk [vmem:[%s335 + $0x8] sm:$0xff] %vm3232, %v3105
        %3235 = vst.msk [vmem:[%s335 + $0x10] sm:$0xff] %vm3232, %v3106
        %3236 = vst.msk [vmem:[%s335 + $0x18] sm:$0xff] %vm3232, %v3107
        %3237 = vst.msk [vmem:[%s335 + $0x20] sm:$0xff] %vm3232, %v3108
        %3238 = vst.msk [vmem:[%s335 + $0x28] sm:$0xff] %vm3232, %v3109
        %3239 = vst.msk [vmem:[%s335 + $0x30] sm:$0xff] %vm3232, %v3110
        %3240 = vst.msk [vmem:[%s335 + $0x38] sm:$0xff] %vm3232, %v3111
        %3241 = vst.msk [vmem:[%s335 + $0x40] sm:$0xff] %vm3232, %v3112
        %3242 = vst.msk [vmem:[%s335 + $0x48] sm:$0xff] %vm3232, %v3113
        %3243 = vst.msk [vmem:[%s335 + $0x50] sm:$0xff] %vm3232, %v3114
        %3244 = vst.msk [vmem:[%s335 + $0x58] sm:$0xff] %vm3232, %v3115
        %3245 = vst.msk [vmem:[%s335 + $0x60] sm:$0xff] %vm3232, %v3116
        %3246 = vst.msk [vmem:[%s335 + $0x68] sm:$0xff] %vm3232, %v3117
        %3247 = vst.msk [vmem:[%s335 + $0x70] sm:$0xff] %vm3232, %v3118
        %3248 = vst.msk [vmem:[%s335 + $0x78] sm:$0xff] %vm3232, %v3119
        %3249 = vst.msk [vmem:[%s335 + $0x80] sm:$0xff] %vm3232, %v3120
        %3250 = vst.msk [vmem:[%s335 + $0x88] sm:$0xff] %vm3232, %v3121
        %3251 = vst.msk [vmem:[%s335 + $0x90] sm:$0xff] %vm3232, %v3122
        %3252 = vst.msk [vmem:[%s335 + $0x98] sm:$0xff] %vm3232, %v3123
        %3253 = vst.msk [vmem:[%s335 + $0xa0] sm:$0xff] %vm3232, %v3124
        %3254 = vst.msk [vmem:[%s335 + $0xa8] sm:$0xff] %vm3232, %v3125
        %3255 = vst.msk [vmem:[%s335 + $0xb0] sm:$0xff] %vm3232, %v3126
        %3256 = vst.msk [vmem:[%s335 + $0xb8] sm:$0xff] %vm3232, %v3127
        %3257 = vst.msk [vmem:[%s335 + $0xc0] sm:$0xff] %vm3232, %v3128
        %3258 = vst.msk [vmem:[%s335 + $0xc8] sm:$0xff] %vm3232, %v3129
        %3259 = vst.msk [vmem:[%s335 + $0xd0] sm:$0xff] %vm3232, %v3130
        %3260 = vst.msk [vmem:[%s335 + $0xd8] sm:$0xff] %vm3232, %v3131
        %3261 = vst.msk [vmem:[%s335 + $0xe0] sm:$0xff] %vm3232, %v3132
        %3262 = vst.msk [vmem:[%s335 + $0xe8] sm:$0xff] %vm3232, %v3133
        %3263 = vst.msk [vmem:[%s335 + $0xf0] sm:$0xff] %vm3232, %v3134
        %3264 = vst.msk [vmem:[%s335 + $0xf8] sm:$0xff] %vm3232, %v3135
        %3265 = vst.msk [vmem:[%s335 + $0x100] sm:$0xff] %vm3232, %v3136
        %3266 = vst.msk [vmem:[%s335 + $0x108] sm:$0xff] %vm3232, %v3137
        %3267 = vst.msk [vmem:[%s335 + $0x110] sm:$0xff] %vm3232, %v3138
        %3268 = vst.msk [vmem:[%s335 + $0x118] sm:$0xff] %vm3232, %v3139
        %3269 = vst.msk [vmem:[%s335 + $0x120] sm:$0xff] %vm3232, %v3140
        %3270 = vst.msk [vmem:[%s335 + $0x128] sm:$0xff] %vm3232, %v3141
        %3271 = vst.msk [vmem:[%s335 + $0x130] sm:$0xff] %vm3232, %v3142
        %3272 = vst.msk [vmem:[%s335 + $0x138] sm:$0xff] %vm3232, %v3143
        %3273 = vst.msk [vmem:[%s335 + $0x140] sm:$0xff] %vm3232, %v3144
        %3274 = vst.msk [vmem:[%s335 + $0x148] sm:$0xff] %vm3232, %v3145
        %3275 = vst.msk [vmem:[%s335 + $0x150] sm:$0xff] %vm3232, %v3146
        %3276 = vst.msk [vmem:[%s335 + $0x158] sm:$0xff] %vm3232, %v3147
        %3277 = vst.msk [vmem:[%s335 + $0x160] sm:$0xff] %vm3232, %v3148
        %3278 = vst.msk [vmem:[%s335 + $0x168] sm:$0xff] %vm3232, %v3149
        %3279 = vst.msk [vmem:[%s335 + $0x170] sm:$0xff] %vm3232, %v3150
        %3280 = vst.msk [vmem:[%s335 + $0x178] sm:$0xff] %vm3232, %v3151
        %3281 = vst.msk [vmem:[%s335 + $0x180] sm:$0xff] %vm3232, %v3152
        %3282 = vst.msk [vmem:[%s335 + $0x188] sm:$0xff] %vm3232, %v3153
        %3283 = vst.msk [vmem:[%s335 + $0x190] sm:$0xff] %vm3232, %v3154
        %3284 = vst.msk [vmem:[%s335 + $0x198] sm:$0xff] %vm3232, %v3155
        %3285 = vst.msk [vmem:[%s335 + $0x1a0] sm:$0xff] %vm3232, %v3156
        %3286 = vst.msk [vmem:[%s335 + $0x1a8] sm:$0xff] %vm3232, %v3157
        %3287 = vst.msk [vmem:[%s335 + $0x1b0] sm:$0xff] %vm3232, %v3158
        %3288 = vst.msk [vmem:[%s335 + $0x1b8] sm:$0xff] %vm3232, %v3159
        %3289 = vst.msk [vmem:[%s335 + $0x1c0] sm:$0xff] %vm3232, %v3160
        %3290 = vst.msk [vmem:[%s335 + $0x1c8] sm:$0xff] %vm3232, %v3161
        %3291 = vst.msk [vmem:[%s335 + $0x1d0] sm:$0xff] %vm3232, %v3162
        %3292 = vst.msk [vmem:[%s335 + $0x1d8] sm:$0xff] %vm3232, %v3163
        %3293 = vst.msk [vmem:[%s335 + $0x1e0] sm:$0xff] %vm3232, %v3164
        %3294 = vst.msk [vmem:[%s335 + $0x1e8] sm:$0xff] %vm3232, %v3165
        %3295 = vst.msk [vmem:[%s335 + $0x1f0] sm:$0xff] %vm3232, %v3166
        %3296 = vst.msk [vmem:[%s335 + $0x1f8] sm:$0xff] %vm3232, %v3167
        %3297 = vst.msk [vmem:[%s335 + $0x200] sm:$0xff] %vm3232, %v3168
        %3298 = vst.msk [vmem:[%s335 + $0x208] sm:$0xff] %vm3232, %v3169
        %3299 = vst.msk [vmem:[%s335 + $0x210] sm:$0xff] %vm3232, %v3170
        %3300 = vst.msk [vmem:[%s335 + $0x218] sm:$0xff] %vm3232, %v3171
        %3301 = vst.msk [vmem:[%s335 + $0x220] sm:$0xff] %vm3232, %v3172
        %3302 = vst.msk [vmem:[%s335 + $0x228] sm:$0xff] %vm3232, %v3173
        %3303 = vst.msk [vmem:[%s335 + $0x230] sm:$0xff] %vm3232, %v3174
        %3304 = vst.msk [vmem:[%s335 + $0x238] sm:$0xff] %vm3232, %v3175
        %3305 = vst.msk [vmem:[%s335 + $0x240] sm:$0xff] %vm3232, %v3176
        %3306 = vst.msk [vmem:[%s335 + $0x248] sm:$0xff] %vm3232, %v3177
        %3307 = vst.msk [vmem:[%s335 + $0x250] sm:$0xff] %vm3232, %v3178
        %3308 = vst.msk [vmem:[%s335 + $0x258] sm:$0xff] %vm3232, %v3179
        %3309 = vst.msk [vmem:[%s335 + $0x260] sm:$0xff] %vm3232, %v3180
        %3310 = vst.msk [vmem:[%s335 + $0x268] sm:$0xff] %vm3232, %v3181
        %3311 = vst.msk [vmem:[%s335 + $0x270] sm:$0xff] %vm3232, %v3182
        %3312 = vst.msk [vmem:[%s335 + $0x278] sm:$0xff] %vm3232, %v3183
        %3313 = vst.msk [vmem:[%s335 + $0x280] sm:$0xff] %vm3232, %v3184
        %3314 = vst.msk [vmem:[%s335 + $0x288] sm:$0xff] %vm3232, %v3185
        %3315 = vst.msk [vmem:[%s335 + $0x290] sm:$0xff] %vm3232, %v3186
        %3316 = vst.msk [vmem:[%s335 + $0x298] sm:$0xff] %vm3232, %v3187
        %3317 = vst.msk [vmem:[%s335 + $0x2a0] sm:$0xff] %vm3232, %v3188
        %3318 = vst.msk [vmem:[%s335 + $0x2a8] sm:$0xff] %vm3232, %v3189
        %3319 = vst.msk [vmem:[%s335 + $0x2b0] sm:$0xff] %vm3232, %v3190
        %3320 = vst.msk [vmem:[%s335 + $0x2b8] sm:$0xff] %vm3232, %v3191
        %3321 = vst.msk [vmem:[%s335 + $0x2c0] sm:$0xff] %vm3232, %v3192
        %3322 = vst.msk [vmem:[%s335 + $0x2c8] sm:$0xff] %vm3232, %v3193
        %3323 = vst.msk [vmem:[%s335 + $0x2d0] sm:$0xff] %vm3232, %v3194
        %3324 = vst.msk [vmem:[%s335 + $0x2d8] sm:$0xff] %vm3232, %v3195
        %3325 = vst.msk [vmem:[%s335 + $0x2e0] sm:$0xff] %vm3232, %v3196
        %3326 = vst.msk [vmem:[%s335 + $0x2e8] sm:$0xff] %vm3232, %v3197
        %3327 = vst.msk [vmem:[%s335 + $0x2f0] sm:$0xff] %vm3232, %v3198
        %3328 = vst.msk [vmem:[%s335 + $0x2f8] sm:$0xff] %vm3232, %v3199
        %3329 = vst.msk [vmem:[%s335 + $0x300] sm:$0xff] %vm3232, %v3200
        %3330 = vst.msk [vmem:[%s335 + $0x308] sm:$0xff] %vm3232, %v3201
        %3331 = vst.msk [vmem:[%s335 + $0x310] sm:$0xff] %vm3232, %v3202
        %3332 = vst.msk [vmem:[%s335 + $0x318] sm:$0xff] %vm3232, %v3203
        %3333 = vst.msk [vmem:[%s335 + $0x320] sm:$0xff] %vm3232, %v3204
        %3334 = vst.msk [vmem:[%s335 + $0x328] sm:$0xff] %vm3232, %v3205
        %3335 = vst.msk [vmem:[%s335 + $0x330] sm:$0xff] %vm3232, %v3206
        %3336 = vst.msk [vmem:[%s335 + $0x338] sm:$0xff] %vm3232, %v3207
        %3337 = vst.msk [vmem:[%s335 + $0x340] sm:$0xff] %vm3232, %v3208
        %3338 = vst.msk [vmem:[%s335 + $0x348] sm:$0xff] %vm3232, %v3209
        %3339 = vst.msk [vmem:[%s335 + $0x350] sm:$0xff] %vm3232, %v3210
        %3340 = vst.msk [vmem:[%s335 + $0x358] sm:$0xff] %vm3232, %v3211
        %3341 = vst.msk [vmem:[%s335 + $0x360] sm:$0xff] %vm3232, %v3212
        %3342 = vst.msk [vmem:[%s335 + $0x368] sm:$0xff] %vm3232, %v3213
        %3343 = vst.msk [vmem:[%s335 + $0x370] sm:$0xff] %vm3232, %v3214
        %3344 = vst.msk [vmem:[%s335 + $0x378] sm:$0xff] %vm3232, %v3215
        %3345 = vst.msk [vmem:[%s335 + $0x380] sm:$0xff] %vm3232, %v3216
        %3346 = vst.msk [vmem:[%s335 + $0x388] sm:$0xff] %vm3232, %v3217
        %3347 = vst.msk [vmem:[%s335 + $0x390] sm:$0xff] %vm3232, %v3218
        %3348 = vst.msk [vmem:[%s335 + $0x398] sm:$0xff] %vm3232, %v3219
        %3349 = vst.msk [vmem:[%s335 + $0x3a0] sm:$0xff] %vm3232, %v3220
        %3350 = vst.msk [vmem:[%s335 + $0x3a8] sm:$0xff] %vm3232, %v3221
        %3351 = vst.msk [vmem:[%s335 + $0x3b0] sm:$0xff] %vm3232, %v3222
        %3352 = vst.msk [vmem:[%s335 + $0x3b8] sm:$0xff] %vm3232, %v3223
        %3353 = vst.msk [vmem:[%s335 + $0x3c0] sm:$0xff] %vm3232, %v3224
        %3354 = vst.msk [vmem:[%s335 + $0x3c8] sm:$0xff] %vm3232, %v3225
        %3355 = vst.msk [vmem:[%s335 + $0x3d0] sm:$0xff] %vm3232, %v3226
        %3356 = vst.msk [vmem:[%s335 + $0x3d8] sm:$0xff] %vm3232, %v3227
        %3357 = vst.msk [vmem:[%s335 + $0x3e0] sm:$0xff] %vm3232, %v3228
        %3358 = vst.msk [vmem:[%s335 + $0x3e8] sm:$0xff] %vm3232, %v3229
        %3359 = vst.msk [vmem:[%s335 + $0x3f0] sm:$0xff] %vm3232, %v3230
        %3360 = vst.msk [vmem:[%s335 + $0x3f8] sm:$0xff] %vm3232, %v3231
      $region52: #{tpu_custom_call.1} parent=43 // pred_fallthru
        _
      %s3361 = smul.u32 128, %s23
      %p3362 = scmp.lt.s32.totalorder %s22, 1
      %s3363 = scalar_select %p3362, %s22, 1
      %p3364 = scmp.lt.s32.totalorder %s3361, 127
      %s3365 = scalar_select %p3364, %s3361, 127
      %s3366 = smul.addr %s3363, 128
      %s3367 = sadd.s32 %s3365, %s3366
      %s3368 = smul.addr %s3367, 8
      %s3369 = scalar_lea.vmem %s6, %s3368
      // Predicated region
      $region53: #{tpu_custom_call.1} parent=43 // pred_check
        %p3370 = pneg %p199
      $region54: #{tpu_custom_call.1} parent=43 // pred_check_branch
        %3372 = sbr.rel (%p3370) target = $region56
      $region55: #{tpu_custom_call.1} parent=43 // pred_region
        %s3373 = smul.u32 128, %s23
      $region56: #{tpu_custom_call.1} parent=43 // pred_fallthru
        _
    $region44: #{tpu_custom_call.1} parent=5 // pred_fallthru
      _
    %p3374 = scmp.le.s32.totalorder 2, %s12
    // Predicated region
    $region57: #{tpu_custom_call.1} parent=5 // pred_check
      %p3375 = pneg %p3374
    $region58: #{tpu_custom_call.1} parent=5 // pred_check_branch
      %3377 = sbr.rel (%p3375) target = $region60
    $region59: #{tpu_custom_call.1} parent=5 // pred_region
      %s3378 = ssub.s32 %s12, 2
      // Predicated region
      $region61: #{tpu_custom_call.1} parent=59 // pred_check
        %p3379 = pneg %p205
      $region62: #{tpu_custom_call.1} parent=59 // pred_check_branch
        %3381 = sbr.rel (%p3379) target = $region64
      $region63: #{tpu_custom_call.1} parent=59 // pred_region
        %s3382 = smul.u32 128, %s26
        %p3383 = scmp.lt.s32.totalorder %s25, 1
        %s3384 = scalar_select %p3383, %s25, 1
        %p3385 = scmp.lt.s32.totalorder %s3382, 127
        %s3386 = scalar_select %p3385, %s3382, 127
        %s3387 = smul.addr %s3384, 128
        %s3388 = sadd.s32 %s3386, %s3387
        %s3389 = smul.addr %s3388, 8
        %s3390 = scalar_lea.vmem %s6, %s3389
      $region64: #{tpu_custom_call.1} parent=59 // pred_fallthru
        _
    $region60: #{tpu_custom_call.1} parent=5 // pred_fallthru
      _
  $region6: #{tpu_custom_call.1} parent=0 // loop_footer
    %s16 = sadd.s32 1, %s12
  $region7: #{tpu_custom_call.1} parent=0 // loop_footer_branch
    %11 = sbr.rel target = $region3
  $region8: #{tpu_custom_call.1} parent=0 // loop_exit
    _

</llo_original>
